<compile_context>
chip_gen: v7x
topology: tpu7x:2x2x1
jax: 0.10.0
libtpu: 0.0.40
codegen_flags: <defaults>
</compile_context>

<pallas_src>
import functools

import jax
import jax.numpy as jnp
import numpy as np
from jax import lax
from jax.experimental import pallas as pl
from jax.experimental.pallas import tpu as pltpu

# Compat: newer JAX exposes pltpu.CompilerParams, older exposes TPUCompilerParams.
_CompilerParams = getattr(pltpu, "CompilerParams", None) or getattr(
    pltpu, "TPUCompilerParams")


def _dense_layer_decoder_kernel(x_ref, s1_ref, b1_ref, w1_ref, s2_ref, b2_ref,
                                w2_ref, pass_ref, conv_ref, ybuf_ref, kbuf_ref,
                                *, Nb, H, W, Cin, F, Cout, pad_rows, mxu_dtype):
    HW = H * W
    M = Nb * HW     # rows pushed through both matmuls (junk rows/cols included)

    # Keep the tap overflow region finite.  pad_rows*F f32 (~2.5 KiB) per step;
    # unconditional so it is also megacore-safe (no reliance on a step-0 init).
    ybuf_ref[pl.ds(M, pad_rows), :] = jnp.zeros((pad_rows, F), jnp.float32)

    # ---- Stage 1: BN1 (folded scale/bias) + ReLU + 1x1 conv as ONE matmul ----
    x = x_ref[...]                                   # (Nb, H, W, Cin) f32, VMEM
    x_flat = x.reshape(M, Cin)                       # aligned collapse (W % 8 == 0)
    xa = jnp.maximum(x_flat * s1_ref[...] + b1_ref[...], 0.0)
    y1 = jnp.dot(xa.astype(mxu_dtype), w1_ref[...],
                 preferred_element_type=jnp.float32)             # (M, F) f32

    # ---- Stage 2: BN2 (folded) + ReLU in f32 (VPU; hidden under MXU work) ----
    y1 = jnp.maximum(y1 * s2_ref[...] + b2_ref[...], 0.0)

    # ---- Stage 3: grouped 3x3 conv as ONE stacked-K matmul ----
    # ybuf holds the flattened batch (Nb*H*W rows) plus a zero pad; the 9 taps
    # are the shifted windows at offsets ky*W + kx.  Reads that cross an image
    # boundary (or into the pad) only feed junk output positions (row >= Ho or
    # col >= Wo), which the wrapper discards.
    ybuf_ref[pl.ds(0, M), :] = y1
    t = 0
    for ky in range(3):
        for kx in range(3):
            off = ky * W + kx
            kbuf_ref[:, t * F:(t + 1) * F] = ybuf_ref[pl.ds(off, M), :]
            t += 1
    stacked = kbuf_ref[...].astype(mxu_dtype)                    # (M, 9F)
    acc = jnp.dot(stacked, w2_ref[...],
                  preferred_element_type=jnp.float32)            # (M, Cout)

    # ---- Stage 4: dense, lane-start-0 stores (trim/concat happen in wrapper) --
    conv_ref[...] = acc.reshape(Nb, H, W, Cout).astype(conv_ref.dtype)
    pass_ref[...] = x[:, 1:H - 1, :, :].astype(pass_ref.dtype)


def _fold_bn(gamma, beta, mean, var, eps):
    scale = gamma / jnp.sqrt(var + eps)
    bias = beta - mean * scale
    return scale, bias


def _pack_grouped_weight_stacked(w2, num_groups=4):
    """(Cout, F//g, 3, 3) grouped-conv weight -> stacked-K (9*F, Cout).

    Block-diagonal within each of the 9 taps so the grouped conv becomes a
    single dense matmul; K ordering is (ky, kx, input-feature), matching the
    kernel's tap stacking.
    """
    Cout, Fg, kh, kw = w2.shape
    g = num_groups
    assert Cout % g == 0
    Og = Cout // g
    F = Fg * g
    w = w2.reshape(g, Og, Fg, kh, kw)                 # (g, o, i, ky, kx)
    w = jnp.transpose(w, (3, 4, 0, 2, 1))             # (ky, kx, g, i, o)
    eye = jnp.eye(g, dtype=w2.dtype)                  # (g, h)
    dense = jnp.einsum("yxgio,gh->yxgiho", w, eye)    # zero off-diagonal groups
    # TODO(synk): for production-sized F (>=128) skip the densification and
    # stack per-group K instead, so zero blocks are never pushed through the MXU.
    return dense.reshape(kh * kw * F, Cout)           # (9F, Cout)


def _pick_batch_tile(n, max_tile):
    """Largest divisor of n <= max_tile that leaves >= 2 grid steps when n >= 2
    (so both v7x TensorCores get work via the 'parallel' batch axis)."""
    if n <= 1:
        return 1
    target = min(max_tile, max(1, n // 2))
    for nb in range(target, 0, -1):
        if n % nb == 0:
            return nb
    return 1


def dense_layer_decoder_forward(x_nchw, params, *, eps=1e-5,
                                mxu_dtype=jnp.bfloat16, batch_tile=8):
    """Pallas forward of MONAI HoVerNet _DenseLayerDecoder (inference BN).

    x_nchw: (N, Cin, H, W) float32.  Returns (N, Cin+Cout, H-2, W-2) float32.
    mxu_dtype: operand dtype for the two MXU matmuls (bf16 = fast path,
      f32 = tight-tolerance path).  Accumulation is always f32.
    """
    N, Cin, H, W = x_nchw.shape
    w1 = params["conv1_w"]            # (F, Cin, 1, 1)
    w2 = params["conv2_w"]            # (Cout, F//4, 3, 3)
    F = w1.shape[0]
    Cout = w2.shape[0]
    assert w1.shape == (F, Cin, 1, 1)
    assert w2.shape[1] * 4 == F and w2.shape[2:] == (3, 3), \
        "only kernel_size=3, groups=4, padding=0 is implemented"
    assert H >= 3 and W >= 3 and W % 8 == 0, "kernel requires W % 8 == 0"
    Ho, Wo = H - 2, W - 2

    nb = _pick_batch_tile(N, batch_tile)
    assert N % nb == 0
    grid = (N // nb,)
    # Zero pad rows after the flattened (nb*H*W, F) slab so every shifted tap
    # window (max offset 2W+2) stays in range; rounded up to a sublane multiple.
    pad_rows = -(-(2 * W + 2) // 8) * 8

    s1, b1 = _fold_bn(params["bn1_g"], params["bn1_b"],
                      params["bn1_m"], params["bn1_v"], eps)
    s2, b2 = _fold_bn(params["bn2_g"], params["bn2_b"],
                      params["bn2_m"], params["bn2_v"], eps)
    s1 = s1.reshape(1, Cin).astype(jnp.float32)
    b1 = b1.reshape(1, Cin).astype(jnp.float32)
    s2 = s2.reshape(1, F).astype(jnp.float32)
    b2 = b2.reshape(1, F).astype(jnp.float32)
    w1_mat = jnp.transpose(w1.reshape(F, Cin), (1, 0)).astype(mxu_dtype)
    w2_stk = _pack_grouped_weight_stacked(w2).astype(mxu_dtype)    # (9F, Cout)

    x_nhwc = jnp.transpose(x_nchw, (0, 2, 3, 1)).astype(jnp.float32)

    kernel = functools.partial(
        _dense_layer_decoder_kernel, Nb=nb, H=H, W=W, Cin=Cin, F=F, Cout=Cout,
        pad_rows=pad_rows, mxu_dtype=mxu_dtype)

    pass_nhwc, conv_nhwc = pl.pallas_call(
        kernel,
        out_shape=(
            jax.ShapeDtypeStruct((N, Ho, W, Cin), jnp.float32),
            jax.ShapeDtypeStruct((N, H, W, Cout), jnp.float32),
        ),
        grid_spec=pltpu.PrefetchScalarGridSpec(
            num_scalar_prefetch=0,
            grid=grid,
            in_specs=[
                pl.BlockSpec((nb, H, W, Cin), lambda n: (n, 0, 0, 0)),
                pl.BlockSpec((1, Cin), lambda n: (0, 0)),
                pl.BlockSpec((1, Cin), lambda n: (0, 0)),
                pl.BlockSpec((Cin, F), lambda n: (0, 0)),
                pl.BlockSpec((1, F), lambda n: (0, 0)),
                pl.BlockSpec((1, F), lambda n: (0, 0)),
                pl.BlockSpec((9 * F, Cout), lambda n: (0, 0)),
            ],
            out_specs=[
                pl.BlockSpec((nb, Ho, W, Cin), lambda n: (n, 0, 0, 0)),
                pl.BlockSpec((nb, H, W, Cout), lambda n: (n, 0, 0, 0)),
            ],
            scratch_shapes=[
                pltpu.VMEM((nb * H * W + pad_rows, F), jnp.float32),   # ybuf
                pltpu.VMEM((nb * H * W, 9 * F), jnp.float32),          # kbuf
            ],
        ),
        compiler_params=_CompilerParams(
            dimension_semantics=("parallel",),
            vmem_limit_bytes=32 * 1024 * 1024,
        ),
    )(x_nhwc, s1, b1, w1_mat, s2, b2, w2_stk)

    # Trim junk rows/cols, channel-concat, and NHWC->NCHW all fuse into the
    # wrapper-side copy (lane/sublane-dense stores happen inside the kernel).
    out_nhwc = jnp.concatenate(
        [pass_nhwc[:, :, 1:W - 1, :], conv_nhwc[:, :Ho, :Wo, :]], axis=-1)
    # TODO(synk): for production H/W also tile the H axis (grid axis + 2-row
    # halo) so per-step VMEM stays within v7x's 64 MiB budget.
    return jnp.transpose(out_nhwc, (0, 3, 1, 2))


def _reference_forward(x, params, *, eps=1e-5):
    """Pure-JAX (XLA) reference matching the PyTorch module in eval mode."""
    s1 = params["bn1_g"] / jnp.sqrt(params["bn1_v"] + eps)
    b1 = params["bn1_b"] - params["bn1_m"] * s1
    h = jnp.maximum(x * s1[None, :, None, None] + b1[None, :, None, None], 0.0)
    h = lax.conv_general_dilated(h, params["conv1_w"], (1, 1), "VALID",
                                 dimension_numbers=("NCHW", "OIHW", "NCHW"))
    s2 = params["bn2_g"] / jnp.sqrt(params["bn2_v"] + eps)
    b2 = params["bn2_b"] - params["bn2_m"] * s2
    h = jnp.maximum(h * s2[None, :, None, None] + b2[None, :, None, None], 0.0)
    h = lax.conv_general_dilated(h, params["conv2_w"], (1, 1), "VALID",
                                 dimension_numbers=("NCHW", "OIHW", "NCHW"),
                                 feature_group_count=4)
    x_trim = x[:, :, 1:-1, 1:-1]
    return jnp.concatenate([x_trim, h], axis=1)


if __name__ == "__main__":
    key = jax.random.PRNGKey(0)
    N, Cin, H, W = 4, 32, 16, 16
    F, Cout = 16, 8            # num_features, out_channels (divisible by 4)

    ks = jax.random.split(key, 11)
    x = jax.random.normal(ks[0], (N, Cin, H, W), dtype=jnp.float32)
    params = {
        "bn1_g": 1.0 + 0.1 * jax.random.normal(ks[1], (Cin,), jnp.float32),
        "bn1_b": 0.1 * jax.random.normal(ks[2], (Cin,), jnp.float32),
        "bn1_m": 0.1 * jax.random.normal(ks[3], (Cin,), jnp.float32),
        "bn1_v": jax.random.uniform(ks[4], (Cin,), jnp.float32, 0.5, 1.5),
        "conv1_w": jax.random.normal(ks[5], (F, Cin, 1, 1), jnp.float32)
                   / np.sqrt(Cin),
        "bn2_g": 1.0 + 0.1 * jax.random.normal(ks[6], (F,), jnp.float32),
        "bn2_b": 0.1 * jax.random.normal(ks[7], (F,), jnp.float32),
        "bn2_m": 0.1 * jax.random.normal(ks[8], (F,), jnp.float32),
        "bn2_v": jax.random.uniform(ks[9], (F,), jnp.float32, 0.5, 1.5),
        "conv2_w": jax.random.normal(ks[10], (Cout, F // 4, 3, 3), jnp.float32)
                   / np.sqrt((F // 4) * 9),
    }

    ref = jax.block_until_ready(_reference_forward(x, params))

    # f32 MXU operands: tight check against the XLA reference.
    out_f32 = jax.block_until_ready(
        dense_layer_decoder_forward(x, params, mxu_dtype=jnp.float32))
    assert out_f32.shape == (N, Cin + Cout, H - 2, W - 2), out_f32.shape
    np.testing.assert_allclose(np.asarray(out_f32), np.asarray(ref),
                               rtol=1e-3, atol=1e-3)

    # bf16 MXU operands (production fast path): bf16-rounding tolerance.
    out_bf16 = jax.block_until_ready(
        dense_layer_decoder_forward(x, params, mxu_dtype=jnp.bfloat16))
    np.testing.assert_allclose(np.asarray(out_bf16), np.asarray(ref),
                               rtol=5e-2, atol=5e-2)

    print("KERNEL_OK")
</pallas_src>

<mosaic_0001>
module attributes {stable_mosaic.version = 11 : i64} {
  func.func @_dense_layer_decoder_kernel(%arg0: i32, %arg1: memref<2x16x16x32xf32, #tpu.memory_space<vmem>>, %arg2: memref<1x32xf32, #tpu.memory_space<vmem>>, %arg3: memref<1x32xf32, #tpu.memory_space<vmem>>, %arg4: memref<32x16xf32, #tpu.memory_space<vmem>>, %arg5: memref<1x16xf32, #tpu.memory_space<vmem>>, %arg6: memref<1x16xf32, #tpu.memory_space<vmem>>, %arg7: memref<144x8xf32, #tpu.memory_space<vmem>>, %arg8: memref<2x14x16x32xf32, #tpu.memory_space<vmem>>, %arg9: memref<2x16x16x8xf32, #tpu.memory_space<vmem>>, %arg10: memref<552x16xf32, #tpu.memory_space<vmem>>, %arg11: memref<512x144xf32, #tpu.memory_space<vmem>>) attributes {dimension_semantics = [#tpu.dimension_semantics<parallel>], iteration_bounds = array<i64: 2>, scalar_prefetch = 0 : i64, scratch_operands = 2 : i64, tpu.core_type = #tpu.core_type<tc>, window_params = [{transform_indices = @transform_0, window_bounds = array<i64: 2, 16, 16, 32>}, {pipeline_mode = #tpu.pipeline_mode<synchronous>, transform_indices = @transform_1, window_bounds = array<i64: 1, 32>}, {pipeline_mode = #tpu.pipeline_mode<synchronous>, transform_indices = @transform_2, window_bounds = array<i64: 1, 32>}, {pipeline_mode = #tpu.pipeline_mode<synchronous>, transform_indices = @transform_3, window_bounds = array<i64: 32, 16>}, {pipeline_mode = #tpu.pipeline_mode<synchronous>, transform_indices = @transform_4, window_bounds = array<i64: 1, 16>}, {pipeline_mode = #tpu.pipeline_mode<synchronous>, transform_indices = @transform_5, window_bounds = array<i64: 1, 16>}, {pipeline_mode = #tpu.pipeline_mode<synchronous>, transform_indices = @transform_6, window_bounds = array<i64: 144, 8>}, {transform_indices = @transform_7, window_bounds = array<i64: 2, 14, 16, 32>}, {transform_indices = @transform_8, window_bounds = array<i64: 2, 16, 16, 8>}]} {
    %cst = arith.constant 0.000000e+00 : f32
    %0 = vector.broadcast %cst : f32 to vector<40x16xf32>
    %c512 = arith.constant 512 : index
    %c0 = arith.constant 0 : index
    %1 = vector.load %arg10[%c512, %c0] : memref<552x16xf32, #tpu.memory_space<vmem>>, vector<40x16xf32>
    tpu.vector_store %arg10[%c512, %c0], %0 {strides = array<i32>} : memref<552x16xf32, #tpu.memory_space<vmem>>, vector<40x16xf32>,
    %c0_0 = arith.constant 0 : index
    %c0_1 = arith.constant 0 : index
    %c0_2 = arith.constant 0 : index
    %c0_3 = arith.constant 0 : index
    %2 = vector.load %arg1[%c0_0, %c0_1, %c0_2, %c0_3] : memref<2x16x16x32xf32, #tpu.memory_space<vmem>>, vector<2x16x16x32xf32>
    %3 = vector.shape_cast %2 : vector<2x16x16x32xf32> to vector<512x32xf32>
    %c0_4 = arith.constant 0 : index
    %c0_5 = arith.constant 0 : index
    %4 = vector.load %arg2[%c0_4, %c0_5] : memref<1x32xf32, #tpu.memory_space<vmem>>, vector<1x32xf32>
    %5 = vector.broadcast %4 : vector<1x32xf32> to vector<512x32xf32>
    %6 = arith.mulf %3, %5 : vector<512x32xf32>
    %c0_6 = arith.constant 0 : index
    %c0_7 = arith.constant 0 : index
    %7 = vector.load %arg3[%c0_6, %c0_7] : memref<1x32xf32, #tpu.memory_space<vmem>>, vector<1x32xf32>
    %8 = vector.broadcast %7 : vector<1x32xf32> to vector<512x32xf32>
    %9 = arith.addf %6, %8 : vector<512x32xf32>
    %cst_8 = arith.constant 0.000000e+00 : f32
    %10 = vector.broadcast %cst_8 : f32 to vector<512x32xf32>
    %11 = arith.maximumf %9, %10 : vector<512x32xf32>
    %c0_9 = arith.constant 0 : index
    %c0_10 = arith.constant 0 : index
    %12 = vector.load %arg4[%c0_9, %c0_10] : memref<32x16xf32, #tpu.memory_space<vmem>>, vector<32x16xf32>
    %cst_11 = arith.constant dense<0.000000e+00> : vector<512x16xf32>
    %13 = tpu.matmul %11, %12, %cst_11 {dimension_numbers = #tpu.dot_dimension_numbers<[1], [0], [0], [1], [0, 0, 1, 1], [], []>} : vector<512x32xf32>, vector<32x16xf32>, vector<512x16xf32> -> vector<512x16xf32>
    %c0_12 = arith.constant 0 : index
    %c0_13 = arith.constant 0 : index
    %14 = vector.load %arg5[%c0_12, %c0_13] : memref<1x16xf32, #tpu.memory_space<vmem>>, vector<1x16xf32>
    %15 = vector.broadcast %14 : vector<1x16xf32> to vector<512x16xf32>
    %16 = arith.mulf %13, %15 : vector<512x16xf32>
    %c0_14 = arith.constant 0 : index
    %c0_15 = arith.constant 0 : index
    %17 = vector.load %arg6[%c0_14, %c0_15] : memref<1x16xf32, #tpu.memory_space<vmem>>, vector<1x16xf32>
    %18 = vector.broadcast %17 : vector<1x16xf32> to vector<512x16xf32>
    %19 = arith.addf %16, %18 : vector<512x16xf32>
    %cst_16 = arith.constant 0.000000e+00 : f32
    %20 = vector.broadcast %cst_16 : f32 to vector<512x16xf32>
    %21 = arith.maximumf %19, %20 : vector<512x16xf32>
    %c0_17 = arith.constant 0 : index
    %c0_18 = arith.constant 0 : index
    %22 = vector.load %arg10[%c0_17, %c0_18] : memref<552x16xf32, #tpu.memory_space<vmem>>, vector<512x16xf32>
    tpu.vector_store %arg10[%c0_17, %c0_18], %21 {strides = array<i32>} : memref<552x16xf32, #tpu.memory_space<vmem>>, vector<512x16xf32>,
    %c0_19 = arith.constant 0 : index
    %c0_20 = arith.constant 0 : index
    %23 = vector.load %arg10[%c0_19, %c0_20] : memref<552x16xf32, #tpu.memory_space<vmem>>, vector<512x16xf32>
    %c0_21 = arith.constant 0 : index
    %c0_22 = arith.constant 0 : index
    %24 = vector.load %arg11[%c0_21, %c0_22] : memref<512x144xf32, #tpu.memory_space<vmem>>, vector<512x16xf32>
    tpu.vector_store %arg11[%c0_21, %c0_22], %23 {strides = array<i32>} : memref<512x144xf32, #tpu.memory_space<vmem>>, vector<512x16xf32>,
    %c1 = arith.constant 1 : index
    %c0_23 = arith.constant 0 : index
    %25 = vector.load %arg10[%c1, %c0_23] : memref<552x16xf32, #tpu.memory_space<vmem>>, vector<512x16xf32>
    %c0_24 = arith.constant 0 : index
    %c16 = arith.constant 16 : index
    %26 = vector.load %arg11[%c0_24, %c16] : memref<512x144xf32, #tpu.memory_space<vmem>>, vector<512x16xf32>
    tpu.vector_store %arg11[%c0_24, %c16], %25 {strides = array<i32>} : memref<512x144xf32, #tpu.memory_space<vmem>>, vector<512x16xf32>,
    %c2 = arith.constant 2 : index
    %c0_25 = arith.constant 0 : index
    %27 = vector.load %arg10[%c2, %c0_25] : memref<552x16xf32, #tpu.memory_space<vmem>>, vector<512x16xf32>
    %c0_26 = arith.constant 0 : index
    %c32 = arith.constant 32 : index
    %28 = vector.load %arg11[%c0_26, %c32] : memref<512x144xf32, #tpu.memory_space<vmem>>, vector<512x16xf32>
    tpu.vector_store %arg11[%c0_26, %c32], %27 {strides = array<i32>} : memref<512x144xf32, #tpu.memory_space<vmem>>, vector<512x16xf32>,
    %c16_27 = arith.constant 16 : index
    %c0_28 = arith.constant 0 : index
    %29 = vector.load %arg10[%c16_27, %c0_28] : memref<552x16xf32, #tpu.memory_space<vmem>>, vector<512x16xf32>
    %c0_29 = arith.constant 0 : index
    %c48 = arith.constant 48 : index
    %30 = vector.load %arg11[%c0_29, %c48] : memref<512x144xf32, #tpu.memory_space<vmem>>, vector<512x16xf32>
    tpu.vector_store %arg11[%c0_29, %c48], %29 {strides = array<i32>} : memref<512x144xf32, #tpu.memory_space<vmem>>, vector<512x16xf32>,
    %c17 = arith.constant 17 : index
    %c0_30 = arith.constant 0 : index
    %31 = vector.load %arg10[%c17, %c0_30] : memref<552x16xf32, #tpu.memory_space<vmem>>, vector<512x16xf32>
    %c0_31 = arith.constant 0 : index
    %c64 = arith.constant 64 : index
    %32 = vector.load %arg11[%c0_31, %c64] : memref<512x144xf32, #tpu.memory_space<vmem>>, vector<512x16xf32>
    tpu.vector_store %arg11[%c0_31, %c64], %31 {strides = array<i32>} : memref<512x144xf32, #tpu.memory_space<vmem>>, vector<512x16xf32>,
    %c18 = arith.constant 18 : index
    %c0_32 = arith.constant 0 : index
    %33 = vector.load %arg10[%c18, %c0_32] : memref<552x16xf32, #tpu.memory_space<vmem>>, vector<512x16xf32>
    %c0_33 = arith.constant 0 : index
    %c80 = arith.constant 80 : index
    %34 = vector.load %arg11[%c0_33, %c80] : memref<512x144xf32, #tpu.memory_space<vmem>>, vector<512x16xf32>
    tpu.vector_store %arg11[%c0_33, %c80], %33 {strides = array<i32>} : memref<512x144xf32, #tpu.memory_space<vmem>>, vector<512x16xf32>,
    %c32_34 = arith.constant 32 : index
    %c0_35 = arith.constant 0 : index
    %35 = vector.load %arg10[%c32_34, %c0_35] : memref<552x16xf32, #tpu.memory_space<vmem>>, vector<512x16xf32>
    %c0_36 = arith.constant 0 : index
    %c96 = arith.constant 96 : index
    %36 = vector.load %arg11[%c0_36, %c96] : memref<512x144xf32, #tpu.memory_space<vmem>>, vector<512x16xf32>
    tpu.vector_store %arg11[%c0_36, %c96], %35 {strides = array<i32>} : memref<512x144xf32, #tpu.memory_space<vmem>>, vector<512x16xf32>,
    %c33 = arith.constant 33 : index
    %c0_37 = arith.constant 0 : index
    %37 = vector.load %arg10[%c33, %c0_37] : memref<552x16xf32, #tpu.memory_space<vmem>>, vector<512x16xf32>
    %c0_38 = arith.constant 0 : index
    %c112 = arith.constant 112 : index
    %38 = vector.load %arg11[%c0_38, %c112] : memref<512x144xf32, #tpu.memory_space<vmem>>, vector<512x16xf32>
    tpu.vector_store %arg11[%c0_38, %c112], %37 {strides = array<i32>} : memref<512x144xf32, #tpu.memory_space<vmem>>, vector<512x16xf32>,
    %c34 = arith.constant 34 : index
    %c0_39 = arith.constant 0 : index
    %39 = vector.load %arg10[%c34, %c0_39] : memref<552x16xf32, #tpu.memory_space<vmem>>, vector<512x16xf32>
    %c0_40 = arith.constant 0 : index
    %c128 = arith.constant 128 : index
    %40 = vector.load %arg11[%c0_40, %c128] : memref<512x144xf32, #tpu.memory_space<vmem>>, vector<512x16xf32>
    tpu.vector_store %arg11[%c0_40, %c128], %39 {strides = array<i32>} : memref<512x144xf32, #tpu.memory_space<vmem>>, vector<512x16xf32>,
    %c0_41 = arith.constant 0 : index
    %c0_42 = arith.constant 0 : index
    %41 = vector.load %arg11[%c0_41, %c0_42] : memref<512x144xf32, #tpu.memory_space<vmem>>, vector<512x144xf32>
    %c0_43 = arith.constant 0 : index
    %c0_44 = arith.constant 0 : index
    %42 = vector.load %arg7[%c0_43, %c0_44] : memref<144x8xf32, #tpu.memory_space<vmem>>, vector<144x8xf32>
    %cst_45 = arith.constant dense<0.000000e+00> : vector<512x8xf32>
    %43 = tpu.matmul %41, %42, %cst_45 {dimension_numbers = #tpu.dot_dimension_numbers<[1], [0], [0], [1], [0, 0, 1, 1], [], []>} : vector<512x144xf32>, vector<144x8xf32>, vector<512x8xf32> -> vector<512x8xf32>
    %44 = vector.shape_cast %43 : vector<512x8xf32> to vector<2x16x16x8xf32>
    %c0_46 = arith.constant 0 : index
    %c0_47 = arith.constant 0 : index
    %c0_48 = arith.constant 0 : index
    %c0_49 = arith.constant 0 : index
    %45 = vector.load %arg9[%c0_46, %c0_47, %c0_48, %c0_49] : memref<2x16x16x8xf32, #tpu.memory_space<vmem>>, vector<2x16x16x8xf32>
    tpu.vector_store %arg9[%c0_46, %c0_47, %c0_48, %c0_49], %44 {strides = array<i32>} : memref<2x16x16x8xf32, #tpu.memory_space<vmem>>, vector<2x16x16x8xf32>,
    %46 = vector.extract_strided_slice %2 {offsets = [0, 1, 0, 0], sizes = [2, 14, 16, 32], strides = [1, 1, 1, 1]} : vector<2x16x16x32xf32> to vector<2x14x16x32xf32>
    %c0_50 = arith.constant 0 : index
    %c0_51 = arith.constant 0 : index
    %c0_52 = arith.constant 0 : index
    %c0_53 = arith.constant 0 : index
    %47 = vector.load %arg8[%c0_50, %c0_51, %c0_52, %c0_53] : memref<2x14x16x32xf32, #tpu.memory_space<vmem>>, vector<2x14x16x32xf32>
    tpu.vector_store %arg8[%c0_50, %c0_51, %c0_52, %c0_53], %46 {strides = array<i32>} : memref<2x14x16x32xf32, #tpu.memory_space<vmem>>, vector<2x14x16x32xf32>,
    return
  }
  func.func @transform_0(%arg0: i32) -> (i32, i32, i32, i32) {
    %c0_i32 = arith.constant 0 : i32
    %c0_i32_0 = arith.constant 0 : i32
    %c0_i32_1 = arith.constant 0 : i32
    %c0_i32_2 = arith.constant 0 : i32
    return %arg0, %c0_i32, %c0_i32_0, %c0_i32_1 : i32, i32, i32, i32
  }
  func.func @transform_1(%arg0: i32) -> (i32, i32) {
    %c0_i32 = arith.constant 0 : i32
    %c0_i32_0 = arith.constant 0 : i32
    %c0_i32_1 = arith.constant 0 : i32
    return %c0_i32, %c0_i32_0 : i32, i32
  }
  func.func @transform_2(%arg0: i32) -> (i32, i32) {
    %c0_i32 = arith.constant 0 : i32
    %c0_i32_0 = arith.constant 0 : i32
    %c0_i32_1 = arith.constant 0 : i32
    return %c0_i32, %c0_i32_0 : i32, i32
  }
  func.func @transform_3(%arg0: i32) -> (i32, i32) {
    %c0_i32 = arith.constant 0 : i32
    %c0_i32_0 = arith.constant 0 : i32
    %c0_i32_1 = arith.constant 0 : i32
    return %c0_i32, %c0_i32_0 : i32, i32
  }
  func.func @transform_4(%arg0: i32) -> (i32, i32) {
    %c0_i32 = arith.constant 0 : i32
    %c0_i32_0 = arith.constant 0 : i32
    %c0_i32_1 = arith.constant 0 : i32
    return %c0_i32, %c0_i32_0 : i32, i32
  }
  func.func @transform_5(%arg0: i32) -> (i32, i32) {
    %c0_i32 = arith.constant 0 : i32
    %c0_i32_0 = arith.constant 0 : i32
    %c0_i32_1 = arith.constant 0 : i32
    return %c0_i32, %c0_i32_0 : i32, i32
  }
  func.func @transform_6(%arg0: i32) -> (i32, i32) {
    %c0_i32 = arith.constant 0 : i32
    %c0_i32_0 = arith.constant 0 : i32
    %c0_i32_1 = arith.constant 0 : i32
    return %c0_i32, %c0_i32_0 : i32, i32
  }
  func.func @transform_7(%arg0: i32) -> (i32, i32, i32, i32) {
    %c0_i32 = arith.constant 0 : i32
    %c0_i32_0 = arith.constant 0 : i32
    %c0_i32_1 = arith.constant 0 : i32
    %c0_i32_2 = arith.constant 0 : i32
    return %arg0, %c0_i32, %c0_i32_0, %c0_i32_1 : i32, i32, i32, i32
  }
  func.func @transform_8(%arg0: i32) -> (i32, i32, i32, i32) {
    %c0_i32 = arith.constant 0 : i32
    %c0_i32_0 = arith.constant 0 : i32
    %c0_i32_1 = arith.constant 0 : i32
    %c0_i32_2 = arith.constant 0 : i32
    return %arg0, %c0_i32, %c0_i32_0, %c0_i32_1 : i32, i32, i32, i32
  }
}

</mosaic_0001>

<llo_original>
// kernel: tpu_custom_call.1
$region0: #{tpu_custom_call.1}
  #allocation0 [shape = 'u32[]', space=smem, size = 0x4, offset = 0x4, fixed_abs, tag = 'smem constant byte address 0x4 - core index']
  #allocation1 [shape = 'u32[144,128]{1,0:T(1,128)}', space=vmem, size = 0x12000, scoped, tag = 'internal scratch']
  #allocation2 [shape = 'f32[552,16]{1,0:T(8,128)}', space=vmem, size = 0x45000, scoped, tag = 'scratch operand']
  #allocation3 [shape = 'f32[512,144]{1,0:T(8,128)}', space=vmem, size = 0x80000, scoped, tag = 'scratch operand']
  %s0 = inlined_call_operand.hbm [shape: f32[4,16,16,32], index: 0, kind: input, shape index: {}]
  %s1 = inlined_call_operand.vmem [shape: f32[1,32], index: 1, kind: input, shape index: {}]
  %s2 = inlined_call_operand.vmem [shape: f32[1,32], index: 2, kind: input, shape index: {}]
  %s3 = inlined_call_operand.vmem [shape: f32[32,16], index: 3, kind: input, shape index: {}]
  %s4 = inlined_call_operand.vmem [shape: f32[1,16], index: 4, kind: input, shape index: {}]
  %s5 = inlined_call_operand.vmem [shape: f32[1,16], index: 5, kind: input, shape index: {}]
  %s6 = inlined_call_operand.vmem [shape: f32[144,8], index: 6, kind: input, shape index: {}]
  %s7 = inlined_call_operand.hbm [shape: f32[4,14,16,32], index: 7, kind: output, shape index: {0}]
  %s8 = inlined_call_operand.vmem [shape: f32[4,16,16,8], index: 8, kind: output, shape index: {1}]
  %9 = xla_tuple %s7, %s8
  %s10 = sld [smem:[#allocation0]]
  $region73: #{tpu_custom_call.1} parent=0
    _
  %s12 = ssub.s32 1, %s10
  %s13 = scalar_select 0, %s12, %s10
  $region1: #{tpu_custom_call.1} parent=0
    #allocation4 [shape = 'u8[524288]{0}', space=vmem, size = 0x80000, scoped, tag = 'input window, operand 0']
    #allocation5 [shape = 's32[2]{0}', space=sflag, size = 0x8, scoped, tag = 'scoped memory for tpu_custom_call.1']
    #allocation6 [shape = 's32[2]{0}', space=sflag, size = 0x8, scoped, tag = 'scoped memory for tpu_custom_call.1']
    #allocation7 [shape = 'u8[458752]{0}', space=vmem, size = 0x70000, scoped, tag = 'output window, operand 0']
    %14 = vsyncpa [#allocation5], 0
    %s15 = scalar_lea.sflag [#allocation5], 1
    %16 = vsyncpa %s15, 0
    %17 = vsyncpa [#allocation6], 0
    %s18 = scalar_lea.sflag [#allocation6], 1
    %19 = vsyncpa %s18, 0
    loop: start=0, step=1, limit=4
    $region2: #{tpu_custom_call.1} parent=1 // loop_pre_header
      _
    $region3: #{tpu_custom_call.1} parent=1 // loop_header
      %s21 = sphi 0, %s25
      %p22 = scmp.ge.s32.totalorder %s21, 4
      %s31 = sphi 0, %s33
      %s34 = sphi 0, %s31
      %s35 = sphi 0, %s34
      %s51 = sphi 0, %s35
      %s55 = sphi 0, %s55
      %s57 = sphi 0, %s55
      %s58 = sphi 0, %s57
      %s72 = sphi 0, %s58
      %s76 = sphi 0, %s76
      %s78 = sphi 0, %s76
      %s79 = sphi 0, %s78
      %s93 = sphi 0, %s79
      %s97 = sphi 0, %s97
      %s99 = sphi 0, %s97
      %s100 = sphi 0, %s99
      %s114 = sphi 0, %s100
      %s118 = sphi 0, %s118
      %s120 = sphi 0, %s118
      %s121 = sphi 0, %s120
      %s135 = sphi 0, %s121
      %s139 = sphi 0, %s139
      %s141 = sphi 0, %s139
      %s142 = sphi 0, %s141
      %s156 = sphi 0, %s142
      %s160 = sphi 0, %s160
      %s162 = sphi 0, %s160
      %s163 = sphi 0, %s162
      %s177 = sphi 0, %s163
      %s183 = sphi 0, %s185
      %s186 = sphi 0, %s183
      %s187 = sphi 0, %s186
      %s203 = sphi 0, %s187
      %s209 = sphi 0, %s211
      %s212 = sphi 0, %s209
      %s213 = sphi 0, %s212
      %s229 = sphi 0, %s213
    $region4: #{tpu_custom_call.1} parent=1 // loop_header_branch
      %24 = sbr.rel (%p22) target = $region8
    $region5: #{tpu_custom_call.1} parent=1 // loop_body
      %s26 = ssub.s32 %s21, 1
      %s27 = ssub.s32 %s21, 2
      %s28 = sadd.s32 %s21, 1
      %s29 = ssub.s32 %s21, %s28
      %p30 = scmp.eq.s32.totalorder %s29, 0
      %s32 = sadd.s32 %s31, 1
      %s33 = scalar_select %p30, %s31, %s32
      %p36 = pneg %p30
      %p37 = scmp.eq.s32.totalorder %s21, 1
      %p38 = por %p36, %p37
      %p39 = scmp.ne.s32.totalorder %s31, %s34
      %p40 = scmp.eq.s32.totalorder %s21, 0
      %p41 = por %p39, %p40
      %p42 = scmp.ne.s32.totalorder %s31, %s34
      %p43 = scmp.eq.s32.totalorder %s26, 1
      %p44 = por %p42, %p43
      %p45 = scmp.ne.s32.totalorder %s34, %s35
      %p46 = scmp.eq.s32.totalorder %s26, 0
      %p47 = por %p45, %p46
      %p48 = scmp.ne.s32.totalorder %s34, %s35
      %p49 = scmp.eq.s32.totalorder %s27, 1
      %p50 = por %p48, %p49
      %p52 = scmp.ne.s32.totalorder %s35, %s51
      %p53 = scmp.eq.s32.totalorder %s27, 0
      %p54 = por %p52, %p53
      %s56 = sadd.s32 %s55, 1
      %p59 = scmp.eq.s32.totalorder %s21, 1
      %p60 = scmp.ne.s32.totalorder %s55, %s57
      %p61 = scmp.eq.s32.totalorder %s21, 0
      %p62 = por %p60, %p61
      %p63 = scmp.ne.s32.totalorder %s55, %s57
      %p64 = scmp.eq.s32.totalorder %s26, 1
      %p65 = por %p63, %p64
      %p66 = scmp.ne.s32.totalorder %s57, %s58
      %p67 = scmp.eq.s32.totalorder %s26, 0
      %p68 = por %p66, %p67
      %p69 = scmp.ne.s32.totalorder %s57, %s58
      %p70 = scmp.eq.s32.totalorder %s27, 1
      %p71 = por %p69, %p70
      %p73 = scmp.ne.s32.totalorder %s58, %s72
      %p74 = scmp.eq.s32.totalorder %s27, 0
      %p75 = por %p73, %p74
      %s77 = sadd.s32 %s76, 1
      %p80 = scmp.eq.s32.totalorder %s21, 1
      %p81 = scmp.ne.s32.totalorder %s76, %s78
      %p82 = scmp.eq.s32.totalorder %s21, 0
      %p83 = por %p81, %p82
      %p84 = scmp.ne.s32.totalorder %s76, %s78
      %p85 = scmp.eq.s32.totalorder %s26, 1
      %p86 = por %p84, %p85
      %p87 = scmp.ne.s32.totalorder %s78, %s79
      %p88 = scmp.eq.s32.totalorder %s26, 0
      %p89 = por %p87, %p88
      %p90 = scmp.ne.s32.totalorder %s78, %s79
      %p91 = scmp.eq.s32.totalorder %s27, 1
      %p92 = por %p90, %p91
      %p94 = scmp.ne.s32.totalorder %s79, %s93
      %p95 = scmp.eq.s32.totalorder %s27, 0
      %p96 = por %p94, %p95
      %s98 = sadd.s32 %s97, 1
      %p101 = scmp.eq.s32.totalorder %s21, 1
      %p102 = scmp.ne.s32.totalorder %s97, %s99
      %p103 = scmp.eq.s32.totalorder %s21, 0
      %p104 = por %p102, %p103
      %p105 = scmp.ne.s32.totalorder %s97, %s99
      %p106 = scmp.eq.s32.totalorder %s26, 1
      %p107 = por %p105, %p106
      %p108 = scmp.ne.s32.totalorder %s99, %s100
      %p109 = scmp.eq.s32.totalorder %s26, 0
      %p110 = por %p108, %p109
      %p111 = scmp.ne.s32.totalorder %s99, %s100
      %p112 = scmp.eq.s32.totalorder %s27, 1
      %p113 = por %p111, %p112
      %p115 = scmp.ne.s32.totalorder %s100, %s114
      %p116 = scmp.eq.s32.totalorder %s27, 0
      %p117 = por %p115, %p116
      %s119 = sadd.s32 %s118, 1
      %p122 = scmp.eq.s32.totalorder %s21, 1
      %p123 = scmp.ne.s32.totalorder %s118, %s120
      %p124 = scmp.eq.s32.totalorder %s21, 0
      %p125 = por %p123, %p124
      %p126 = scmp.ne.s32.totalorder %s118, %s120
      %p127 = scmp.eq.s32.totalorder %s26, 1
      %p128 = por %p126, %p127
      %p129 = scmp.ne.s32.totalorder %s120, %s121
      %p130 = scmp.eq.s32.totalorder %s26, 0
      %p131 = por %p129, %p130
      %p132 = scmp.ne.s32.totalorder %s120, %s121
      %p133 = scmp.eq.s32.totalorder %s27, 1
      %p134 = por %p132, %p133
      %p136 = scmp.ne.s32.totalorder %s121, %s135
      %p137 = scmp.eq.s32.totalorder %s27, 0
      %p138 = por %p136, %p137
      %s140 = sadd.s32 %s139, 1
      %p143 = scmp.eq.s32.totalorder %s21, 1
      %p144 = scmp.ne.s32.totalorder %s139, %s141
      %p145 = scmp.eq.s32.totalorder %s21, 0
      %p146 = por %p144, %p145
      %p147 = scmp.ne.s32.totalorder %s139, %s141
      %p148 = scmp.eq.s32.totalorder %s26, 1
      %p149 = por %p147, %p148
      %p150 = scmp.ne.s32.totalorder %s141, %s142
      %p151 = scmp.eq.s32.totalorder %s26, 0
      %p152 = por %p150, %p151
      %p153 = scmp.ne.s32.totalorder %s141, %s142
      %p154 = scmp.eq.s32.totalorder %s27, 1
      %p155 = por %p153, %p154
      %p157 = scmp.ne.s32.totalorder %s142, %s156
      %p158 = scmp.eq.s32.totalorder %s27, 0
      %p159 = por %p157, %p158
      %s161 = sadd.s32 %s160, 1
      %p164 = scmp.eq.s32.totalorder %s21, 1
      %p165 = scmp.ne.s32.totalorder %s160, %s162
      %p166 = scmp.eq.s32.totalorder %s21, 0
      %p167 = por %p165, %p166
      %p168 = scmp.ne.s32.totalorder %s160, %s162
      %p169 = scmp.eq.s32.totalorder %s26, 1
      %p170 = por %p168, %p169
      %p171 = scmp.ne.s32.totalorder %s162, %s163
      %p172 = scmp.eq.s32.totalorder %s26, 0
      %p173 = por %p171, %p172
      %p174 = scmp.ne.s32.totalorder %s162, %s163
      %p175 = scmp.eq.s32.totalorder %s27, 1
      %p176 = por %p174, %p175
      %p178 = scmp.ne.s32.totalorder %s163, %s177
      %p179 = scmp.eq.s32.totalorder %s27, 0
      %p180 = por %p178, %p179
      %s181 = ssub.s32 %s21, %s28
      %p182 = scmp.eq.s32.totalorder %s181, 0
      %s184 = sadd.s32 %s183, 1
      %s185 = scalar_select %p182, %s183, %s184
      %p188 = pneg %p182
      %p189 = scmp.eq.s32.totalorder %s21, 1
      %p190 = por %p188, %p189
      %p191 = scmp.ne.s32.totalorder %s183, %s186
      %p192 = scmp.eq.s32.totalorder %s21, 0
      %p193 = por %p191, %p192
      %p194 = scmp.ne.s32.totalorder %s183, %s186
      %p195 = scmp.eq.s32.totalorder %s26, 1
      %p196 = por %p194, %p195
      %p197 = scmp.ne.s32.totalorder %s186, %s187
      %p198 = scmp.eq.s32.totalorder %s26, 0
      %p199 = por %p197, %p198
      %p200 = scmp.ne.s32.totalorder %s186, %s187
      %p201 = scmp.eq.s32.totalorder %s27, 1
      %p202 = por %p200, %p201
      %p204 = scmp.ne.s32.totalorder %s187, %s203
      %p205 = scmp.eq.s32.totalorder %s27, 0
      %p206 = por %p204, %p205
      %s207 = ssub.s32 %s21, %s28
      %p208 = scmp.eq.s32.totalorder %s207, 0
      %s210 = sadd.s32 %s209, 1
      %s211 = scalar_select %p208, %s209, %s210
      %p214 = pneg %p208
      %p215 = scmp.eq.s32.totalorder %s21, 1
      %p216 = por %p214, %p215
      %p217 = scmp.ne.s32.totalorder %s209, %s212
      %p218 = scmp.eq.s32.totalorder %s21, 0
      %p219 = por %p217, %p218
      %p220 = scmp.ne.s32.totalorder %s209, %s212
      %p221 = scmp.eq.s32.totalorder %s26, 1
      %p222 = por %p220, %p221
      %p223 = scmp.ne.s32.totalorder %s212, %s213
      %p224 = scmp.eq.s32.totalorder %s26, 0
      %p225 = por %p223, %p224
      %p226 = scmp.ne.s32.totalorder %s212, %s213
      %p227 = scmp.eq.s32.totalorder %s27, 1
      %p228 = por %p226, %p227
      %p230 = scmp.ne.s32.totalorder %s213, %s229
      %p231 = scmp.eq.s32.totalorder %s27, 0
      %p232 = por %p230, %p231
      %p233 = scmp.le.s32.totalorder 1, %s21
      %p234 = scmp.lt.s32.totalorder %s21, 3
      %p235 = pnand %p233, %p234
      %p236 = pneg %p235
      // Predicated region
      $region9: #{tpu_custom_call.1} parent=5 // pred_check
        _
      $region10: #{tpu_custom_call.1} parent=5 // pred_check_branch
        %238 = sbr.rel (%p235) target = $region12
      $region11: #{tpu_custom_call.1} parent=5 // pred_region
        %s239 = ssub.s32 %s21, 1
        // Predicated region
        $region13: #{tpu_custom_call.1} parent=11 // pred_check
          %p240 = pneg %p68
        $region14: #{tpu_custom_call.1} parent=11 // pred_check_branch
          %242 = sbr.rel (%p240) target = $region16
        $region15: #{tpu_custom_call.1} parent=11 // pred_region
          _
        $region16: #{tpu_custom_call.1} parent=11 // pred_fallthru
          _
        // Predicated region
        $region17: #{tpu_custom_call.1} parent=11 // pred_check
          %p243 = pneg %p89
        $region18: #{tpu_custom_call.1} parent=11 // pred_check_branch
          %245 = sbr.rel (%p243) target = $region20
        $region19: #{tpu_custom_call.1} parent=11 // pred_region
          _
        $region20: #{tpu_custom_call.1} parent=11 // pred_fallthru
          _
        // Predicated region
        $region21: #{tpu_custom_call.1} parent=11 // pred_check
          %p246 = pneg %p110
        $region22: #{tpu_custom_call.1} parent=11 // pred_check_branch
          %248 = sbr.rel (%p246) target = $region24
        $region23: #{tpu_custom_call.1} parent=11 // pred_region
          _
        $region24: #{tpu_custom_call.1} parent=11 // pred_fallthru
          _
        // Predicated region
        $region25: #{tpu_custom_call.1} parent=11 // pred_check
          %p249 = pneg %p131
        $region26: #{tpu_custom_call.1} parent=11 // pred_check_branch
          %251 = sbr.rel (%p249) target = $region28
        $region27: #{tpu_custom_call.1} parent=11 // pred_region
          _
        $region28: #{tpu_custom_call.1} parent=11 // pred_fallthru
          _
        // Predicated region
        $region29: #{tpu_custom_call.1} parent=11 // pred_check
          %p252 = pneg %p152
        $region30: #{tpu_custom_call.1} parent=11 // pred_check_branch
          %254 = sbr.rel (%p252) target = $region32
        $region31: #{tpu_custom_call.1} parent=11 // pred_region
          _
        $region32: #{tpu_custom_call.1} parent=11 // pred_fallthru
          _
        // Predicated region
        $region33: #{tpu_custom_call.1} parent=11 // pred_check
          %p255 = pneg %p173
        $region34: #{tpu_custom_call.1} parent=11 // pred_check_branch
          %257 = sbr.rel (%p255) target = $region36
        $region35: #{tpu_custom_call.1} parent=11 // pred_region
          _
        $region36: #{tpu_custom_call.1} parent=11 // pred_fallthru
          _
      $region12: #{tpu_custom_call.1} parent=5 // pred_fallthru
        _
      %p258 = scmp.lt.s32.totalorder %s21, 2
      // Predicated region
      $region37: #{tpu_custom_call.1} parent=5 // pred_check
        %p259 = pneg %p258
      $region38: #{tpu_custom_call.1} parent=5 // pred_check_branch
        %261 = sbr.rel (%p259) target = $region40
      $region39: #{tpu_custom_call.1} parent=5 // pred_region
        // Predicated region
        $region41: #{tpu_custom_call.1} parent=39 // pred_check
          %p262 = pneg %p41
        $region42: #{tpu_custom_call.1} parent=39 // pred_check_branch
          %264 = sbr.rel (%p262) target = $region44
        $region43: #{tpu_custom_call.1} parent=39 // pred_region
          %s265 = sand.u32 %s31, 1
          %s266 = scalar_lea.sflag [#allocation5], %s265
          %s267 = sand.u32 %s31, 1
          %s268 = smul.addr %s267, 512
          %s269 = scalar_lea.vmem [#allocation4], %s268
          %s270 = smul.u32 2, %s21
          %s272 = ssub.s32 8192, 8192
          %273 = vsyncadd %s266, %s272
          %s274 = smul.addr %s270, 32
          %s275 = smul.addr %s274, 128
          %s276 = scalar_lea.hbm %s0, %s275
          %s277 = sshll.u32 %s269, 4
          %s278 = int_to_ptr.vmem [resolvable:$true] %s277
          %283 = dma.hbm_to_vmem [thread:$0]  %s276, 8192, %s278, %s266, 128, 128, 8
        $region44: #{tpu_custom_call.1} parent=39 // pred_fallthru
          _
      $region40: #{tpu_custom_call.1} parent=5 // pred_fallthru
        _
      %p284 = scmp.le.s32.totalorder 1, %s21
      %p285 = scmp.lt.s32.totalorder %s21, 3
      %p286 = pnand %p284, %p285
      %p287 = pneg %p286
      // Predicated region
      $region45: #{tpu_custom_call.1} parent=5 // pred_check
        _
      $region46: #{tpu_custom_call.1} parent=5 // pred_check_branch
        %289 = sbr.rel (%p286) target = $region48
      $region47: #{tpu_custom_call.1} parent=5 // pred_region
        %s290 = ssub.s32 %s21, 1
        %s291 = sand.u32 %s34, 1
        %s292 = scalar_lea.sflag [#allocation5], %s291
        %s293 = sand.u32 %s34, 1
        %s294 = smul.addr %s293, 512
        %s295 = scalar_lea.vmem [#allocation4], %s294
        // Predicated region
        $region49: #{tpu_custom_call.1} parent=47 // pred_check
          %p296 = pneg %p47
        $region50: #{tpu_custom_call.1} parent=47 // pred_check_branch
          %298 = sbr.rel (%p296) target = $region52
        $region51: #{tpu_custom_call.1} parent=47 // pred_region
          %299 = dma.done %s292, 8192
        $region52: #{tpu_custom_call.1} parent=47 // pred_fallthru
          _
        %s300 = sand.u32 %s34, 1
        %s301 = scalar_lea.sflag [#allocation5], %s300
        %s302 = sand.u32 %s34, 1
        %s303 = smul.addr %s302, 512
        %s304 = scalar_lea.vmem [#allocation4], %s303
        %p305 = pneg %p47
        %p306 = pneg %p44
        %p307 = pneg %p68
        %p308 = pneg %p65
        %p309 = pneg %p89
        %p310 = pneg %p86
        %p311 = pneg %p110
        %p312 = pneg %p107
        %p313 = pneg %p131
        %p314 = pneg %p128
        %p315 = pneg %p152
        %p316 = pneg %p149
        %p317 = pneg %p173
        %p318 = pneg %p170
        %p319 = pneg %p199
        %p320 = pneg %p196
        %s321 = sand.u32 %s186, 1
        %s322 = scalar_lea.sflag [#allocation6], %s321
        %s323 = sand.u32 %s186, 1
        %s324 = smul.addr %s323, 448
        %s325 = scalar_lea.vmem [#allocation7], %s324
        %p326 = pneg %p225
        %p327 = pneg %p222
        %s328 = smul.u32 2, %s26
        %p329 = scmp.lt.s32.totalorder %s328, 3
        %s330 = scalar_select %p329, %s328, 3
        %s331 = smul.addr %s330, 32
        %s332 = smul.addr %s331, 8
        %s333 = scalar_lea.vmem %s8, %s332
        %s334 = smul.u32 2, %s26
        %s335 = smul.u32 2, %s26
        %s336 = smul.u32 2, %s26
        %p337 = scmp.lt.s32.totalorder %s336, 3
        %s338 = scalar_select %p337, %s336, 3
        %s339 = smul.addr %s338, 32
        %s340 = smul.addr %s339, 8
        %s341 = scalar_lea.vmem %s8, %s340
        %s342 = smul.u32 2, %s26
        %vm343 = vcmask 130048
        %344 = vst.msk [vmem:[#allocation2 + $0x200] sm:$0xff] %vm343, 0.0
        %345 = vst.msk [vmem:[#allocation2 + $0x208] sm:$0xff] %vm343, 0.0
        %346 = vst.msk [vmem:[#allocation2 + $0x210] sm:$0xff] %vm343, 0.0
        %347 = vst.msk [vmem:[#allocation2 + $0x218] sm:$0xff] %vm343, 0.0
        %348 = vst.msk [vmem:[#allocation2 + $0x220] sm:$0xff] %vm343, 0.0
        %v349 = vld [vmem:[%s295] sm:$0xff]
        %v350 = vld [vmem:[%s295 + $0x8] sm:$0xff]
        %v351 = vld [vmem:[%s295 + $0x10] sm:$0xff]
        %v352 = vld [vmem:[%s295 + $0x18] sm:$0xff]
        %v353 = vld [vmem:[%s295 + $0x20] sm:$0xff]
        %v354 = vld [vmem:[%s295 + $0x28] sm:$0xff]
        %v355 = vld [vmem:[%s295 + $0x30] sm:$0xff]
        %v356 = vld [vmem:[%s295 + $0x38] sm:$0xff]
        %v357 = vld [vmem:[%s295 + $0x40] sm:$0xff]
        %v358 = vld [vmem:[%s295 + $0x48] sm:$0xff]
        %v359 = vld [vmem:[%s295 + $0x50] sm:$0xff]
        %v360 = vld [vmem:[%s295 + $0x58] sm:$0xff]
        %v361 = vld [vmem:[%s295 + $0x60] sm:$0xff]
        %v362 = vld [vmem:[%s295 + $0x68] sm:$0xff]
        %v363 = vld [vmem:[%s295 + $0x70] sm:$0xff]
        %v364 = vld [vmem:[%s295 + $0x78] sm:$0xff]
        %v365 = vld [vmem:[%s295 + $0x80] sm:$0xff]
        %v366 = vld [vmem:[%s295 + $0x88] sm:$0xff]
        %v367 = vld [vmem:[%s295 + $0x90] sm:$0xff]
        %v368 = vld [vmem:[%s295 + $0x98] sm:$0xff]
        %v369 = vld [vmem:[%s295 + $0xa0] sm:$0xff]
        %v370 = vld [vmem:[%s295 + $0xa8] sm:$0xff]
        %v371 = vld [vmem:[%s295 + $0xb0] sm:$0xff]
        %v372 = vld [vmem:[%s295 + $0xb8] sm:$0xff]
        %v373 = vld [vmem:[%s295 + $0xc0] sm:$0xff]
        %v374 = vld [vmem:[%s295 + $0xc8] sm:$0xff]
        %v375 = vld [vmem:[%s295 + $0xd0] sm:$0xff]
        %v376 = vld [vmem:[%s295 + $0xd8] sm:$0xff]
        %v377 = vld [vmem:[%s295 + $0xe0] sm:$0xff]
        %v378 = vld [vmem:[%s295 + $0xe8] sm:$0xff]
        %v379 = vld [vmem:[%s295 + $0xf0] sm:$0xff]
        %v380 = vld [vmem:[%s295 + $0xf8] sm:$0xff]
        %v381 = vld [vmem:[%s295 + $0x100] sm:$0xff]
        %v382 = vld [vmem:[%s295 + $0x108] sm:$0xff]
        %v383 = vld [vmem:[%s295 + $0x110] sm:$0xff]
        %v384 = vld [vmem:[%s295 + $0x118] sm:$0xff]
        %v385 = vld [vmem:[%s295 + $0x120] sm:$0xff]
        %v386 = vld [vmem:[%s295 + $0x128] sm:$0xff]
        %v387 = vld [vmem:[%s295 + $0x130] sm:$0xff]
        %v388 = vld [vmem:[%s295 + $0x138] sm:$0xff]
        %v389 = vld [vmem:[%s295 + $0x140] sm:$0xff]
        %v390 = vld [vmem:[%s295 + $0x148] sm:$0xff]
        %v391 = vld [vmem:[%s295 + $0x150] sm:$0xff]
        %v392 = vld [vmem:[%s295 + $0x158] sm:$0xff]
        %v393 = vld [vmem:[%s295 + $0x160] sm:$0xff]
        %v394 = vld [vmem:[%s295 + $0x168] sm:$0xff]
        %v395 = vld [vmem:[%s295 + $0x170] sm:$0xff]
        %v396 = vld [vmem:[%s295 + $0x178] sm:$0xff]
        %v397 = vld [vmem:[%s295 + $0x180] sm:$0xff]
        %v398 = vld [vmem:[%s295 + $0x188] sm:$0xff]
        %v399 = vld [vmem:[%s295 + $0x190] sm:$0xff]
        %v400 = vld [vmem:[%s295 + $0x198] sm:$0xff]
        %v401 = vld [vmem:[%s295 + $0x1a0] sm:$0xff]
        %v402 = vld [vmem:[%s295 + $0x1a8] sm:$0xff]
        %v403 = vld [vmem:[%s295 + $0x1b0] sm:$0xff]
        %v404 = vld [vmem:[%s295 + $0x1b8] sm:$0xff]
        %v405 = vld [vmem:[%s295 + $0x1c0] sm:$0xff]
        %v406 = vld [vmem:[%s295 + $0x1c8] sm:$0xff]
        %v407 = vld [vmem:[%s295 + $0x1d0] sm:$0xff]
        %v408 = vld [vmem:[%s295 + $0x1d8] sm:$0xff]
        %v409 = vld [vmem:[%s295 + $0x1e0] sm:$0xff]
        %v410 = vld [vmem:[%s295 + $0x1e8] sm:$0xff]
        %v411 = vld [vmem:[%s295 + $0x1f0] sm:$0xff]
        %v412 = vld [vmem:[%s295 + $0x1f8] sm:$0xff]
        %v413 = vld [vmem:[%s1] sm:$0x1]
        %v415 = vlaneseq
        %v416 = vshrl.u32 %v415, 7
        %v417 = vsub.s32 0, %v416
        %v418 = vrot.slane %v413, %v417
        %v420 = vmul.f32 %v349, %v418
        %v421 = vmul.f32 %v350, %v418
        %v422 = vmul.f32 %v351, %v418
        %v423 = vmul.f32 %v352, %v418
        %v424 = vmul.f32 %v353, %v418
        %v425 = vmul.f32 %v354, %v418
        %v426 = vmul.f32 %v355, %v418
        %v427 = vmul.f32 %v356, %v418
        %v428 = vmul.f32 %v357, %v418
        %v429 = vmul.f32 %v358, %v418
        %v430 = vmul.f32 %v359, %v418
        %v431 = vmul.f32 %v360, %v418
        %v432 = vmul.f32 %v361, %v418
        %v433 = vmul.f32 %v362, %v418
        %v434 = vmul.f32 %v363, %v418
        %v435 = vmul.f32 %v364, %v418
        %v436 = vmul.f32 %v365, %v418
        %v437 = vmul.f32 %v366, %v418
        %v438 = vmul.f32 %v367, %v418
        %v439 = vmul.f32 %v368, %v418
        %v440 = vmul.f32 %v369, %v418
        %v441 = vmul.f32 %v370, %v418
        %v442 = vmul.f32 %v371, %v418
        %v443 = vmul.f32 %v372, %v418
        %v444 = vmul.f32 %v373, %v418
        %v445 = vmul.f32 %v374, %v418
        %v446 = vmul.f32 %v375, %v418
        %v447 = vmul.f32 %v376, %v418
        %v448 = vmul.f32 %v377, %v418
        %v449 = vmul.f32 %v378, %v418
        %v450 = vmul.f32 %v379, %v418
        %v451 = vmul.f32 %v380, %v418
        %v452 = vmul.f32 %v381, %v418
        %v453 = vmul.f32 %v382, %v418
        %v454 = vmul.f32 %v383, %v418
        %v455 = vmul.f32 %v384, %v418
        %v456 = vmul.f32 %v385, %v418
        %v457 = vmul.f32 %v386, %v418
        %v458 = vmul.f32 %v387, %v418
        %v459 = vmul.f32 %v388, %v418
        %v460 = vmul.f32 %v389, %v418
        %v461 = vmul.f32 %v390, %v418
        %v462 = vmul.f32 %v391, %v418
        %v463 = vmul.f32 %v392, %v418
        %v464 = vmul.f32 %v393, %v418
        %v465 = vmul.f32 %v394, %v418
        %v466 = vmul.f32 %v395, %v418
        %v467 = vmul.f32 %v396, %v418
        %v468 = vmul.f32 %v397, %v418
        %v469 = vmul.f32 %v398, %v418
        %v470 = vmul.f32 %v399, %v418
        %v471 = vmul.f32 %v400, %v418
        %v472 = vmul.f32 %v401, %v418
        %v473 = vmul.f32 %v402, %v418
        %v474 = vmul.f32 %v403, %v418
        %v475 = vmul.f32 %v404, %v418
        %v476 = vmul.f32 %v405, %v418
        %v477 = vmul.f32 %v406, %v418
        %v478 = vmul.f32 %v407, %v418
        %v479 = vmul.f32 %v408, %v418
        %v480 = vmul.f32 %v409, %v418
        %v481 = vmul.f32 %v410, %v418
        %v482 = vmul.f32 %v411, %v418
        %v483 = vmul.f32 %v412, %v418
        %v484 = vld [vmem:[%s2] sm:$0x1]
        %v486 = vlaneseq
        %v487 = vshrl.u32 %v486, 7
        %v488 = vsub.s32 0, %v487
        %v489 = vrot.slane %v484, %v488
        %v491 = vadd.f32 %v420, %v489
        %v492 = vadd.f32 %v421, %v489
        %v493 = vadd.f32 %v422, %v489
        %v494 = vadd.f32 %v423, %v489
        %v495 = vadd.f32 %v424, %v489
        %v496 = vadd.f32 %v425, %v489
        %v497 = vadd.f32 %v426, %v489
        %v498 = vadd.f32 %v427, %v489
        %v499 = vadd.f32 %v428, %v489
        %v500 = vadd.f32 %v429, %v489
        %v501 = vadd.f32 %v430, %v489
        %v502 = vadd.f32 %v431, %v489
        %v503 = vadd.f32 %v432, %v489
        %v504 = vadd.f32 %v433, %v489
        %v505 = vadd.f32 %v434, %v489
        %v506 = vadd.f32 %v435, %v489
        %v507 = vadd.f32 %v436, %v489
        %v508 = vadd.f32 %v437, %v489
        %v509 = vadd.f32 %v438, %v489
        %v510 = vadd.f32 %v439, %v489
        %v511 = vadd.f32 %v440, %v489
        %v512 = vadd.f32 %v441, %v489
        %v513 = vadd.f32 %v442, %v489
        %v514 = vadd.f32 %v443, %v489
        %v515 = vadd.f32 %v444, %v489
        %v516 = vadd.f32 %v445, %v489
        %v517 = vadd.f32 %v446, %v489
        %v518 = vadd.f32 %v447, %v489
        %v519 = vadd.f32 %v448, %v489
        %v520 = vadd.f32 %v449, %v489
        %v521 = vadd.f32 %v450, %v489
        %v522 = vadd.f32 %v451, %v489
        %v523 = vadd.f32 %v452, %v489
        %v524 = vadd.f32 %v453, %v489
        %v525 = vadd.f32 %v454, %v489
        %v526 = vadd.f32 %v455, %v489
        %v527 = vadd.f32 %v456, %v489
        %v528 = vadd.f32 %v457, %v489
        %v529 = vadd.f32 %v458, %v489
        %v530 = vadd.f32 %v459, %v489
        %v531 = vadd.f32 %v460, %v489
        %v532 = vadd.f32 %v461, %v489
        %v533 = vadd.f32 %v462, %v489
        %v534 = vadd.f32 %v463, %v489
        %v535 = vadd.f32 %v464, %v489
        %v536 = vadd.f32 %v465, %v489
        %v537 = vadd.f32 %v466, %v489
        %v538 = vadd.f32 %v467, %v489
        %v539 = vadd.f32 %v468, %v489
        %v540 = vadd.f32 %v469, %v489
        %v541 = vadd.f32 %v470, %v489
        %v542 = vadd.f32 %v471, %v489
        %v543 = vadd.f32 %v472, %v489
        %v544 = vadd.f32 %v473, %v489
        %v545 = vadd.f32 %v474, %v489
        %v546 = vadd.f32 %v475, %v489
        %v547 = vadd.f32 %v476, %v489
        %v548 = vadd.f32 %v477, %v489
        %v549 = vadd.f32 %v478, %v489
        %v550 = vadd.f32 %v479, %v489
        %v551 = vadd.f32 %v480, %v489
        %v552 = vadd.f32 %v481, %v489
        %v553 = vadd.f32 %v482, %v489
        %v554 = vadd.f32 %v483, %v489
        %v555 = vmax.f32 %v491, 0.0
        %v556 = vmax.f32 %v492, 0.0
        %v557 = vmax.f32 %v493, 0.0
        %v558 = vmax.f32 %v494, 0.0
        %v559 = vmax.f32 %v495, 0.0
        %v560 = vmax.f32 %v496, 0.0
        %v561 = vmax.f32 %v497, 0.0
        %v562 = vmax.f32 %v498, 0.0
        %v563 = vmax.f32 %v499, 0.0
        %v564 = vmax.f32 %v500, 0.0
        %v565 = vmax.f32 %v501, 0.0
        %v566 = vmax.f32 %v502, 0.0
        %v567 = vmax.f32 %v503, 0.0
        %v568 = vmax.f32 %v504, 0.0
        %v569 = vmax.f32 %v505, 0.0
        %v570 = vmax.f32 %v506, 0.0
        %v571 = vmax.f32 %v507, 0.0
        %v572 = vmax.f32 %v508, 0.0
        %v573 = vmax.f32 %v509, 0.0
        %v574 = vmax.f32 %v510, 0.0
        %v575 = vmax.f32 %v511, 0.0
        %v576 = vmax.f32 %v512, 0.0
        %v577 = vmax.f32 %v513, 0.0
        %v578 = vmax.f32 %v514, 0.0
        %v579 = vmax.f32 %v515, 0.0
        %v580 = vmax.f32 %v516, 0.0
        %v581 = vmax.f32 %v517, 0.0
        %v582 = vmax.f32 %v518, 0.0
        %v583 = vmax.f32 %v519, 0.0
        %v584 = vmax.f32 %v520, 0.0
        %v585 = vmax.f32 %v521, 0.0
        %v586 = vmax.f32 %v522, 0.0
        %v587 = vmax.f32 %v523, 0.0
        %v588 = vmax.f32 %v524, 0.0
        %v589 = vmax.f32 %v525, 0.0
        %v590 = vmax.f32 %v526, 0.0
        %v591 = vmax.f32 %v527, 0.0
        %v592 = vmax.f32 %v528, 0.0
        %v593 = vmax.f32 %v529, 0.0
        %v594 = vmax.f32 %v530, 0.0
        %v595 = vmax.f32 %v531, 0.0
        %v596 = vmax.f32 %v532, 0.0
        %v597 = vmax.f32 %v533, 0.0
        %v598 = vmax.f32 %v534, 0.0
        %v599 = vmax.f32 %v535, 0.0
        %v600 = vmax.f32 %v536, 0.0
        %v601 = vmax.f32 %v537, 0.0
        %v602 = vmax.f32 %v538, 0.0
        %v603 = vmax.f32 %v539, 0.0
        %v604 = vmax.f32 %v540, 0.0
        %v605 = vmax.f32 %v541, 0.0
        %v606 = vmax.f32 %v542, 0.0
        %v607 = vmax.f32 %v543, 0.0
        %v608 = vmax.f32 %v544, 0.0
        %v609 = vmax.f32 %v545, 0.0
        %v610 = vmax.f32 %v546, 0.0
        %v611 = vmax.f32 %v547, 0.0
        %v612 = vmax.f32 %v548, 0.0
        %v613 = vmax.f32 %v549, 0.0
        %v614 = vmax.f32 %v550, 0.0
        %v615 = vmax.f32 %v551, 0.0
        %v616 = vmax.f32 %v552, 0.0
        %v617 = vmax.f32 %v553, 0.0
        %v618 = vmax.f32 %v554, 0.0
        %v619 = vld [vmem:[%s3] sm:$0xff]
        %v620 = vld [vmem:[%s3 + $0x8] sm:$0xff]
        %v621 = vld [vmem:[%s3 + $0x10] sm:$0xff]
        %v622 = vld [vmem:[%s3 + $0x18] sm:$0xff]
        %vm623 = vcmask 261120
        %v625 = vsel %vm623, %v555, 0
        %v628 = vsel %vm623, %v556, 0
        %v631 = vsel %vm623, %v557, 0
        %v634 = vsel %vm623, %v558, 0
        %v637 = vsel %vm623, %v559, 0
        %v640 = vsel %vm623, %v560, 0
        %v643 = vsel %vm623, %v561, 0
        %v646 = vsel %vm623, %v562, 0
        %v649 = vsel %vm623, %v563, 0
        %v652 = vsel %vm623, %v564, 0
        %v655 = vsel %vm623, %v565, 0
        %v658 = vsel %vm623, %v566, 0
        %v661 = vsel %vm623, %v567, 0
        %v664 = vsel %vm623, %v568, 0
        %v667 = vsel %vm623, %v569, 0
        %v670 = vsel %vm623, %v570, 0
        %v673 = vsel %vm623, %v571, 0
        %v676 = vsel %vm623, %v572, 0
        %v679 = vsel %vm623, %v573, 0
        %v682 = vsel %vm623, %v574, 0
        %v685 = vsel %vm623, %v575, 0
        %v688 = vsel %vm623, %v576, 0
        %v691 = vsel %vm623, %v577, 0
        %v694 = vsel %vm623, %v578, 0
        %v697 = vsel %vm623, %v579, 0
        %v700 = vsel %vm623, %v580, 0
        %v703 = vsel %vm623, %v581, 0
        %v706 = vsel %vm623, %v582, 0
        %v709 = vsel %vm623, %v583, 0
        %v712 = vsel %vm623, %v584, 0
        %v715 = vsel %vm623, %v585, 0
        %v718 = vsel %vm623, %v586, 0
        %v721 = vsel %vm623, %v587, 0
        %v724 = vsel %vm623, %v588, 0
        %v727 = vsel %vm623, %v589, 0
        %v730 = vsel %vm623, %v590, 0
        %v733 = vsel %vm623, %v591, 0
        %v736 = vsel %vm623, %v592, 0
        %v739 = vsel %vm623, %v593, 0
        %v742 = vsel %vm623, %v594, 0
        %v745 = vsel %vm623, %v595, 0
        %v748 = vsel %vm623, %v596, 0
        %v751 = vsel %vm623, %v597, 0
        %v754 = vsel %vm623, %v598, 0
        %v757 = vsel %vm623, %v599, 0
        %v760 = vsel %vm623, %v600, 0
        %v763 = vsel %vm623, %v601, 0
        %v766 = vsel %vm623, %v602, 0
        %v769 = vsel %vm623, %v603, 0
        %v772 = vsel %vm623, %v604, 0
        %v775 = vsel %vm623, %v605, 0
        %v778 = vsel %vm623, %v606, 0
        %v781 = vsel %vm623, %v607, 0
        %v784 = vsel %vm623, %v608, 0
        %v787 = vsel %vm623, %v609, 0
        %v790 = vsel %vm623, %v610, 0
        %v793 = vsel %vm623, %v611, 0
        %v796 = vsel %vm623, %v612, 0
        %v799 = vsel %vm623, %v613, 0
        %v802 = vsel %vm623, %v614, 0
        %v805 = vsel %vm623, %v615, 0
        %v808 = vsel %vm623, %v616, 0
        %v811 = vsel %vm623, %v617, 0
        %v814 = vsel %vm623, %v618, 0
        %816 = vmatprep.subr.mxu0 0.0
        %817 = vmatpush1.msra.mxu0 %v619
        %818 = vmatprep.subr.mxu0 0.0
        %819 = vmatpush1.msra.mxu0 %v620
        %820 = vmatprep.subr.mxu0 0.0
        %821 = vmatpush1.msra.mxu0 %v621
        %822 = vmatprep.subr.mxu0 0.0
        %823 = vmatpush1.msra.mxu0 %v622
        %824 = vmatprep.subr.mxu0 0.0
        %825 = vmatpush1.msra.mxu0 0.0
        %826 = vmatprep.subr.mxu0 0.0
        %827 = vmatpush1.msra.mxu0 0.0
        %828 = vmatprep.subr.mxu0 0.0
        %829 = vmatpush1.msra.mxu0 0.0
        %830 = vmatprep.subr.mxu0 0.0
        %831 = vmatpush1.msra.mxu0 0.0
        %832 = vmatprep.subr.mxu0 0.0
        %833 = vmatpush1.msra.mxu0 0.0
        %834 = vmatprep.subr.mxu0 0.0
        %835 = vmatpush1.msra.mxu0 0.0
        %836 = vmatprep.subr.mxu0 0.0
        %837 = vmatpush1.msra.mxu0 0.0
        %838 = vmatprep.subr.mxu0 0.0
        %839 = vmatpush1.msra.mxu0 0.0
        %840 = vmatprep.subr.mxu0 0.0
        %841 = vmatpush1.msra.mxu0 0.0
        %842 = vmatprep.subr.mxu0 0.0
        %843 = vmatpush1.msra.mxu0 0.0
        %844 = vmatprep.subr.mxu0 0.0
        %845 = vmatpush1.msra.mxu0 0.0
        %846 = vmatprep.subr.mxu0 0.0
        %847 = vmatpush1.msra.mxu0 0.0
        %848 = vmatprep.subr.mxu0 0.0
        %849 = vmatpush1.msra.mxu0 0.0
        %850 = vmatprep.subr.mxu0 0.0
        %851 = vmatpush1.msra.mxu0 0.0
        %852 = vmatprep.subr.mxu0 0.0
        %853 = vmatpush1.msra.mxu0 0.0
        %854 = vmatprep.subr.mxu0 0.0
        %855 = vmatpush1.msra.mxu0 0.0
        %856 = vmatprep.subr.mxu0 0.0
        %857 = vmatpush1.msra.mxu0 0.0
        %858 = vmatprep.subr.mxu0 0.0
        %859 = vmatpush1.msra.mxu0 0.0
        %860 = vmatprep.subr.mxu0 0.0
        %861 = vmatpush1.msra.mxu0 0.0
        %862 = vmatprep.subr.mxu0 0.0
        %863 = vmatpush1.msra.mxu0 0.0
        %864 = vmatprep.subr.mxu0 0.0
        %865 = vmatpush1.msra.mxu0 0.0
        %866 = vmatprep.subr.mxu0 0.0
        %867 = vmatpush1.msra.mxu0 0.0
        %868 = vmatprep.subr.mxu0 0.0
        %869 = vmatpush1.msra.mxu0 0.0
        %870 = vmatprep.subr.mxu0 0.0
        %871 = vmatpush1.msra.mxu0 0.0
        %872 = vmatprep.subr.mxu0 0.0
        %873 = vmatpush1.msra.mxu0 0.0
        %874 = vmatprep.subr.mxu0 0.0
        %875 = vmatpush1.msra.mxu0 0.0
        %876 = vmatprep.subr.mxu0 0.0
        %877 = vmatpush1.msra.mxu0 0.0
        %878 = vmatprep.subr.mxu0 0.0
        %879 = vmatpush1.msra.mxu0 0.0
        %880 = vmatprep.mubr.f32.mxu0 0.0
        %881 = vmatmul.mubr.f32.gmra.mrb[0].mxu0 %v625
        %v882 = vpop.f32.mrb[0].mxu0
        %v883 = vadd.f32 0.0, %v882
        %v884 = vpop.f32.mrb[0].mxu0
        %885 = vmatprep.mubr.f32.mxu0 0.0
        %886 = vmatmul.mubr.f32.gmra.mrb[0].mxu0 %v628
        %v887 = vpop.f32.mrb[0].mxu0
        %v888 = vadd.f32 0.0, %v887
        %v889 = vpop.f32.mrb[0].mxu0
        %890 = vmatprep.mubr.f32.mxu0 0.0
        %891 = vmatmul.mubr.f32.gmra.mrb[0].mxu0 %v631
        %v892 = vpop.f32.mrb[0].mxu0
        %v893 = vadd.f32 0.0, %v892
        %v894 = vpop.f32.mrb[0].mxu0
        %895 = vmatprep.mubr.f32.mxu0 0.0
        %896 = vmatmul.mubr.f32.gmra.mrb[0].mxu0 %v634
        %v897 = vpop.f32.mrb[0].mxu0
        %v898 = vadd.f32 0.0, %v897
        %v899 = vpop.f32.mrb[0].mxu0
        %900 = vmatprep.mubr.f32.mxu0 0.0
        %901 = vmatmul.mubr.f32.gmra.mrb[0].mxu0 %v637
        %v902 = vpop.f32.mrb[0].mxu0
        %v903 = vadd.f32 0.0, %v902
        %v904 = vpop.f32.mrb[0].mxu0
        %905 = vmatprep.mubr.f32.mxu0 0.0
        %906 = vmatmul.mubr.f32.gmra.mrb[0].mxu0 %v640
        %v907 = vpop.f32.mrb[0].mxu0
        %v908 = vadd.f32 0.0, %v907
        %v909 = vpop.f32.mrb[0].mxu0
        %910 = vmatprep.mubr.f32.mxu0 0.0
        %911 = vmatmul.mubr.f32.gmra.mrb[0].mxu0 %v643
        %v912 = vpop.f32.mrb[0].mxu0
        %v913 = vadd.f32 0.0, %v912
        %v914 = vpop.f32.mrb[0].mxu0
        %915 = vmatprep.mubr.f32.mxu0 0.0
        %916 = vmatmul.mubr.f32.gmra.mrb[0].mxu0 %v646
        %v917 = vpop.f32.mrb[0].mxu0
        %v918 = vadd.f32 0.0, %v917
        %v919 = vpop.f32.mrb[0].mxu0
        %920 = vmatprep.mubr.f32.mxu0 0.0
        %921 = vmatmul.mubr.f32.gmra.mrb[0].mxu0 %v649
        %v922 = vpop.f32.mrb[0].mxu0
        %v923 = vadd.f32 0.0, %v922
        %v924 = vpop.f32.mrb[0].mxu0
        %925 = vmatprep.mubr.f32.mxu0 0.0
        %926 = vmatmul.mubr.f32.gmra.mrb[0].mxu0 %v652
        %v927 = vpop.f32.mrb[0].mxu0
        %v928 = vadd.f32 0.0, %v927
        %v929 = vpop.f32.mrb[0].mxu0
        %930 = vmatprep.mubr.f32.mxu0 0.0
        %931 = vmatmul.mubr.f32.gmra.mrb[0].mxu0 %v655
        %v932 = vpop.f32.mrb[0].mxu0
        %v933 = vadd.f32 0.0, %v932
        %v934 = vpop.f32.mrb[0].mxu0
        %935 = vmatprep.mubr.f32.mxu0 0.0
        %936 = vmatmul.mubr.f32.gmra.mrb[0].mxu0 %v658
        %v937 = vpop.f32.mrb[0].mxu0
        %v938 = vadd.f32 0.0, %v937
        %v939 = vpop.f32.mrb[0].mxu0
        %940 = vmatprep.mubr.f32.mxu0 0.0
        %941 = vmatmul.mubr.f32.gmra.mrb[0].mxu0 %v661
        %v942 = vpop.f32.mrb[0].mxu0
        %v943 = vadd.f32 0.0, %v942
        %v944 = vpop.f32.mrb[0].mxu0
        %945 = vmatprep.mubr.f32.mxu0 0.0
        %946 = vmatmul.mubr.f32.gmra.mrb[0].mxu0 %v664
        %v947 = vpop.f32.mrb[0].mxu0
        %v948 = vadd.f32 0.0, %v947
        %v949 = vpop.f32.mrb[0].mxu0
        %950 = vmatprep.mubr.f32.mxu0 0.0
        %951 = vmatmul.mubr.f32.gmra.mrb[0].mxu0 %v667
        %v952 = vpop.f32.mrb[0].mxu0
        %v953 = vadd.f32 0.0, %v952
        %v954 = vpop.f32.mrb[0].mxu0
        %955 = vmatprep.mubr.f32.mxu0 0.0
        %956 = vmatmul.mubr.f32.gmra.mrb[0].mxu0 %v670
        %v957 = vpop.f32.mrb[0].mxu0
        %v958 = vadd.f32 0.0, %v957
        %v959 = vpop.f32.mrb[0].mxu0
        %960 = vmatprep.mubr.f32.mxu0 0.0
        %961 = vmatmul.mubr.f32.gmra.mrb[0].mxu0 %v673
        %v962 = vpop.f32.mrb[0].mxu0
        %v963 = vadd.f32 0.0, %v962
        %v964 = vpop.f32.mrb[0].mxu0
        %965 = vmatprep.mubr.f32.mxu0 0.0
        %966 = vmatmul.mubr.f32.gmra.mrb[0].mxu0 %v676
        %v967 = vpop.f32.mrb[0].mxu0
        %v968 = vadd.f32 0.0, %v967
        %v969 = vpop.f32.mrb[0].mxu0
        %970 = vmatprep.mubr.f32.mxu0 0.0
        %971 = vmatmul.mubr.f32.gmra.mrb[0].mxu0 %v679
        %v972 = vpop.f32.mrb[0].mxu0
        %v973 = vadd.f32 0.0, %v972
        %v974 = vpop.f32.mrb[0].mxu0
        %975 = vmatprep.mubr.f32.mxu0 0.0
        %976 = vmatmul.mubr.f32.gmra.mrb[0].mxu0 %v682
        %v977 = vpop.f32.mrb[0].mxu0
        %v978 = vadd.f32 0.0, %v977
        %v979 = vpop.f32.mrb[0].mxu0
        %980 = vmatprep.mubr.f32.mxu0 0.0
        %981 = vmatmul.mubr.f32.gmra.mrb[0].mxu0 %v685
        %v982 = vpop.f32.mrb[0].mxu0
        %v983 = vadd.f32 0.0, %v982
        %v984 = vpop.f32.mrb[0].mxu0
        %985 = vmatprep.mubr.f32.mxu0 0.0
        %986 = vmatmul.mubr.f32.gmra.mrb[0].mxu0 %v688
        %v987 = vpop.f32.mrb[0].mxu0
        %v988 = vadd.f32 0.0, %v987
        %v989 = vpop.f32.mrb[0].mxu0
        %990 = vmatprep.mubr.f32.mxu0 0.0
        %991 = vmatmul.mubr.f32.gmra.mrb[0].mxu0 %v691
        %v992 = vpop.f32.mrb[0].mxu0
        %v993 = vadd.f32 0.0, %v992
        %v994 = vpop.f32.mrb[0].mxu0
        %995 = vmatprep.mubr.f32.mxu0 0.0
        %996 = vmatmul.mubr.f32.gmra.mrb[0].mxu0 %v694
        %v997 = vpop.f32.mrb[0].mxu0
        %v998 = vadd.f32 0.0, %v997
        %v999 = vpop.f32.mrb[0].mxu0
        %1000 = vmatprep.mubr.f32.mxu0 0.0
        %1001 = vmatmul.mubr.f32.gmra.mrb[0].mxu0 %v697
        %v1002 = vpop.f32.mrb[0].mxu0
        %v1003 = vadd.f32 0.0, %v1002
        %v1004 = vpop.f32.mrb[0].mxu0
        %1005 = vmatprep.mubr.f32.mxu0 0.0
        %1006 = vmatmul.mubr.f32.gmra.mrb[0].mxu0 %v700
        %v1007 = vpop.f32.mrb[0].mxu0
        %v1008 = vadd.f32 0.0, %v1007
        %v1009 = vpop.f32.mrb[0].mxu0
        %1010 = vmatprep.mubr.f32.mxu0 0.0
        %1011 = vmatmul.mubr.f32.gmra.mrb[0].mxu0 %v703
        %v1012 = vpop.f32.mrb[0].mxu0
        %v1013 = vadd.f32 0.0, %v1012
        %v1014 = vpop.f32.mrb[0].mxu0
        %1015 = vmatprep.mubr.f32.mxu0 0.0
        %1016 = vmatmul.mubr.f32.gmra.mrb[0].mxu0 %v706
        %v1017 = vpop.f32.mrb[0].mxu0
        %v1018 = vadd.f32 0.0, %v1017
        %v1019 = vpop.f32.mrb[0].mxu0
        %1020 = vmatprep.mubr.f32.mxu0 0.0
        %1021 = vmatmul.mubr.f32.gmra.mrb[0].mxu0 %v709
        %v1022 = vpop.f32.mrb[0].mxu0
        %v1023 = vadd.f32 0.0, %v1022
        %v1024 = vpop.f32.mrb[0].mxu0
        %1025 = vmatprep.mubr.f32.mxu0 0.0
        %1026 = vmatmul.mubr.f32.gmra.mrb[0].mxu0 %v712
        %v1027 = vpop.f32.mrb[0].mxu0
        %v1028 = vadd.f32 0.0, %v1027
        %v1029 = vpop.f32.mrb[0].mxu0
        %1030 = vmatprep.mubr.f32.mxu0 0.0
        %1031 = vmatmul.mubr.f32.gmra.mrb[0].mxu0 %v715
        %v1032 = vpop.f32.mrb[0].mxu0
        %v1033 = vadd.f32 0.0, %v1032
        %v1034 = vpop.f32.mrb[0].mxu0
        %1035 = vmatprep.mubr.f32.mxu0 0.0
        %1036 = vmatmul.mubr.f32.gmra.mrb[0].mxu0 %v718
        %v1037 = vpop.f32.mrb[0].mxu0
        %v1038 = vadd.f32 0.0, %v1037
        %v1039 = vpop.f32.mrb[0].mxu0
        %1040 = vmatprep.mubr.f32.mxu0 0.0
        %1041 = vmatmul.mubr.f32.gmra.mrb[0].mxu0 %v721
        %v1042 = vpop.f32.mrb[0].mxu0
        %v1043 = vadd.f32 0.0, %v1042
        %v1044 = vpop.f32.mrb[0].mxu0
        %1045 = vmatprep.mubr.f32.mxu0 0.0
        %1046 = vmatmul.mubr.f32.gmra.mrb[0].mxu0 %v724
        %v1047 = vpop.f32.mrb[0].mxu0
        %v1048 = vadd.f32 0.0, %v1047
        %v1049 = vpop.f32.mrb[0].mxu0
        %1050 = vmatprep.mubr.f32.mxu0 0.0
        %1051 = vmatmul.mubr.f32.gmra.mrb[0].mxu0 %v727
        %v1052 = vpop.f32.mrb[0].mxu0
        %v1053 = vadd.f32 0.0, %v1052
        %v1054 = vpop.f32.mrb[0].mxu0
        %1055 = vmatprep.mubr.f32.mxu0 0.0
        %1056 = vmatmul.mubr.f32.gmra.mrb[0].mxu0 %v730
        %v1057 = vpop.f32.mrb[0].mxu0
        %v1058 = vadd.f32 0.0, %v1057
        %v1059 = vpop.f32.mrb[0].mxu0
        %1060 = vmatprep.mubr.f32.mxu0 0.0
        %1061 = vmatmul.mubr.f32.gmra.mrb[0].mxu0 %v733
        %v1062 = vpop.f32.mrb[0].mxu0
        %v1063 = vadd.f32 0.0, %v1062
        %v1064 = vpop.f32.mrb[0].mxu0
        %1065 = vmatprep.mubr.f32.mxu0 0.0
        %1066 = vmatmul.mubr.f32.gmra.mrb[0].mxu0 %v736
        %v1067 = vpop.f32.mrb[0].mxu0
        %v1068 = vadd.f32 0.0, %v1067
        %v1069 = vpop.f32.mrb[0].mxu0
        %1070 = vmatprep.mubr.f32.mxu0 0.0
        %1071 = vmatmul.mubr.f32.gmra.mrb[0].mxu0 %v739
        %v1072 = vpop.f32.mrb[0].mxu0
        %v1073 = vadd.f32 0.0, %v1072
        %v1074 = vpop.f32.mrb[0].mxu0
        %1075 = vmatprep.mubr.f32.mxu0 0.0
        %1076 = vmatmul.mubr.f32.gmra.mrb[0].mxu0 %v742
        %v1077 = vpop.f32.mrb[0].mxu0
        %v1078 = vadd.f32 0.0, %v1077
        %v1079 = vpop.f32.mrb[0].mxu0
        %1080 = vmatprep.mubr.f32.mxu0 0.0
        %1081 = vmatmul.mubr.f32.gmra.mrb[0].mxu0 %v745
        %v1082 = vpop.f32.mrb[0].mxu0
        %v1083 = vadd.f32 0.0, %v1082
        %v1084 = vpop.f32.mrb[0].mxu0
        %1085 = vmatprep.mubr.f32.mxu0 0.0
        %1086 = vmatmul.mubr.f32.gmra.mrb[0].mxu0 %v748
        %v1087 = vpop.f32.mrb[0].mxu0
        %v1088 = vadd.f32 0.0, %v1087
        %v1089 = vpop.f32.mrb[0].mxu0
        %1090 = vmatprep.mubr.f32.mxu0 0.0
        %1091 = vmatmul.mubr.f32.gmra.mrb[0].mxu0 %v751
        %v1092 = vpop.f32.mrb[0].mxu0
        %v1093 = vadd.f32 0.0, %v1092
        %v1094 = vpop.f32.mrb[0].mxu0
        %1095 = vmatprep.mubr.f32.mxu0 0.0
        %1096 = vmatmul.mubr.f32.gmra.mrb[0].mxu0 %v754
        %v1097 = vpop.f32.mrb[0].mxu0
        %v1098 = vadd.f32 0.0, %v1097
        %v1099 = vpop.f32.mrb[0].mxu0
        %1100 = vmatprep.mubr.f32.mxu0 0.0
        %1101 = vmatmul.mubr.f32.gmra.mrb[0].mxu0 %v757
        %v1102 = vpop.f32.mrb[0].mxu0
        %v1103 = vadd.f32 0.0, %v1102
        %v1104 = vpop.f32.mrb[0].mxu0
        %1105 = vmatprep.mubr.f32.mxu0 0.0
        %1106 = vmatmul.mubr.f32.gmra.mrb[0].mxu0 %v760
        %v1107 = vpop.f32.mrb[0].mxu0
        %v1108 = vadd.f32 0.0, %v1107
        %v1109 = vpop.f32.mrb[0].mxu0
        %1110 = vmatprep.mubr.f32.mxu0 0.0
        %1111 = vmatmul.mubr.f32.gmra.mrb[0].mxu0 %v763
        %v1112 = vpop.f32.mrb[0].mxu0
        %v1113 = vadd.f32 0.0, %v1112
        %v1114 = vpop.f32.mrb[0].mxu0
        %1115 = vmatprep.mubr.f32.mxu0 0.0
        %1116 = vmatmul.mubr.f32.gmra.mrb[0].mxu0 %v766
        %v1117 = vpop.f32.mrb[0].mxu0
        %v1118 = vadd.f32 0.0, %v1117
        %v1119 = vpop.f32.mrb[0].mxu0
        %1120 = vmatprep.mubr.f32.mxu0 0.0
        %1121 = vmatmul.mubr.f32.gmra.mrb[0].mxu0 %v769
        %v1122 = vpop.f32.mrb[0].mxu0
        %v1123 = vadd.f32 0.0, %v1122
        %v1124 = vpop.f32.mrb[0].mxu0
        %1125 = vmatprep.mubr.f32.mxu0 0.0
        %1126 = vmatmul.mubr.f32.gmra.mrb[0].mxu0 %v772
        %v1127 = vpop.f32.mrb[0].mxu0
        %v1128 = vadd.f32 0.0, %v1127
        %v1129 = vpop.f32.mrb[0].mxu0
        %1130 = vmatprep.mubr.f32.mxu0 0.0
        %1131 = vmatmul.mubr.f32.gmra.mrb[0].mxu0 %v775
        %v1132 = vpop.f32.mrb[0].mxu0
        %v1133 = vadd.f32 0.0, %v1132
        %v1134 = vpop.f32.mrb[0].mxu0
        %1135 = vmatprep.mubr.f32.mxu0 0.0
        %1136 = vmatmul.mubr.f32.gmra.mrb[0].mxu0 %v778
        %v1137 = vpop.f32.mrb[0].mxu0
        %v1138 = vadd.f32 0.0, %v1137
        %v1139 = vpop.f32.mrb[0].mxu0
        %1140 = vmatprep.mubr.f32.mxu0 0.0
        %1141 = vmatmul.mubr.f32.gmra.mrb[0].mxu0 %v781
        %v1142 = vpop.f32.mrb[0].mxu0
        %v1143 = vadd.f32 0.0, %v1142
        %v1144 = vpop.f32.mrb[0].mxu0
        %1145 = vmatprep.mubr.f32.mxu0 0.0
        %1146 = vmatmul.mubr.f32.gmra.mrb[0].mxu0 %v784
        %v1147 = vpop.f32.mrb[0].mxu0
        %v1148 = vadd.f32 0.0, %v1147
        %v1149 = vpop.f32.mrb[0].mxu0
        %1150 = vmatprep.mubr.f32.mxu0 0.0
        %1151 = vmatmul.mubr.f32.gmra.mrb[0].mxu0 %v787
        %v1152 = vpop.f32.mrb[0].mxu0
        %v1153 = vadd.f32 0.0, %v1152
        %v1154 = vpop.f32.mrb[0].mxu0
        %1155 = vmatprep.mubr.f32.mxu0 0.0
        %1156 = vmatmul.mubr.f32.gmra.mrb[0].mxu0 %v790
        %v1157 = vpop.f32.mrb[0].mxu0
        %v1158 = vadd.f32 0.0, %v1157
        %v1159 = vpop.f32.mrb[0].mxu0
        %1160 = vmatprep.mubr.f32.mxu0 0.0
        %1161 = vmatmul.mubr.f32.gmra.mrb[0].mxu0 %v793
        %v1162 = vpop.f32.mrb[0].mxu0
        %v1163 = vadd.f32 0.0, %v1162
        %v1164 = vpop.f32.mrb[0].mxu0
        %1165 = vmatprep.mubr.f32.mxu0 0.0
        %1166 = vmatmul.mubr.f32.gmra.mrb[0].mxu0 %v796
        %v1167 = vpop.f32.mrb[0].mxu0
        %v1168 = vadd.f32 0.0, %v1167
        %v1169 = vpop.f32.mrb[0].mxu0
        %1170 = vmatprep.mubr.f32.mxu0 0.0
        %1171 = vmatmul.mubr.f32.gmra.mrb[0].mxu0 %v799
        %v1172 = vpop.f32.mrb[0].mxu0
        %v1173 = vadd.f32 0.0, %v1172
        %v1174 = vpop.f32.mrb[0].mxu0
        %1175 = vmatprep.mubr.f32.mxu0 0.0
        %1176 = vmatmul.mubr.f32.gmra.mrb[0].mxu0 %v802
        %v1177 = vpop.f32.mrb[0].mxu0
        %v1178 = vadd.f32 0.0, %v1177
        %v1179 = vpop.f32.mrb[0].mxu0
        %1180 = vmatprep.mubr.f32.mxu0 0.0
        %1181 = vmatmul.mubr.f32.gmra.mrb[0].mxu0 %v805
        %v1182 = vpop.f32.mrb[0].mxu0
        %v1183 = vadd.f32 0.0, %v1182
        %v1184 = vpop.f32.mrb[0].mxu0
        %1185 = vmatprep.mubr.f32.mxu0 0.0
        %1186 = vmatmul.mubr.f32.gmra.mrb[0].mxu0 %v808
        %v1187 = vpop.f32.mrb[0].mxu0
        %v1188 = vadd.f32 0.0, %v1187
        %v1189 = vpop.f32.mrb[0].mxu0
        %1190 = vmatprep.mubr.f32.mxu0 0.0
        %1191 = vmatmul.mubr.f32.gmra.mrb[0].mxu0 %v811
        %v1192 = vpop.f32.mrb[0].mxu0
        %v1193 = vadd.f32 0.0, %v1192
        %v1194 = vpop.f32.mrb[0].mxu0
        %1195 = vmatprep.mubr.f32.mxu0 0.0
        %1196 = vmatmul.mubr.f32.gmra.mrb[0].mxu0 %v814
        %v1197 = vpop.f32.mrb[0].mxu0
        %v1198 = vadd.f32 0.0, %v1197
        %v1199 = vpop.f32.mrb[0].mxu0
        %1200 = vdwg.mxu0
        %v1201 = vld [vmem:[%s4] sm:$0x1]
        %v1203 = vlaneseq
        %v1204 = vshrl.u32 %v1203, 7
        %v1205 = vsub.s32 0, %v1204
        %v1206 = vrot.slane %v1201, %v1205
        %v1208 = vmul.f32 %v883, %v1206
        %v1209 = vmul.f32 %v888, %v1206
        %v1210 = vmul.f32 %v893, %v1206
        %v1211 = vmul.f32 %v898, %v1206
        %v1212 = vmul.f32 %v903, %v1206
        %v1213 = vmul.f32 %v908, %v1206
        %v1214 = vmul.f32 %v913, %v1206
        %v1215 = vmul.f32 %v918, %v1206
        %v1216 = vmul.f32 %v923, %v1206
        %v1217 = vmul.f32 %v928, %v1206
        %v1218 = vmul.f32 %v933, %v1206
        %v1219 = vmul.f32 %v938, %v1206
        %v1220 = vmul.f32 %v943, %v1206
        %v1221 = vmul.f32 %v948, %v1206
        %v1222 = vmul.f32 %v953, %v1206
        %v1223 = vmul.f32 %v958, %v1206
        %v1224 = vmul.f32 %v963, %v1206
        %v1225 = vmul.f32 %v968, %v1206
        %v1226 = vmul.f32 %v973, %v1206
        %v1227 = vmul.f32 %v978, %v1206
        %v1228 = vmul.f32 %v983, %v1206
        %v1229 = vmul.f32 %v988, %v1206
        %v1230 = vmul.f32 %v993, %v1206
        %v1231 = vmul.f32 %v998, %v1206
        %v1232 = vmul.f32 %v1003, %v1206
        %v1233 = vmul.f32 %v1008, %v1206
        %v1234 = vmul.f32 %v1013, %v1206
        %v1235 = vmul.f32 %v1018, %v1206
        %v1236 = vmul.f32 %v1023, %v1206
        %v1237 = vmul.f32 %v1028, %v1206
        %v1238 = vmul.f32 %v1033, %v1206
        %v1239 = vmul.f32 %v1038, %v1206
        %v1240 = vmul.f32 %v1043, %v1206
        %v1241 = vmul.f32 %v1048, %v1206
        %v1242 = vmul.f32 %v1053, %v1206
        %v1243 = vmul.f32 %v1058, %v1206
        %v1244 = vmul.f32 %v1063, %v1206
        %v1245 = vmul.f32 %v1068, %v1206
        %v1246 = vmul.f32 %v1073, %v1206
        %v1247 = vmul.f32 %v1078, %v1206
        %v1248 = vmul.f32 %v1083, %v1206
        %v1249 = vmul.f32 %v1088, %v1206
        %v1250 = vmul.f32 %v1093, %v1206
        %v1251 = vmul.f32 %v1098, %v1206
        %v1252 = vmul.f32 %v1103, %v1206
        %v1253 = vmul.f32 %v1108, %v1206
        %v1254 = vmul.f32 %v1113, %v1206
        %v1255 = vmul.f32 %v1118, %v1206
        %v1256 = vmul.f32 %v1123, %v1206
        %v1257 = vmul.f32 %v1128, %v1206
        %v1258 = vmul.f32 %v1133, %v1206
        %v1259 = vmul.f32 %v1138, %v1206
        %v1260 = vmul.f32 %v1143, %v1206
        %v1261 = vmul.f32 %v1148, %v1206
        %v1262 = vmul.f32 %v1153, %v1206
        %v1263 = vmul.f32 %v1158, %v1206
        %v1264 = vmul.f32 %v1163, %v1206
        %v1265 = vmul.f32 %v1168, %v1206
        %v1266 = vmul.f32 %v1173, %v1206
        %v1267 = vmul.f32 %v1178, %v1206
        %v1268 = vmul.f32 %v1183, %v1206
        %v1269 = vmul.f32 %v1188, %v1206
        %v1270 = vmul.f32 %v1193, %v1206
        %v1271 = vmul.f32 %v1198, %v1206
        %v1272 = vld [vmem:[%s5] sm:$0x1]
        %v1274 = vlaneseq
        %v1275 = vshrl.u32 %v1274, 7
        %v1276 = vsub.s32 0, %v1275
        %v1277 = vrot.slane %v1272, %v1276
        %v1279 = vadd.f32 %v1208, %v1277
        %v1280 = vadd.f32 %v1209, %v1277
        %v1281 = vadd.f32 %v1210, %v1277
        %v1282 = vadd.f32 %v1211, %v1277
        %v1283 = vadd.f32 %v1212, %v1277
        %v1284 = vadd.f32 %v1213, %v1277
        %v1285 = vadd.f32 %v1214, %v1277
        %v1286 = vadd.f32 %v1215, %v1277
        %v1287 = vadd.f32 %v1216, %v1277
        %v1288 = vadd.f32 %v1217, %v1277
        %v1289 = vadd.f32 %v1218, %v1277
        %v1290 = vadd.f32 %v1219, %v1277
        %v1291 = vadd.f32 %v1220, %v1277
        %v1292 = vadd.f32 %v1221, %v1277
        %v1293 = vadd.f32 %v1222, %v1277
        %v1294 = vadd.f32 %v1223, %v1277
        %v1295 = vadd.f32 %v1224, %v1277
        %v1296 = vadd.f32 %v1225, %v1277
        %v1297 = vadd.f32 %v1226, %v1277
        %v1298 = vadd.f32 %v1227, %v1277
        %v1299 = vadd.f32 %v1228, %v1277
        %v1300 = vadd.f32 %v1229, %v1277
        %v1301 = vadd.f32 %v1230, %v1277
        %v1302 = vadd.f32 %v1231, %v1277
        %v1303 = vadd.f32 %v1232, %v1277
        %v1304 = vadd.f32 %v1233, %v1277
        %v1305 = vadd.f32 %v1234, %v1277
        %v1306 = vadd.f32 %v1235, %v1277
        %v1307 = vadd.f32 %v1236, %v1277
        %v1308 = vadd.f32 %v1237, %v1277
        %v1309 = vadd.f32 %v1238, %v1277
        %v1310 = vadd.f32 %v1239, %v1277
        %v1311 = vadd.f32 %v1240, %v1277
        %v1312 = vadd.f32 %v1241, %v1277
        %v1313 = vadd.f32 %v1242, %v1277
        %v1314 = vadd.f32 %v1243, %v1277
        %v1315 = vadd.f32 %v1244, %v1277
        %v1316 = vadd.f32 %v1245, %v1277
        %v1317 = vadd.f32 %v1246, %v1277
        %v1318 = vadd.f32 %v1247, %v1277
        %v1319 = vadd.f32 %v1248, %v1277
        %v1320 = vadd.f32 %v1249, %v1277
        %v1321 = vadd.f32 %v1250, %v1277
        %v1322 = vadd.f32 %v1251, %v1277
        %v1323 = vadd.f32 %v1252, %v1277
        %v1324 = vadd.f32 %v1253, %v1277
        %v1325 = vadd.f32 %v1254, %v1277
        %v1326 = vadd.f32 %v1255, %v1277
        %v1327 = vadd.f32 %v1256, %v1277
        %v1328 = vadd.f32 %v1257, %v1277
        %v1329 = vadd.f32 %v1258, %v1277
        %v1330 = vadd.f32 %v1259, %v1277
        %v1331 = vadd.f32 %v1260, %v1277
        %v1332 = vadd.f32 %v1261, %v1277
        %v1333 = vadd.f32 %v1262, %v1277
        %v1334 = vadd.f32 %v1263, %v1277
        %v1335 = vadd.f32 %v1264, %v1277
        %v1336 = vadd.f32 %v1265, %v1277
        %v1337 = vadd.f32 %v1266, %v1277
        %v1338 = vadd.f32 %v1267, %v1277
        %v1339 = vadd.f32 %v1268, %v1277
        %v1340 = vadd.f32 %v1269, %v1277
        %v1341 = vadd.f32 %v1270, %v1277
        %v1342 = vadd.f32 %v1271, %v1277
        %v1343 = vmax.f32 %v1279, 0.0
        %v1344 = vmax.f32 %v1280, 0.0
        %v1345 = vmax.f32 %v1281, 0.0
        %v1346 = vmax.f32 %v1282, 0.0
        %v1347 = vmax.f32 %v1283, 0.0
        %v1348 = vmax.f32 %v1284, 0.0
        %v1349 = vmax.f32 %v1285, 0.0
        %v1350 = vmax.f32 %v1286, 0.0
        %v1351 = vmax.f32 %v1287, 0.0
        %v1352 = vmax.f32 %v1288, 0.0
        %v1353 = vmax.f32 %v1289, 0.0
        %v1354 = vmax.f32 %v1290, 0.0
        %v1355 = vmax.f32 %v1291, 0.0
        %v1356 = vmax.f32 %v1292, 0.0
        %v1357 = vmax.f32 %v1293, 0.0
        %v1358 = vmax.f32 %v1294, 0.0
        %v1359 = vmax.f32 %v1295, 0.0
        %v1360 = vmax.f32 %v1296, 0.0
        %v1361 = vmax.f32 %v1297, 0.0
        %v1362 = vmax.f32 %v1298, 0.0
        %v1363 = vmax.f32 %v1299, 0.0
        %v1364 = vmax.f32 %v1300, 0.0
        %v1365 = vmax.f32 %v1301, 0.0
        %v1366 = vmax.f32 %v1302, 0.0
        %v1367 = vmax.f32 %v1303, 0.0
        %v1368 = vmax.f32 %v1304, 0.0
        %v1369 = vmax.f32 %v1305, 0.0
        %v1370 = vmax.f32 %v1306, 0.0
        %v1371 = vmax.f32 %v1307, 0.0
        %v1372 = vmax.f32 %v1308, 0.0
        %v1373 = vmax.f32 %v1309, 0.0
        %v1374 = vmax.f32 %v1310, 0.0
        %v1375 = vmax.f32 %v1311, 0.0
        %v1376 = vmax.f32 %v1312, 0.0
        %v1377 = vmax.f32 %v1313, 0.0
        %v1378 = vmax.f32 %v1314, 0.0
        %v1379 = vmax.f32 %v1315, 0.0
        %v1380 = vmax.f32 %v1316, 0.0
        %v1381 = vmax.f32 %v1317, 0.0
        %v1382 = vmax.f32 %v1318, 0.0
        %v1383 = vmax.f32 %v1319, 0.0
        %v1384 = vmax.f32 %v1320, 0.0
        %v1385 = vmax.f32 %v1321, 0.0
        %v1386 = vmax.f32 %v1322, 0.0
        %v1387 = vmax.f32 %v1323, 0.0
        %v1388 = vmax.f32 %v1324, 0.0
        %v1389 = vmax.f32 %v1325, 0.0
        %v1390 = vmax.f32 %v1326, 0.0
        %v1391 = vmax.f32 %v1327, 0.0
        %v1392 = vmax.f32 %v1328, 0.0
        %v1393 = vmax.f32 %v1329, 0.0
        %v1394 = vmax.f32 %v1330, 0.0
        %v1395 = vmax.f32 %v1331, 0.0
        %v1396 = vmax.f32 %v1332, 0.0
        %v1397 = vmax.f32 %v1333, 0.0
        %v1398 = vmax.f32 %v1334, 0.0
        %v1399 = vmax.f32 %v1335, 0.0
        %v1400 = vmax.f32 %v1336, 0.0
        %v1401 = vmax.f32 %v1337, 0.0
        %v1402 = vmax.f32 %v1338, 0.0
        %v1403 = vmax.f32 %v1339, 0.0
        %v1404 = vmax.f32 %v1340, 0.0
        %v1405 = vmax.f32 %v1341, 0.0
        %v1406 = vmax.f32 %v1342, 0.0
        %1407 = vst.msk [vmem:[#allocation2] sm:$0xff] %vm343, %v1343
        %1408 = vst.msk [vmem:[#allocation2 + $0x8] sm:$0xff] %vm343, %v1344
        %1409 = vst.msk [vmem:[#allocation2 + $0x10] sm:$0xff] %vm343, %v1345
        %1410 = vst.msk [vmem:[#allocation2 + $0x18] sm:$0xff] %vm343, %v1346
        %1411 = vst.msk [vmem:[#allocation2 + $0x20] sm:$0xff] %vm343, %v1347
        %1412 = vst.msk [vmem:[#allocation2 + $0x28] sm:$0xff] %vm343, %v1348
        %1413 = vst.msk [vmem:[#allocation2 + $0x30] sm:$0xff] %vm343, %v1349
        %1414 = vst.msk [vmem:[#allocation2 + $0x38] sm:$0xff] %vm343, %v1350
        %1415 = vst.msk [vmem:[#allocation2 + $0x40] sm:$0xff] %vm343, %v1351
        %1416 = vst.msk [vmem:[#allocation2 + $0x48] sm:$0xff] %vm343, %v1352
        %1417 = vst.msk [vmem:[#allocation2 + $0x50] sm:$0xff] %vm343, %v1353
        %1418 = vst.msk [vmem:[#allocation2 + $0x58] sm:$0xff] %vm343, %v1354
        %1419 = vst.msk [vmem:[#allocation2 + $0x60] sm:$0xff] %vm343, %v1355
        %1420 = vst.msk [vmem:[#allocation2 + $0x68] sm:$0xff] %vm343, %v1356
        %1421 = vst.msk [vmem:[#allocation2 + $0x70] sm:$0xff] %vm343, %v1357
        %1422 = vst.msk [vmem:[#allocation2 + $0x78] sm:$0xff] %vm343, %v1358
        %1423 = vst.msk [vmem:[#allocation2 + $0x80] sm:$0xff] %vm343, %v1359
        %1424 = vst.msk [vmem:[#allocation2 + $0x88] sm:$0xff] %vm343, %v1360
        %1425 = vst.msk [vmem:[#allocation2 + $0x90] sm:$0xff] %vm343, %v1361
        %1426 = vst.msk [vmem:[#allocation2 + $0x98] sm:$0xff] %vm343, %v1362
        %1427 = vst.msk [vmem:[#allocation2 + $0xa0] sm:$0xff] %vm343, %v1363
        %1428 = vst.msk [vmem:[#allocation2 + $0xa8] sm:$0xff] %vm343, %v1364
        %1429 = vst.msk [vmem:[#allocation2 + $0xb0] sm:$0xff] %vm343, %v1365
        %1430 = vst.msk [vmem:[#allocation2 + $0xb8] sm:$0xff] %vm343, %v1366
        %1431 = vst.msk [vmem:[#allocation2 + $0xc0] sm:$0xff] %vm343, %v1367
        %1432 = vst.msk [vmem:[#allocation2 + $0xc8] sm:$0xff] %vm343, %v1368
        %1433 = vst.msk [vmem:[#allocation2 + $0xd0] sm:$0xff] %vm343, %v1369
        %1434 = vst.msk [vmem:[#allocation2 + $0xd8] sm:$0xff] %vm343, %v1370
        %1435 = vst.msk [vmem:[#allocation2 + $0xe0] sm:$0xff] %vm343, %v1371
        %1436 = vst.msk [vmem:[#allocation2 + $0xe8] sm:$0xff] %vm343, %v1372
        %1437 = vst.msk [vmem:[#allocation2 + $0xf0] sm:$0xff] %vm343, %v1373
        %1438 = vst.msk [vmem:[#allocation2 + $0xf8] sm:$0xff] %vm343, %v1374
        %1439 = vst.msk [vmem:[#allocation2 + $0x100] sm:$0xff] %vm343, %v1375
        %1440 = vst.msk [vmem:[#allocation2 + $0x108] sm:$0xff] %vm343, %v1376
        %1441 = vst.msk [vmem:[#allocation2 + $0x110] sm:$0xff] %vm343, %v1377
        %1442 = vst.msk [vmem:[#allocation2 + $0x118] sm:$0xff] %vm343, %v1378
        %1443 = vst.msk [vmem:[#allocation2 + $0x120] sm:$0xff] %vm343, %v1379
        %1444 = vst.msk [vmem:[#allocation2 + $0x128] sm:$0xff] %vm343, %v1380
        %1445 = vst.msk [vmem:[#allocation2 + $0x130] sm:$0xff] %vm343, %v1381
        %1446 = vst.msk [vmem:[#allocation2 + $0x138] sm:$0xff] %vm343, %v1382
        %1447 = vst.msk [vmem:[#allocation2 + $0x140] sm:$0xff] %vm343, %v1383
        %1448 = vst.msk [vmem:[#allocation2 + $0x148] sm:$0xff] %vm343, %v1384
        %1449 = vst.msk [vmem:[#allocation2 + $0x150] sm:$0xff] %vm343, %v1385
        %1450 = vst.msk [vmem:[#allocation2 + $0x158] sm:$0xff] %vm343, %v1386
        %1451 = vst.msk [vmem:[#allocation2 + $0x160] sm:$0xff] %vm343, %v1387
        %1452 = vst.msk [vmem:[#allocation2 + $0x168] sm:$0xff] %vm343, %v1388
        %1453 = vst.msk [vmem:[#allocation2 + $0x170] sm:$0xff] %vm343, %v1389
        %1454 = vst.msk [vmem:[#allocation2 + $0x178] sm:$0xff] %vm343, %v1390
        %1455 = vst.msk [vmem:[#allocation2 + $0x180] sm:$0xff] %vm343, %v1391
        %1456 = vst.msk [vmem:[#allocation2 + $0x188] sm:$0xff] %vm343, %v1392
        %1457 = vst.msk [vmem:[#allocation2 + $0x190] sm:$0xff] %vm343, %v1393
        %1458 = vst.msk [vmem:[#allocation2 + $0x198] sm:$0xff] %vm343, %v1394
        %1459 = vst.msk [vmem:[#allocation2 + $0x1a0] sm:$0xff] %vm343, %v1395
        %1460 = vst.msk [vmem:[#allocation2 + $0x1a8] sm:$0xff] %vm343, %v1396
        %1461 = vst.msk [vmem:[#allocation2 + $0x1b0] sm:$0xff] %vm343, %v1397
        %1462 = vst.msk [vmem:[#allocation2 + $0x1b8] sm:$0xff] %vm343, %v1398
        %1463 = vst.msk [vmem:[#allocation2 + $0x1c0] sm:$0xff] %vm343, %v1399
        %1464 = vst.msk [vmem:[#allocation2 + $0x1c8] sm:$0xff] %vm343, %v1400
        %1465 = vst.msk [vmem:[#allocation2 + $0x1d0] sm:$0xff] %vm343, %v1401
        %1466 = vst.msk [vmem:[#allocation2 + $0x1d8] sm:$0xff] %vm343, %v1402
        %1467 = vst.msk [vmem:[#allocation2 + $0x1e0] sm:$0xff] %vm343, %v1403
        %1468 = vst.msk [vmem:[#allocation2 + $0x1e8] sm:$0xff] %vm343, %v1404
        %1469 = vst.msk [vmem:[#allocation2 + $0x1f0] sm:$0xff] %vm343, %v1405
        %1470 = vst.msk [vmem:[#allocation2 + $0x1f8] sm:$0xff] %vm343, %v1406
        %v1471 = vld [vmem:[#allocation2] sm:$0xff]
        %v1472 = vld [vmem:[#allocation2 + $0x8] sm:$0xff]
        %v1473 = vld [vmem:[#allocation2 + $0x10] sm:$0xff]
        %v1474 = vld [vmem:[#allocation2 + $0x18] sm:$0xff]
        %v1475 = vld [vmem:[#allocation2 + $0x20] sm:$0xff]
        %v1476 = vld [vmem:[#allocation2 + $0x28] sm:$0xff]
        %v1477 = vld [vmem:[#allocation2 + $0x30] sm:$0xff]
        %v1478 = vld [vmem:[#allocation2 + $0x38] sm:$0xff]
        %v1479 = vld [vmem:[#allocation2 + $0x40] sm:$0xff]
        %v1480 = vld [vmem:[#allocation2 + $0x48] sm:$0xff]
        %v1481 = vld [vmem:[#allocation2 + $0x50] sm:$0xff]
        %v1482 = vld [vmem:[#allocation2 + $0x58] sm:$0xff]
        %v1483 = vld [vmem:[#allocation2 + $0x60] sm:$0xff]
        %v1484 = vld [vmem:[#allocation2 + $0x68] sm:$0xff]
        %v1485 = vld [vmem:[#allocation2 + $0x70] sm:$0xff]
        %v1486 = vld [vmem:[#allocation2 + $0x78] sm:$0xff]
        %v1487 = vld [vmem:[#allocation2 + $0x80] sm:$0xff]
        %v1488 = vld [vmem:[#allocation2 + $0x88] sm:$0xff]
        %v1489 = vld [vmem:[#allocation2 + $0x90] sm:$0xff]
        %v1490 = vld [vmem:[#allocation2 + $0x98] sm:$0xff]
        %v1491 = vld [vmem:[#allocation2 + $0xa0] sm:$0xff]
        %v1492 = vld [vmem:[#allocation2 + $0xa8] sm:$0xff]
        %v1493 = vld [vmem:[#allocation2 + $0xb0] sm:$0xff]
        %v1494 = vld [vmem:[#allocation2 + $0xb8] sm:$0xff]
        %v1495 = vld [vmem:[#allocation2 + $0xc0] sm:$0xff]
        %v1496 = vld [vmem:[#allocation2 + $0xc8] sm:$0xff]
        %v1497 = vld [vmem:[#allocation2 + $0xd0] sm:$0xff]
        %v1498 = vld [vmem:[#allocation2 + $0xd8] sm:$0xff]
        %v1499 = vld [vmem:[#allocation2 + $0xe0] sm:$0xff]
        %v1500 = vld [vmem:[#allocation2 + $0xe8] sm:$0xff]
        %v1501 = vld [vmem:[#allocation2 + $0xf0] sm:$0xff]
        %v1502 = vld [vmem:[#allocation2 + $0xf8] sm:$0xff]
        %v1503 = vld [vmem:[#allocation2 + $0x100] sm:$0xff]
        %v1504 = vld [vmem:[#allocation2 + $0x108] sm:$0xff]
        %v1505 = vld [vmem:[#allocation2 + $0x110] sm:$0xff]
        %v1506 = vld [vmem:[#allocation2 + $0x118] sm:$0xff]
        %v1507 = vld [vmem:[#allocation2 + $0x120] sm:$0xff]
        %v1508 = vld [vmem:[#allocation2 + $0x128] sm:$0xff]
        %v1509 = vld [vmem:[#allocation2 + $0x130] sm:$0xff]
        %v1510 = vld [vmem:[#allocation2 + $0x138] sm:$0xff]
        %v1511 = vld [vmem:[#allocation2 + $0x140] sm:$0xff]
        %v1512 = vld [vmem:[#allocation2 + $0x148] sm:$0xff]
        %v1513 = vld [vmem:[#allocation2 + $0x150] sm:$0xff]
        %v1514 = vld [vmem:[#allocation2 + $0x158] sm:$0xff]
        %v1515 = vld [vmem:[#allocation2 + $0x160] sm:$0xff]
        %v1516 = vld [vmem:[#allocation2 + $0x168] sm:$0xff]
        %v1517 = vld [vmem:[#allocation2 + $0x170] sm:$0xff]
        %v1518 = vld [vmem:[#allocation2 + $0x178] sm:$0xff]
        %v1519 = vld [vmem:[#allocation2 + $0x180] sm:$0xff]
        %v1520 = vld [vmem:[#allocation2 + $0x188] sm:$0xff]
        %v1521 = vld [vmem:[#allocation2 + $0x190] sm:$0xff]
        %v1522 = vld [vmem:[#allocation2 + $0x198] sm:$0xff]
        %v1523 = vld [vmem:[#allocation2 + $0x1a0] sm:$0xff]
        %v1524 = vld [vmem:[#allocation2 + $0x1a8] sm:$0xff]
        %v1525 = vld [vmem:[#allocation2 + $0x1b0] sm:$0xff]
        %v1526 = vld [vmem:[#allocation2 + $0x1b8] sm:$0xff]
        %v1527 = vld [vmem:[#allocation2 + $0x1c0] sm:$0xff]
        %v1528 = vld [vmem:[#allocation2 + $0x1c8] sm:$0xff]
        %v1529 = vld [vmem:[#allocation2 + $0x1d0] sm:$0xff]
        %v1530 = vld [vmem:[#allocation2 + $0x1d8] sm:$0xff]
        %v1531 = vld [vmem:[#allocation2 + $0x1e0] sm:$0xff]
        %v1532 = vld [vmem:[#allocation2 + $0x1e8] sm:$0xff]
        %v1533 = vld [vmem:[#allocation2 + $0x1f0] sm:$0xff]
        %v1534 = vld [vmem:[#allocation2 + $0x1f8] sm:$0xff]
        %1535 = vst.msk [vmem:[#allocation3] sm:$0xff] %vm343, %v1471
        %1536 = vst.msk [vmem:[#allocation3 + $0x10] sm:$0xff] %vm343, %v1472
        %1537 = vst.msk [vmem:[#allocation3 + $0x20] sm:$0xff] %vm343, %v1473
        %1538 = vst.msk [vmem:[#allocation3 + $0x30] sm:$0xff] %vm343, %v1474
        %1539 = vst.msk [vmem:[#allocation3 + $0x40] sm:$0xff] %vm343, %v1475
        %1540 = vst.msk [vmem:[#allocation3 + $0x50] sm:$0xff] %vm343, %v1476
        %1541 = vst.msk [vmem:[#allocation3 + $0x60] sm:$0xff] %vm343, %v1477
        %1542 = vst.msk [vmem:[#allocation3 + $0x70] sm:$0xff] %vm343, %v1478
        %1543 = vst.msk [vmem:[#allocation3 + $0x80] sm:$0xff] %vm343, %v1479
        %1544 = vst.msk [vmem:[#allocation3 + $0x90] sm:$0xff] %vm343, %v1480
        %1545 = vst.msk [vmem:[#allocation3 + $0xa0] sm:$0xff] %vm343, %v1481
        %1546 = vst.msk [vmem:[#allocation3 + $0xb0] sm:$0xff] %vm343, %v1482
        %1547 = vst.msk [vmem:[#allocation3 + $0xc0] sm:$0xff] %vm343, %v1483
        %1548 = vst.msk [vmem:[#allocation3 + $0xd0] sm:$0xff] %vm343, %v1484
        %1549 = vst.msk [vmem:[#allocation3 + $0xe0] sm:$0xff] %vm343, %v1485
        %1550 = vst.msk [vmem:[#allocation3 + $0xf0] sm:$0xff] %vm343, %v1486
        %1551 = vst.msk [vmem:[#allocation3 + $0x100] sm:$0xff] %vm343, %v1487
        %1552 = vst.msk [vmem:[#allocation3 + $0x110] sm:$0xff] %vm343, %v1488
        %1553 = vst.msk [vmem:[#allocation3 + $0x120] sm:$0xff] %vm343, %v1489
        %1554 = vst.msk [vmem:[#allocation3 + $0x130] sm:$0xff] %vm343, %v1490
        %1555 = vst.msk [vmem:[#allocation3 + $0x140] sm:$0xff] %vm343, %v1491
        %1556 = vst.msk [vmem:[#allocation3 + $0x150] sm:$0xff] %vm343, %v1492
        %1557 = vst.msk [vmem:[#allocation3 + $0x160] sm:$0xff] %vm343, %v1493
        %1558 = vst.msk [vmem:[#allocation3 + $0x170] sm:$0xff] %vm343, %v1494
        %1559 = vst.msk [vmem:[#allocation3 + $0x180] sm:$0xff] %vm343, %v1495
        %1560 = vst.msk [vmem:[#allocation3 + $0x190] sm:$0xff] %vm343, %v1496
        %1561 = vst.msk [vmem:[#allocation3 + $0x1a0] sm:$0xff] %vm343, %v1497
        %1562 = vst.msk [vmem:[#allocation3 + $0x1b0] sm:$0xff] %vm343, %v1498
        %1563 = vst.msk [vmem:[#allocation3 + $0x1c0] sm:$0xff] %vm343, %v1499
        %1564 = vst.msk [vmem:[#allocation3 + $0x1d0] sm:$0xff] %vm343, %v1500
        %1565 = vst.msk [vmem:[#allocation3 + $0x1e0] sm:$0xff] %vm343, %v1501
        %1566 = vst.msk [vmem:[#allocation3 + $0x1f0] sm:$0xff] %vm343, %v1502
        %1567 = vst.msk [vmem:[#allocation3 + $0x200] sm:$0xff] %vm343, %v1503
        %1568 = vst.msk [vmem:[#allocation3 + $0x210] sm:$0xff] %vm343, %v1504
        %1569 = vst.msk [vmem:[#allocation3 + $0x220] sm:$0xff] %vm343, %v1505
        %1570 = vst.msk [vmem:[#allocation3 + $0x230] sm:$0xff] %vm343, %v1506
        %1571 = vst.msk [vmem:[#allocation3 + $0x240] sm:$0xff] %vm343, %v1507
        %1572 = vst.msk [vmem:[#allocation3 + $0x250] sm:$0xff] %vm343, %v1508
        %1573 = vst.msk [vmem:[#allocation3 + $0x260] sm:$0xff] %vm343, %v1509
        %1574 = vst.msk [vmem:[#allocation3 + $0x270] sm:$0xff] %vm343, %v1510
        %1575 = vst.msk [vmem:[#allocation3 + $0x280] sm:$0xff] %vm343, %v1511
        %1576 = vst.msk [vmem:[#allocation3 + $0x290] sm:$0xff] %vm343, %v1512
        %1577 = vst.msk [vmem:[#allocation3 + $0x2a0] sm:$0xff] %vm343, %v1513
        %1578 = vst.msk [vmem:[#allocation3 + $0x2b0] sm:$0xff] %vm343, %v1514
        %1579 = vst.msk [vmem:[#allocation3 + $0x2c0] sm:$0xff] %vm343, %v1515
        %1580 = vst.msk [vmem:[#allocation3 + $0x2d0] sm:$0xff] %vm343, %v1516
        %1581 = vst.msk [vmem:[#allocation3 + $0x2e0] sm:$0xff] %vm343, %v1517
        %1582 = vst.msk [vmem:[#allocation3 + $0x2f0] sm:$0xff] %vm343, %v1518
        %1583 = vst.msk [vmem:[#allocation3 + $0x300] sm:$0xff] %vm343, %v1519
        %1584 = vst.msk [vmem:[#allocation3 + $0x310] sm:$0xff] %vm343, %v1520
        %1585 = vst.msk [vmem:[#allocation3 + $0x320] sm:$0xff] %vm343, %v1521
        %1586 = vst.msk [vmem:[#allocation3 + $0x330] sm:$0xff] %vm343, %v1522
        %1587 = vst.msk [vmem:[#allocation3 + $0x340] sm:$0xff] %vm343, %v1523
        %1588 = vst.msk [vmem:[#allocation3 + $0x350] sm:$0xff] %vm343, %v1524
        %1589 = vst.msk [vmem:[#allocation3 + $0x360] sm:$0xff] %vm343, %v1525
        %1590 = vst.msk [vmem:[#allocation3 + $0x370] sm:$0xff] %vm343, %v1526
        %1591 = vst.msk [vmem:[#allocation3 + $0x380] sm:$0xff] %vm343, %v1527
        %1592 = vst.msk [vmem:[#allocation3 + $0x390] sm:$0xff] %vm343, %v1528
        %1593 = vst.msk [vmem:[#allocation3 + $0x3a0] sm:$0xff] %vm343, %v1529
        %1594 = vst.msk [vmem:[#allocation3 + $0x3b0] sm:$0xff] %vm343, %v1530
        %1595 = vst.msk [vmem:[#allocation3 + $0x3c0] sm:$0xff] %vm343, %v1531
        %1596 = vst.msk [vmem:[#allocation3 + $0x3d0] sm:$0xff] %vm343, %v1532
        %1597 = vst.msk [vmem:[#allocation3 + $0x3e0] sm:$0xff] %vm343, %v1533
        %1598 = vst.msk [vmem:[#allocation3 + $0x3f0] sm:$0xff] %vm343, %v1534
        %v1599 = vld [vmem:[#allocation2 + $0x1] sm:$0xff]
        %v1600 = vld [vmem:[#allocation2 + $0x9] sm:$0xff]
        %v1601 = vld [vmem:[#allocation2 + $0x11] sm:$0xff]
        %v1602 = vld [vmem:[#allocation2 + $0x19] sm:$0xff]
        %v1603 = vld [vmem:[#allocation2 + $0x21] sm:$0xff]
        %v1604 = vld [vmem:[#allocation2 + $0x29] sm:$0xff]
        %v1605 = vld [vmem:[#allocation2 + $0x31] sm:$0xff]
        %v1606 = vld [vmem:[#allocation2 + $0x39] sm:$0xff]
        %v1607 = vld [vmem:[#allocation2 + $0x41] sm:$0xff]
        %v1608 = vld [vmem:[#allocation2 + $0x49] sm:$0xff]
        %v1609 = vld [vmem:[#allocation2 + $0x51] sm:$0xff]
        %v1610 = vld [vmem:[#allocation2 + $0x59] sm:$0xff]
        %v1611 = vld [vmem:[#allocation2 + $0x61] sm:$0xff]
        %v1612 = vld [vmem:[#allocation2 + $0x69] sm:$0xff]
        %v1613 = vld [vmem:[#allocation2 + $0x71] sm:$0xff]
        %v1614 = vld [vmem:[#allocation2 + $0x79] sm:$0xff]
        %v1615 = vld [vmem:[#allocation2 + $0x81] sm:$0xff]
        %v1616 = vld [vmem:[#allocation2 + $0x89] sm:$0xff]
        %v1617 = vld [vmem:[#allocation2 + $0x91] sm:$0xff]
        %v1618 = vld [vmem:[#allocation2 + $0x99] sm:$0xff]
        %v1619 = vld [vmem:[#allocation2 + $0xa1] sm:$0xff]
        %v1620 = vld [vmem:[#allocation2 + $0xa9] sm:$0xff]
        %v1621 = vld [vmem:[#allocation2 + $0xb1] sm:$0xff]
        %v1622 = vld [vmem:[#allocation2 + $0xb9] sm:$0xff]
        %v1623 = vld [vmem:[#allocation2 + $0xc1] sm:$0xff]
        %v1624 = vld [vmem:[#allocation2 + $0xc9] sm:$0xff]
        %v1625 = vld [vmem:[#allocation2 + $0xd1] sm:$0xff]
        %v1626 = vld [vmem:[#allocation2 + $0xd9] sm:$0xff]
        %v1627 = vld [vmem:[#allocation2 + $0xe1] sm:$0xff]
        %v1628 = vld [vmem:[#allocation2 + $0xe9] sm:$0xff]
        %v1629 = vld [vmem:[#allocation2 + $0xf1] sm:$0xff]
        %v1630 = vld [vmem:[#allocation2 + $0xf9] sm:$0xff]
        %v1631 = vld [vmem:[#allocation2 + $0x101] sm:$0xff]
        %v1632 = vld [vmem:[#allocation2 + $0x109] sm:$0xff]
        %v1633 = vld [vmem:[#allocation2 + $0x111] sm:$0xff]
        %v1634 = vld [vmem:[#allocation2 + $0x119] sm:$0xff]
        %v1635 = vld [vmem:[#allocation2 + $0x121] sm:$0xff]
        %v1636 = vld [vmem:[#allocation2 + $0x129] sm:$0xff]
        %v1637 = vld [vmem:[#allocation2 + $0x131] sm:$0xff]
        %v1638 = vld [vmem:[#allocation2 + $0x139] sm:$0xff]
        %v1639 = vld [vmem:[#allocation2 + $0x141] sm:$0xff]
        %v1640 = vld [vmem:[#allocation2 + $0x149] sm:$0xff]
        %v1641 = vld [vmem:[#allocation2 + $0x151] sm:$0xff]
        %v1642 = vld [vmem:[#allocation2 + $0x159] sm:$0xff]
        %v1643 = vld [vmem:[#allocation2 + $0x161] sm:$0xff]
        %v1644 = vld [vmem:[#allocation2 + $0x169] sm:$0xff]
        %v1645 = vld [vmem:[#allocation2 + $0x171] sm:$0xff]
        %v1646 = vld [vmem:[#allocation2 + $0x179] sm:$0xff]
        %v1647 = vld [vmem:[#allocation2 + $0x181] sm:$0xff]
        %v1648 = vld [vmem:[#allocation2 + $0x189] sm:$0xff]
        %v1649 = vld [vmem:[#allocation2 + $0x191] sm:$0xff]
        %v1650 = vld [vmem:[#allocation2 + $0x199] sm:$0xff]
        %v1651 = vld [vmem:[#allocation2 + $0x1a1] sm:$0xff]
        %v1652 = vld [vmem:[#allocation2 + $0x1a9] sm:$0xff]
        %v1653 = vld [vmem:[#allocation2 + $0x1b1] sm:$0xff]
        %v1654 = vld [vmem:[#allocation2 + $0x1b9] sm:$0xff]
        %v1655 = vld [vmem:[#allocation2 + $0x1c1] sm:$0xff]
        %v1656 = vld [vmem:[#allocation2 + $0x1c9] sm:$0xff]
        %v1657 = vld [vmem:[#allocation2 + $0x1d1] sm:$0xff]
        %v1658 = vld [vmem:[#allocation2 + $0x1d9] sm:$0xff]
        %v1659 = vld [vmem:[#allocation2 + $0x1e1] sm:$0xff]
        %v1660 = vld [vmem:[#allocation2 + $0x1e9] sm:$0xff]
        %v1661 = vld [vmem:[#allocation2 + $0x1f1] sm:$0xff]
        %v1662 = vld [vmem:[#allocation2 + $0x1f9] sm:$0xff]
        %1727 = vrot.lane.b32.xlu0 %v1599, 16
        %v1728 = vpop.permute.xlu0 %1727
        %1729 = vrot.lane.b32.xlu0 %v1600, 16
        %v1730 = vpop.permute.xlu0 %1729
        %1731 = vrot.lane.b32.xlu0 %v1601, 16
        %v1732 = vpop.permute.xlu0 %1731
        %1733 = vrot.lane.b32.xlu0 %v1602, 16
        %v1734 = vpop.permute.xlu0 %1733
        %1735 = vrot.lane.b32.xlu0 %v1603, 16
        %v1736 = vpop.permute.xlu0 %1735
        %1737 = vrot.lane.b32.xlu0 %v1604, 16
        %v1738 = vpop.permute.xlu0 %1737
        %1739 = vrot.lane.b32.xlu0 %v1605, 16
        %v1740 = vpop.permute.xlu0 %1739
        %1741 = vrot.lane.b32.xlu0 %v1606, 16
        %v1742 = vpop.permute.xlu0 %1741
        %1743 = vrot.lane.b32.xlu0 %v1607, 16
        %v1744 = vpop.permute.xlu0 %1743
        %1745 = vrot.lane.b32.xlu0 %v1608, 16
        %v1746 = vpop.permute.xlu0 %1745
        %1747 = vrot.lane.b32.xlu0 %v1609, 16
        %v1748 = vpop.permute.xlu0 %1747
        %1749 = vrot.lane.b32.xlu0 %v1610, 16
        %v1750 = vpop.permute.xlu0 %1749
        %1751 = vrot.lane.b32.xlu0 %v1611, 16
        %v1752 = vpop.permute.xlu0 %1751
        %1753 = vrot.lane.b32.xlu0 %v1612, 16
        %v1754 = vpop.permute.xlu0 %1753
        %1755 = vrot.lane.b32.xlu0 %v1613, 16
        %v1756 = vpop.permute.xlu0 %1755
        %1757 = vrot.lane.b32.xlu0 %v1614, 16
        %v1758 = vpop.permute.xlu0 %1757
        %1759 = vrot.lane.b32.xlu0 %v1615, 16
        %v1760 = vpop.permute.xlu0 %1759
        %1761 = vrot.lane.b32.xlu0 %v1616, 16
        %v1762 = vpop.permute.xlu0 %1761
        %1763 = vrot.lane.b32.xlu0 %v1617, 16
        %v1764 = vpop.permute.xlu0 %1763
        %1765 = vrot.lane.b32.xlu0 %v1618, 16
        %v1766 = vpop.permute.xlu0 %1765
        %1767 = vrot.lane.b32.xlu0 %v1619, 16
        %v1768 = vpop.permute.xlu0 %1767
        %1769 = vrot.lane.b32.xlu0 %v1620, 16
        %v1770 = vpop.permute.xlu0 %1769
        %1771 = vrot.lane.b32.xlu0 %v1621, 16
        %v1772 = vpop.permute.xlu0 %1771
        %1773 = vrot.lane.b32.xlu0 %v1622, 16
        %v1774 = vpop.permute.xlu0 %1773
        %1775 = vrot.lane.b32.xlu0 %v1623, 16
        %v1776 = vpop.permute.xlu0 %1775
        %1777 = vrot.lane.b32.xlu0 %v1624, 16
        %v1778 = vpop.permute.xlu0 %1777
        %1779 = vrot.lane.b32.xlu0 %v1625, 16
        %v1780 = vpop.permute.xlu0 %1779
        %1781 = vrot.lane.b32.xlu0 %v1626, 16
        %v1782 = vpop.permute.xlu0 %1781
        %1783 = vrot.lane.b32.xlu0 %v1627, 16
        %v1784 = vpop.permute.xlu0 %1783
        %1785 = vrot.lane.b32.xlu0 %v1628, 16
        %v1786 = vpop.permute.xlu0 %1785
        %1787 = vrot.lane.b32.xlu0 %v1629, 16
        %v1788 = vpop.permute.xlu0 %1787
        %1789 = vrot.lane.b32.xlu0 %v1630, 16
        %v1790 = vpop.permute.xlu0 %1789
        %1791 = vrot.lane.b32.xlu0 %v1631, 16
        %v1792 = vpop.permute.xlu0 %1791
        %1793 = vrot.lane.b32.xlu0 %v1632, 16
        %v1794 = vpop.permute.xlu0 %1793
        %1795 = vrot.lane.b32.xlu0 %v1633, 16
        %v1796 = vpop.permute.xlu0 %1795
        %1797 = vrot.lane.b32.xlu0 %v1634, 16
        %v1798 = vpop.permute.xlu0 %1797
        %1799 = vrot.lane.b32.xlu0 %v1635, 16
        %v1800 = vpop.permute.xlu0 %1799
        %1801 = vrot.lane.b32.xlu0 %v1636, 16
        %v1802 = vpop.permute.xlu0 %1801
        %1803 = vrot.lane.b32.xlu0 %v1637, 16
        %v1804 = vpop.permute.xlu0 %1803
        %1805 = vrot.lane.b32.xlu0 %v1638, 16
        %v1806 = vpop.permute.xlu0 %1805
        %1807 = vrot.lane.b32.xlu0 %v1639, 16
        %v1808 = vpop.permute.xlu0 %1807
        %1809 = vrot.lane.b32.xlu0 %v1640, 16
        %v1810 = vpop.permute.xlu0 %1809
        %1811 = vrot.lane.b32.xlu0 %v1641, 16
        %v1812 = vpop.permute.xlu0 %1811
        %1813 = vrot.lane.b32.xlu0 %v1642, 16
        %v1814 = vpop.permute.xlu0 %1813
        %1815 = vrot.lane.b32.xlu0 %v1643, 16
        %v1816 = vpop.permute.xlu0 %1815
        %1817 = vrot.lane.b32.xlu0 %v1644, 16
        %v1818 = vpop.permute.xlu0 %1817
        %1819 = vrot.lane.b32.xlu0 %v1645, 16
        %v1820 = vpop.permute.xlu0 %1819
        %1821 = vrot.lane.b32.xlu0 %v1646, 16
        %v1822 = vpop.permute.xlu0 %1821
        %1823 = vrot.lane.b32.xlu0 %v1647, 16
        %v1824 = vpop.permute.xlu0 %1823
        %1825 = vrot.lane.b32.xlu0 %v1648, 16
        %v1826 = vpop.permute.xlu0 %1825
        %1827 = vrot.lane.b32.xlu0 %v1649, 16
        %v1828 = vpop.permute.xlu0 %1827
        %1829 = vrot.lane.b32.xlu0 %v1650, 16
        %v1830 = vpop.permute.xlu0 %1829
        %1831 = vrot.lane.b32.xlu0 %v1651, 16
        %v1832 = vpop.permute.xlu0 %1831
        %1833 = vrot.lane.b32.xlu0 %v1652, 16
        %v1834 = vpop.permute.xlu0 %1833
        %1835 = vrot.lane.b32.xlu0 %v1653, 16
        %v1836 = vpop.permute.xlu0 %1835
        %1837 = vrot.lane.b32.xlu0 %v1654, 16
        %v1838 = vpop.permute.xlu0 %1837
        %1839 = vrot.lane.b32.xlu0 %v1655, 16
        %v1840 = vpop.permute.xlu0 %1839
        %1841 = vrot.lane.b32.xlu0 %v1656, 16
        %v1842 = vpop.permute.xlu0 %1841
        %1843 = vrot.lane.b32.xlu0 %v1657, 16
        %v1844 = vpop.permute.xlu0 %1843
        %1845 = vrot.lane.b32.xlu0 %v1658, 16
        %v1846 = vpop.permute.xlu0 %1845
        %1847 = vrot.lane.b32.xlu0 %v1659, 16
        %v1848 = vpop.permute.xlu0 %1847
        %1849 = vrot.lane.b32.xlu0 %v1660, 16
        %v1850 = vpop.permute.xlu0 %1849
        %1851 = vrot.lane.b32.xlu0 %v1661, 16
        %v1852 = vpop.permute.xlu0 %1851
        %1853 = vrot.lane.b32.xlu0 %v1662, 16
        %v1854 = vpop.permute.xlu0 %1853
        %vm1919 = vcmask 261248
        %1920 = vst.msk [vmem:[#allocation3] sm:$0xff] %vm1919, %v1728
        %1921 = vst.msk [vmem:[#allocation3 + $0x10] sm:$0xff] %vm1919, %v1730
        %1922 = vst.msk [vmem:[#allocation3 + $0x20] sm:$0xff] %vm1919, %v1732
        %1923 = vst.msk [vmem:[#allocation3 + $0x30] sm:$0xff] %vm1919, %v1734
        %1924 = vst.msk [vmem:[#allocation3 + $0x40] sm:$0xff] %vm1919, %v1736
        %1925 = vst.msk [vmem:[#allocation3 + $0x50] sm:$0xff] %vm1919, %v1738
        %1926 = vst.msk [vmem:[#allocation3 + $0x60] sm:$0xff] %vm1919, %v1740
        %1927 = vst.msk [vmem:[#allocation3 + $0x70] sm:$0xff] %vm1919, %v1742
        %1928 = vst.msk [vmem:[#allocation3 + $0x80] sm:$0xff] %vm1919, %v1744
        %1929 = vst.msk [vmem:[#allocation3 + $0x90] sm:$0xff] %vm1919, %v1746
        %1930 = vst.msk [vmem:[#allocation3 + $0xa0] sm:$0xff] %vm1919, %v1748
        %1931 = vst.msk [vmem:[#allocation3 + $0xb0] sm:$0xff] %vm1919, %v1750
        %1932 = vst.msk [vmem:[#allocation3 + $0xc0] sm:$0xff] %vm1919, %v1752
        %1933 = vst.msk [vmem:[#allocation3 + $0xd0] sm:$0xff] %vm1919, %v1754
        %1934 = vst.msk [vmem:[#allocation3 + $0xe0] sm:$0xff] %vm1919, %v1756
        %1935 = vst.msk [vmem:[#allocation3 + $0xf0] sm:$0xff] %vm1919, %v1758
        %1936 = vst.msk [vmem:[#allocation3 + $0x100] sm:$0xff] %vm1919, %v1760
        %1937 = vst.msk [vmem:[#allocation3 + $0x110] sm:$0xff] %vm1919, %v1762
        %1938 = vst.msk [vmem:[#allocation3 + $0x120] sm:$0xff] %vm1919, %v1764
        %1939 = vst.msk [vmem:[#allocation3 + $0x130] sm:$0xff] %vm1919, %v1766
        %1940 = vst.msk [vmem:[#allocation3 + $0x140] sm:$0xff] %vm1919, %v1768
        %1941 = vst.msk [vmem:[#allocation3 + $0x150] sm:$0xff] %vm1919, %v1770
        %1942 = vst.msk [vmem:[#allocation3 + $0x160] sm:$0xff] %vm1919, %v1772
        %1943 = vst.msk [vmem:[#allocation3 + $0x170] sm:$0xff] %vm1919, %v1774
        %1944 = vst.msk [vmem:[#allocation3 + $0x180] sm:$0xff] %vm1919, %v1776
        %1945 = vst.msk [vmem:[#allocation3 + $0x190] sm:$0xff] %vm1919, %v1778
        %1946 = vst.msk [vmem:[#allocation3 + $0x1a0] sm:$0xff] %vm1919, %v1780
        %1947 = vst.msk [vmem:[#allocation3 + $0x1b0] sm:$0xff] %vm1919, %v1782
        %1948 = vst.msk [vmem:[#allocation3 + $0x1c0] sm:$0xff] %vm1919, %v1784
        %1949 = vst.msk [vmem:[#allocation3 + $0x1d0] sm:$0xff] %vm1919, %v1786
        %1950 = vst.msk [vmem:[#allocation3 + $0x1e0] sm:$0xff] %vm1919, %v1788
        %1951 = vst.msk [vmem:[#allocation3 + $0x1f0] sm:$0xff] %vm1919, %v1790
        %1952 = vst.msk [vmem:[#allocation3 + $0x200] sm:$0xff] %vm1919, %v1792
        %1953 = vst.msk [vmem:[#allocation3 + $0x210] sm:$0xff] %vm1919, %v1794
        %1954 = vst.msk [vmem:[#allocation3 + $0x220] sm:$0xff] %vm1919, %v1796
        %1955 = vst.msk [vmem:[#allocation3 + $0x230] sm:$0xff] %vm1919, %v1798
        %1956 = vst.msk [vmem:[#allocation3 + $0x240] sm:$0xff] %vm1919, %v1800
        %1957 = vst.msk [vmem:[#allocation3 + $0x250] sm:$0xff] %vm1919, %v1802
        %1958 = vst.msk [vmem:[#allocation3 + $0x260] sm:$0xff] %vm1919, %v1804
        %1959 = vst.msk [vmem:[#allocation3 + $0x270] sm:$0xff] %vm1919, %v1806
        %1960 = vst.msk [vmem:[#allocation3 + $0x280] sm:$0xff] %vm1919, %v1808
        %1961 = vst.msk [vmem:[#allocation3 + $0x290] sm:$0xff] %vm1919, %v1810
        %1962 = vst.msk [vmem:[#allocation3 + $0x2a0] sm:$0xff] %vm1919, %v1812
        %1963 = vst.msk [vmem:[#allocation3 + $0x2b0] sm:$0xff] %vm1919, %v1814
        %1964 = vst.msk [vmem:[#allocation3 + $0x2c0] sm:$0xff] %vm1919, %v1816
        %1965 = vst.msk [vmem:[#allocation3 + $0x2d0] sm:$0xff] %vm1919, %v1818
        %1966 = vst.msk [vmem:[#allocation3 + $0x2e0] sm:$0xff] %vm1919, %v1820
        %1967 = vst.msk [vmem:[#allocation3 + $0x2f0] sm:$0xff] %vm1919, %v1822
        %1968 = vst.msk [vmem:[#allocation3 + $0x300] sm:$0xff] %vm1919, %v1824
        %1969 = vst.msk [vmem:[#allocation3 + $0x310] sm:$0xff] %vm1919, %v1826
        %1970 = vst.msk [vmem:[#allocation3 + $0x320] sm:$0xff] %vm1919, %v1828
        %1971 = vst.msk [vmem:[#allocation3 + $0x330] sm:$0xff] %vm1919, %v1830
        %1972 = vst.msk [vmem:[#allocation3 + $0x340] sm:$0xff] %vm1919, %v1832
        %1973 = vst.msk [vmem:[#allocation3 + $0x350] sm:$0xff] %vm1919, %v1834
        %1974 = vst.msk [vmem:[#allocation3 + $0x360] sm:$0xff] %vm1919, %v1836
        %1975 = vst.msk [vmem:[#allocation3 + $0x370] sm:$0xff] %vm1919, %v1838
        %1976 = vst.msk [vmem:[#allocation3 + $0x380] sm:$0xff] %vm1919, %v1840
        %1977 = vst.msk [vmem:[#allocation3 + $0x390] sm:$0xff] %vm1919, %v1842
        %1978 = vst.msk [vmem:[#allocation3 + $0x3a0] sm:$0xff] %vm1919, %v1844
        %1979 = vst.msk [vmem:[#allocation3 + $0x3b0] sm:$0xff] %vm1919, %v1846
        %1980 = vst.msk [vmem:[#allocation3 + $0x3c0] sm:$0xff] %vm1919, %v1848
        %1981 = vst.msk [vmem:[#allocation3 + $0x3d0] sm:$0xff] %vm1919, %v1850
        %1982 = vst.msk [vmem:[#allocation3 + $0x3e0] sm:$0xff] %vm1919, %v1852
        %1983 = vst.msk [vmem:[#allocation3 + $0x3f0] sm:$0xff] %vm1919, %v1854
        %v1984 = vld [vmem:[#allocation2 + $0x2] sm:$0xff]
        %v1985 = vld [vmem:[#allocation2 + $0xa] sm:$0xff]
        %v1986 = vld [vmem:[#allocation2 + $0x12] sm:$0xff]
        %v1987 = vld [vmem:[#allocation2 + $0x1a] sm:$0xff]
        %v1988 = vld [vmem:[#allocation2 + $0x22] sm:$0xff]
        %v1989 = vld [vmem:[#allocation2 + $0x2a] sm:$0xff]
        %v1990 = vld [vmem:[#allocation2 + $0x32] sm:$0xff]
        %v1991 = vld [vmem:[#allocation2 + $0x3a] sm:$0xff]
        %v1992 = vld [vmem:[#allocation2 + $0x42] sm:$0xff]
        %v1993 = vld [vmem:[#allocation2 + $0x4a] sm:$0xff]
        %v1994 = vld [vmem:[#allocation2 + $0x52] sm:$0xff]
        %v1995 = vld [vmem:[#allocation2 + $0x5a] sm:$0xff]
        %v1996 = vld [vmem:[#allocation2 + $0x62] sm:$0xff]
        %v1997 = vld [vmem:[#allocation2 + $0x6a] sm:$0xff]
        %v1998 = vld [vmem:[#allocation2 + $0x72] sm:$0xff]
        %v1999 = vld [vmem:[#allocation2 + $0x7a] sm:$0xff]
        %v2000 = vld [vmem:[#allocation2 + $0x82] sm:$0xff]
        %v2001 = vld [vmem:[#allocation2 + $0x8a] sm:$0xff]
        %v2002 = vld [vmem:[#allocation2 + $0x92] sm:$0xff]
        %v2003 = vld [vmem:[#allocation2 + $0x9a] sm:$0xff]
        %v2004 = vld [vmem:[#allocation2 + $0xa2] sm:$0xff]
        %v2005 = vld [vmem:[#allocation2 + $0xaa] sm:$0xff]
        %v2006 = vld [vmem:[#allocation2 + $0xb2] sm:$0xff]
        %v2007 = vld [vmem:[#allocation2 + $0xba] sm:$0xff]
        %v2008 = vld [vmem:[#allocation2 + $0xc2] sm:$0xff]
        %v2009 = vld [vmem:[#allocation2 + $0xca] sm:$0xff]
        %v2010 = vld [vmem:[#allocation2 + $0xd2] sm:$0xff]
        %v2011 = vld [vmem:[#allocation2 + $0xda] sm:$0xff]
        %v2012 = vld [vmem:[#allocation2 + $0xe2] sm:$0xff]
        %v2013 = vld [vmem:[#allocation2 + $0xea] sm:$0xff]
        %v2014 = vld [vmem:[#allocation2 + $0xf2] sm:$0xff]
        %v2015 = vld [vmem:[#allocation2 + $0xfa] sm:$0xff]
        %v2016 = vld [vmem:[#allocation2 + $0x102] sm:$0xff]
        %v2017 = vld [vmem:[#allocation2 + $0x10a] sm:$0xff]
        %v2018 = vld [vmem:[#allocation2 + $0x112] sm:$0xff]
        %v2019 = vld [vmem:[#allocation2 + $0x11a] sm:$0xff]
        %v2020 = vld [vmem:[#allocation2 + $0x122] sm:$0xff]
        %v2021 = vld [vmem:[#allocation2 + $0x12a] sm:$0xff]
        %v2022 = vld [vmem:[#allocation2 + $0x132] sm:$0xff]
        %v2023 = vld [vmem:[#allocation2 + $0x13a] sm:$0xff]
        %v2024 = vld [vmem:[#allocation2 + $0x142] sm:$0xff]
        %v2025 = vld [vmem:[#allocation2 + $0x14a] sm:$0xff]
        %v2026 = vld [vmem:[#allocation2 + $0x152] sm:$0xff]
        %v2027 = vld [vmem:[#allocation2 + $0x15a] sm:$0xff]
        %v2028 = vld [vmem:[#allocation2 + $0x162] sm:$0xff]
        %v2029 = vld [vmem:[#allocation2 + $0x16a] sm:$0xff]
        %v2030 = vld [vmem:[#allocation2 + $0x172] sm:$0xff]
        %v2031 = vld [vmem:[#allocation2 + $0x17a] sm:$0xff]
        %v2032 = vld [vmem:[#allocation2 + $0x182] sm:$0xff]
        %v2033 = vld [vmem:[#allocation2 + $0x18a] sm:$0xff]
        %v2034 = vld [vmem:[#allocation2 + $0x192] sm:$0xff]
        %v2035 = vld [vmem:[#allocation2 + $0x19a] sm:$0xff]
        %v2036 = vld [vmem:[#allocation2 + $0x1a2] sm:$0xff]
        %v2037 = vld [vmem:[#allocation2 + $0x1aa] sm:$0xff]
        %v2038 = vld [vmem:[#allocation2 + $0x1b2] sm:$0xff]
        %v2039 = vld [vmem:[#allocation2 + $0x1ba] sm:$0xff]
        %v2040 = vld [vmem:[#allocation2 + $0x1c2] sm:$0xff]
        %v2041 = vld [vmem:[#allocation2 + $0x1ca] sm:$0xff]
        %v2042 = vld [vmem:[#allocation2 + $0x1d2] sm:$0xff]
        %v2043 = vld [vmem:[#allocation2 + $0x1da] sm:$0xff]
        %v2044 = vld [vmem:[#allocation2 + $0x1e2] sm:$0xff]
        %v2045 = vld [vmem:[#allocation2 + $0x1ea] sm:$0xff]
        %v2046 = vld [vmem:[#allocation2 + $0x1f2] sm:$0xff]
        %v2047 = vld [vmem:[#allocation2 + $0x1fa] sm:$0xff]
        %2112 = vrot.lane.b32.xlu0 %v1984, 32
        %v2113 = vpop.permute.xlu0 %2112
        %2114 = vrot.lane.b32.xlu0 %v1985, 32
        %v2115 = vpop.permute.xlu0 %2114
        %2116 = vrot.lane.b32.xlu0 %v1986, 32
        %v2117 = vpop.permute.xlu0 %2116
        %2118 = vrot.lane.b32.xlu0 %v1987, 32
        %v2119 = vpop.permute.xlu0 %2118
        %2120 = vrot.lane.b32.xlu0 %v1988, 32
        %v2121 = vpop.permute.xlu0 %2120
        %2122 = vrot.lane.b32.xlu0 %v1989, 32
        %v2123 = vpop.permute.xlu0 %2122
        %2124 = vrot.lane.b32.xlu0 %v1990, 32
        %v2125 = vpop.permute.xlu0 %2124
        %2126 = vrot.lane.b32.xlu0 %v1991, 32
        %v2127 = vpop.permute.xlu0 %2126
        %2128 = vrot.lane.b32.xlu0 %v1992, 32
        %v2129 = vpop.permute.xlu0 %2128
        %2130 = vrot.lane.b32.xlu0 %v1993, 32
        %v2131 = vpop.permute.xlu0 %2130
        %2132 = vrot.lane.b32.xlu0 %v1994, 32
        %v2133 = vpop.permute.xlu0 %2132
        %2134 = vrot.lane.b32.xlu0 %v1995, 32
        %v2135 = vpop.permute.xlu0 %2134
        %2136 = vrot.lane.b32.xlu0 %v1996, 32
        %v2137 = vpop.permute.xlu0 %2136
        %2138 = vrot.lane.b32.xlu0 %v1997, 32
        %v2139 = vpop.permute.xlu0 %2138
        %2140 = vrot.lane.b32.xlu0 %v1998, 32
        %v2141 = vpop.permute.xlu0 %2140
        %2142 = vrot.lane.b32.xlu0 %v1999, 32
        %v2143 = vpop.permute.xlu0 %2142
        %2144 = vrot.lane.b32.xlu0 %v2000, 32
        %v2145 = vpop.permute.xlu0 %2144
        %2146 = vrot.lane.b32.xlu0 %v2001, 32
        %v2147 = vpop.permute.xlu0 %2146
        %2148 = vrot.lane.b32.xlu0 %v2002, 32
        %v2149 = vpop.permute.xlu0 %2148
        %2150 = vrot.lane.b32.xlu0 %v2003, 32
        %v2151 = vpop.permute.xlu0 %2150
        %2152 = vrot.lane.b32.xlu0 %v2004, 32
        %v2153 = vpop.permute.xlu0 %2152
        %2154 = vrot.lane.b32.xlu0 %v2005, 32
        %v2155 = vpop.permute.xlu0 %2154
        %2156 = vrot.lane.b32.xlu0 %v2006, 32
        %v2157 = vpop.permute.xlu0 %2156
        %2158 = vrot.lane.b32.xlu0 %v2007, 32
        %v2159 = vpop.permute.xlu0 %2158
        %2160 = vrot.lane.b32.xlu0 %v2008, 32
        %v2161 = vpop.permute.xlu0 %2160
        %2162 = vrot.lane.b32.xlu0 %v2009, 32
        %v2163 = vpop.permute.xlu0 %2162
        %2164 = vrot.lane.b32.xlu0 %v2010, 32
        %v2165 = vpop.permute.xlu0 %2164
        %2166 = vrot.lane.b32.xlu0 %v2011, 32
        %v2167 = vpop.permute.xlu0 %2166
        %2168 = vrot.lane.b32.xlu0 %v2012, 32
        %v2169 = vpop.permute.xlu0 %2168
        %2170 = vrot.lane.b32.xlu0 %v2013, 32
        %v2171 = vpop.permute.xlu0 %2170
        %2172 = vrot.lane.b32.xlu0 %v2014, 32
        %v2173 = vpop.permute.xlu0 %2172
        %2174 = vrot.lane.b32.xlu0 %v2015, 32
        %v2175 = vpop.permute.xlu0 %2174
        %2176 = vrot.lane.b32.xlu0 %v2016, 32
        %v2177 = vpop.permute.xlu0 %2176
        %2178 = vrot.lane.b32.xlu0 %v2017, 32
        %v2179 = vpop.permute.xlu0 %2178
        %2180 = vrot.lane.b32.xlu0 %v2018, 32
        %v2181 = vpop.permute.xlu0 %2180
        %2182 = vrot.lane.b32.xlu0 %v2019, 32
        %v2183 = vpop.permute.xlu0 %2182
        %2184 = vrot.lane.b32.xlu0 %v2020, 32
        %v2185 = vpop.permute.xlu0 %2184
        %2186 = vrot.lane.b32.xlu0 %v2021, 32
        %v2187 = vpop.permute.xlu0 %2186
        %2188 = vrot.lane.b32.xlu0 %v2022, 32
        %v2189 = vpop.permute.xlu0 %2188
        %2190 = vrot.lane.b32.xlu0 %v2023, 32
        %v2191 = vpop.permute.xlu0 %2190
        %2192 = vrot.lane.b32.xlu0 %v2024, 32
        %v2193 = vpop.permute.xlu0 %2192
        %2194 = vrot.lane.b32.xlu0 %v2025, 32
        %v2195 = vpop.permute.xlu0 %2194
        %2196 = vrot.lane.b32.xlu0 %v2026, 32
        %v2197 = vpop.permute.xlu0 %2196
        %2198 = vrot.lane.b32.xlu0 %v2027, 32
        %v2199 = vpop.permute.xlu0 %2198
        %2200 = vrot.lane.b32.xlu0 %v2028, 32
        %v2201 = vpop.permute.xlu0 %2200
        %2202 = vrot.lane.b32.xlu0 %v2029, 32
        %v2203 = vpop.permute.xlu0 %2202
        %2204 = vrot.lane.b32.xlu0 %v2030, 32
        %v2205 = vpop.permute.xlu0 %2204
        %2206 = vrot.lane.b32.xlu0 %v2031, 32
        %v2207 = vpop.permute.xlu0 %2206
        %2208 = vrot.lane.b32.xlu0 %v2032, 32
        %v2209 = vpop.permute.xlu0 %2208
        %2210 = vrot.lane.b32.xlu0 %v2033, 32
        %v2211 = vpop.permute.xlu0 %2210
        %2212 = vrot.lane.b32.xlu0 %v2034, 32
        %v2213 = vpop.permute.xlu0 %2212
        %2214 = vrot.lane.b32.xlu0 %v2035, 32
        %v2215 = vpop.permute.xlu0 %2214
        %2216 = vrot.lane.b32.xlu0 %v2036, 32
        %v2217 = vpop.permute.xlu0 %2216
        %2218 = vrot.lane.b32.xlu0 %v2037, 32
        %v2219 = vpop.permute.xlu0 %2218
        %2220 = vrot.lane.b32.xlu0 %v2038, 32
        %v2221 = vpop.permute.xlu0 %2220
        %2222 = vrot.lane.b32.xlu0 %v2039, 32
        %v2223 = vpop.permute.xlu0 %2222
        %2224 = vrot.lane.b32.xlu0 %v2040, 32
        %v2225 = vpop.permute.xlu0 %2224
        %2226 = vrot.lane.b32.xlu0 %v2041, 32
        %v2227 = vpop.permute.xlu0 %2226
        %2228 = vrot.lane.b32.xlu0 %v2042, 32
        %v2229 = vpop.permute.xlu0 %2228
        %2230 = vrot.lane.b32.xlu0 %v2043, 32
        %v2231 = vpop.permute.xlu0 %2230
        %2232 = vrot.lane.b32.xlu0 %v2044, 32
        %v2233 = vpop.permute.xlu0 %2232
        %2234 = vrot.lane.b32.xlu0 %v2045, 32
        %v2235 = vpop.permute.xlu0 %2234
        %2236 = vrot.lane.b32.xlu0 %v2046, 32
        %v2237 = vpop.permute.xlu0 %2236
        %2238 = vrot.lane.b32.xlu0 %v2047, 32
        %v2239 = vpop.permute.xlu0 %2238
        %vm2304 = vcmask 392448
        %2305 = vst.msk [vmem:[#allocation3] sm:$0xff] %vm2304, %v2113
        %2306 = vst.msk [vmem:[#allocation3 + $0x10] sm:$0xff] %vm2304, %v2115
        %2307 = vst.msk [vmem:[#allocation3 + $0x20] sm:$0xff] %vm2304, %v2117
        %2308 = vst.msk [vmem:[#allocation3 + $0x30] sm:$0xff] %vm2304, %v2119
        %2309 = vst.msk [vmem:[#allocation3 + $0x40] sm:$0xff] %vm2304, %v2121
        %2310 = vst.msk [vmem:[#allocation3 + $0x50] sm:$0xff] %vm2304, %v2123
        %2311 = vst.msk [vmem:[#allocation3 + $0x60] sm:$0xff] %vm2304, %v2125
        %2312 = vst.msk [vmem:[#allocation3 + $0x70] sm:$0xff] %vm2304, %v2127
        %2313 = vst.msk [vmem:[#allocation3 + $0x80] sm:$0xff] %vm2304, %v2129
        %2314 = vst.msk [vmem:[#allocation3 + $0x90] sm:$0xff] %vm2304, %v2131
        %2315 = vst.msk [vmem:[#allocation3 + $0xa0] sm:$0xff] %vm2304, %v2133
        %2316 = vst.msk [vmem:[#allocation3 + $0xb0] sm:$0xff] %vm2304, %v2135
        %2317 = vst.msk [vmem:[#allocation3 + $0xc0] sm:$0xff] %vm2304, %v2137
        %2318 = vst.msk [vmem:[#allocation3 + $0xd0] sm:$0xff] %vm2304, %v2139
        %2319 = vst.msk [vmem:[#allocation3 + $0xe0] sm:$0xff] %vm2304, %v2141
        %2320 = vst.msk [vmem:[#allocation3 + $0xf0] sm:$0xff] %vm2304, %v2143
        %2321 = vst.msk [vmem:[#allocation3 + $0x100] sm:$0xff] %vm2304, %v2145
        %2322 = vst.msk [vmem:[#allocation3 + $0x110] sm:$0xff] %vm2304, %v2147
        %2323 = vst.msk [vmem:[#allocation3 + $0x120] sm:$0xff] %vm2304, %v2149
        %2324 = vst.msk [vmem:[#allocation3 + $0x130] sm:$0xff] %vm2304, %v2151
        %2325 = vst.msk [vmem:[#allocation3 + $0x140] sm:$0xff] %vm2304, %v2153
        %2326 = vst.msk [vmem:[#allocation3 + $0x150] sm:$0xff] %vm2304, %v2155
        %2327 = vst.msk [vmem:[#allocation3 + $0x160] sm:$0xff] %vm2304, %v2157
        %2328 = vst.msk [vmem:[#allocation3 + $0x170] sm:$0xff] %vm2304, %v2159
        %2329 = vst.msk [vmem:[#allocation3 + $0x180] sm:$0xff] %vm2304, %v2161
        %2330 = vst.msk [vmem:[#allocation3 + $0x190] sm:$0xff] %vm2304, %v2163
        %2331 = vst.msk [vmem:[#allocation3 + $0x1a0] sm:$0xff] %vm2304, %v2165
        %2332 = vst.msk [vmem:[#allocation3 + $0x1b0] sm:$0xff] %vm2304, %v2167
        %2333 = vst.msk [vmem:[#allocation3 + $0x1c0] sm:$0xff] %vm2304, %v2169
        %2334 = vst.msk [vmem:[#allocation3 + $0x1d0] sm:$0xff] %vm2304, %v2171
        %2335 = vst.msk [vmem:[#allocation3 + $0x1e0] sm:$0xff] %vm2304, %v2173
        %2336 = vst.msk [vmem:[#allocation3 + $0x1f0] sm:$0xff] %vm2304, %v2175
        %2337 = vst.msk [vmem:[#allocation3 + $0x200] sm:$0xff] %vm2304, %v2177
        %2338 = vst.msk [vmem:[#allocation3 + $0x210] sm:$0xff] %vm2304, %v2179
        %2339 = vst.msk [vmem:[#allocation3 + $0x220] sm:$0xff] %vm2304, %v2181
        %2340 = vst.msk [vmem:[#allocation3 + $0x230] sm:$0xff] %vm2304, %v2183
        %2341 = vst.msk [vmem:[#allocation3 + $0x240] sm:$0xff] %vm2304, %v2185
        %2342 = vst.msk [vmem:[#allocation3 + $0x250] sm:$0xff] %vm2304, %v2187
        %2343 = vst.msk [vmem:[#allocation3 + $0x260] sm:$0xff] %vm2304, %v2189
        %2344 = vst.msk [vmem:[#allocation3 + $0x270] sm:$0xff] %vm2304, %v2191
        %2345 = vst.msk [vmem:[#allocation3 + $0x280] sm:$0xff] %vm2304, %v2193
        %2346 = vst.msk [vmem:[#allocation3 + $0x290] sm:$0xff] %vm2304, %v2195
        %2347 = vst.msk [vmem:[#allocation3 + $0x2a0] sm:$0xff] %vm2304, %v2197
        %2348 = vst.msk [vmem:[#allocation3 + $0x2b0] sm:$0xff] %vm2304, %v2199
        %2349 = vst.msk [vmem:[#allocation3 + $0x2c0] sm:$0xff] %vm2304, %v2201
        %2350 = vst.msk [vmem:[#allocation3 + $0x2d0] sm:$0xff] %vm2304, %v2203
        %2351 = vst.msk [vmem:[#allocation3 + $0x2e0] sm:$0xff] %vm2304, %v2205
        %2352 = vst.msk [vmem:[#allocation3 + $0x2f0] sm:$0xff] %vm2304, %v2207
        %2353 = vst.msk [vmem:[#allocation3 + $0x300] sm:$0xff] %vm2304, %v2209
        %2354 = vst.msk [vmem:[#allocation3 + $0x310] sm:$0xff] %vm2304, %v2211
        %2355 = vst.msk [vmem:[#allocation3 + $0x320] sm:$0xff] %vm2304, %v2213
        %2356 = vst.msk [vmem:[#allocation3 + $0x330] sm:$0xff] %vm2304, %v2215
        %2357 = vst.msk [vmem:[#allocation3 + $0x340] sm:$0xff] %vm2304, %v2217
        %2358 = vst.msk [vmem:[#allocation3 + $0x350] sm:$0xff] %vm2304, %v2219
        %2359 = vst.msk [vmem:[#allocation3 + $0x360] sm:$0xff] %vm2304, %v2221
        %2360 = vst.msk [vmem:[#allocation3 + $0x370] sm:$0xff] %vm2304, %v2223
        %2361 = vst.msk [vmem:[#allocation3 + $0x380] sm:$0xff] %vm2304, %v2225
        %2362 = vst.msk [vmem:[#allocation3 + $0x390] sm:$0xff] %vm2304, %v2227
        %2363 = vst.msk [vmem:[#allocation3 + $0x3a0] sm:$0xff] %vm2304, %v2229
        %2364 = vst.msk [vmem:[#allocation3 + $0x3b0] sm:$0xff] %vm2304, %v2231
        %2365 = vst.msk [vmem:[#allocation3 + $0x3c0] sm:$0xff] %vm2304, %v2233
        %2366 = vst.msk [vmem:[#allocation3 + $0x3d0] sm:$0xff] %vm2304, %v2235
        %2367 = vst.msk [vmem:[#allocation3 + $0x3e0] sm:$0xff] %vm2304, %v2237
        %2368 = vst.msk [vmem:[#allocation3 + $0x3f0] sm:$0xff] %vm2304, %v2239
        %v2369 = vld [vmem:[#allocation2 + $0x10] sm:$0xff]
        %v2370 = vld [vmem:[#allocation2 + $0x18] sm:$0xff]
        %v2371 = vld [vmem:[#allocation2 + $0x20] sm:$0xff]
        %v2372 = vld [vmem:[#allocation2 + $0x28] sm:$0xff]
        %v2373 = vld [vmem:[#allocation2 + $0x30] sm:$0xff]
        %v2374 = vld [vmem:[#allocation2 + $0x38] sm:$0xff]
        %v2375 = vld [vmem:[#allocation2 + $0x40] sm:$0xff]
        %v2376 = vld [vmem:[#allocation2 + $0x48] sm:$0xff]
        %v2377 = vld [vmem:[#allocation2 + $0x50] sm:$0xff]
        %v2378 = vld [vmem:[#allocation2 + $0x58] sm:$0xff]
        %v2379 = vld [vmem:[#allocation2 + $0x60] sm:$0xff]
        %v2380 = vld [vmem:[#allocation2 + $0x68] sm:$0xff]
        %v2381 = vld [vmem:[#allocation2 + $0x70] sm:$0xff]
        %v2382 = vld [vmem:[#allocation2 + $0x78] sm:$0xff]
        %v2383 = vld [vmem:[#allocation2 + $0x80] sm:$0xff]
        %v2384 = vld [vmem:[#allocation2 + $0x88] sm:$0xff]
        %v2385 = vld [vmem:[#allocation2 + $0x90] sm:$0xff]
        %v2386 = vld [vmem:[#allocation2 + $0x98] sm:$0xff]
        %v2387 = vld [vmem:[#allocation2 + $0xa0] sm:$0xff]
        %v2388 = vld [vmem:[#allocation2 + $0xa8] sm:$0xff]
        %v2389 = vld [vmem:[#allocation2 + $0xb0] sm:$0xff]
        %v2390 = vld [vmem:[#allocation2 + $0xb8] sm:$0xff]
        %v2391 = vld [vmem:[#allocation2 + $0xc0] sm:$0xff]
        %v2392 = vld [vmem:[#allocation2 + $0xc8] sm:$0xff]
        %v2393 = vld [vmem:[#allocation2 + $0xd0] sm:$0xff]
        %v2394 = vld [vmem:[#allocation2 + $0xd8] sm:$0xff]
        %v2395 = vld [vmem:[#allocation2 + $0xe0] sm:$0xff]
        %v2396 = vld [vmem:[#allocation2 + $0xe8] sm:$0xff]
        %v2397 = vld [vmem:[#allocation2 + $0xf0] sm:$0xff]
        %v2398 = vld [vmem:[#allocation2 + $0xf8] sm:$0xff]
        %v2399 = vld [vmem:[#allocation2 + $0x100] sm:$0xff]
        %v2400 = vld [vmem:[#allocation2 + $0x108] sm:$0xff]
        %v2401 = vld [vmem:[#allocation2 + $0x110] sm:$0xff]
        %v2402 = vld [vmem:[#allocation2 + $0x118] sm:$0xff]
        %v2403 = vld [vmem:[#allocation2 + $0x120] sm:$0xff]
        %v2404 = vld [vmem:[#allocation2 + $0x128] sm:$0xff]
        %v2405 = vld [vmem:[#allocation2 + $0x130] sm:$0xff]
        %v2406 = vld [vmem:[#allocation2 + $0x138] sm:$0xff]
        %v2407 = vld [vmem:[#allocation2 + $0x140] sm:$0xff]
        %v2408 = vld [vmem:[#allocation2 + $0x148] sm:$0xff]
        %v2409 = vld [vmem:[#allocation2 + $0x150] sm:$0xff]
        %v2410 = vld [vmem:[#allocation2 + $0x158] sm:$0xff]
        %v2411 = vld [vmem:[#allocation2 + $0x160] sm:$0xff]
        %v2412 = vld [vmem:[#allocation2 + $0x168] sm:$0xff]
        %v2413 = vld [vmem:[#allocation2 + $0x170] sm:$0xff]
        %v2414 = vld [vmem:[#allocation2 + $0x178] sm:$0xff]
        %v2415 = vld [vmem:[#allocation2 + $0x180] sm:$0xff]
        %v2416 = vld [vmem:[#allocation2 + $0x188] sm:$0xff]
        %v2417 = vld [vmem:[#allocation2 + $0x190] sm:$0xff]
        %v2418 = vld [vmem:[#allocation2 + $0x198] sm:$0xff]
        %v2419 = vld [vmem:[#allocation2 + $0x1a0] sm:$0xff]
        %v2420 = vld [vmem:[#allocation2 + $0x1a8] sm:$0xff]
        %v2421 = vld [vmem:[#allocation2 + $0x1b0] sm:$0xff]
        %v2422 = vld [vmem:[#allocation2 + $0x1b8] sm:$0xff]
        %v2423 = vld [vmem:[#allocation2 + $0x1c0] sm:$0xff]
        %v2424 = vld [vmem:[#allocation2 + $0x1c8] sm:$0xff]
        %v2425 = vld [vmem:[#allocation2 + $0x1d0] sm:$0xff]
        %v2426 = vld [vmem:[#allocation2 + $0x1d8] sm:$0xff]
        %v2427 = vld [vmem:[#allocation2 + $0x1e0] sm:$0xff]
        %v2428 = vld [vmem:[#allocation2 + $0x1e8] sm:$0xff]
        %v2429 = vld [vmem:[#allocation2 + $0x1f0] sm:$0xff]
        %v2430 = vld [vmem:[#allocation2 + $0x1f8] sm:$0xff]
        %v2431 = vld [vmem:[#allocation2 + $0x200] sm:$0xff]
        %v2432 = vld [vmem:[#allocation2 + $0x208] sm:$0xff]
        %2497 = vrot.lane.b32.xlu0 %v2369, 48
        %v2498 = vpop.permute.xlu0 %2497
        %2499 = vrot.lane.b32.xlu0 %v2370, 48
        %v2500 = vpop.permute.xlu0 %2499
        %2501 = vrot.lane.b32.xlu0 %v2371, 48
        %v2502 = vpop.permute.xlu0 %2501
        %2503 = vrot.lane.b32.xlu0 %v2372, 48
        %v2504 = vpop.permute.xlu0 %2503
        %2505 = vrot.lane.b32.xlu0 %v2373, 48
        %v2506 = vpop.permute.xlu0 %2505
        %2507 = vrot.lane.b32.xlu0 %v2374, 48
        %v2508 = vpop.permute.xlu0 %2507
        %2509 = vrot.lane.b32.xlu0 %v2375, 48
        %v2510 = vpop.permute.xlu0 %2509
        %2511 = vrot.lane.b32.xlu0 %v2376, 48
        %v2512 = vpop.permute.xlu0 %2511
        %2513 = vrot.lane.b32.xlu0 %v2377, 48
        %v2514 = vpop.permute.xlu0 %2513
        %2515 = vrot.lane.b32.xlu0 %v2378, 48
        %v2516 = vpop.permute.xlu0 %2515
        %2517 = vrot.lane.b32.xlu0 %v2379, 48
        %v2518 = vpop.permute.xlu0 %2517
        %2519 = vrot.lane.b32.xlu0 %v2380, 48
        %v2520 = vpop.permute.xlu0 %2519
        %2521 = vrot.lane.b32.xlu0 %v2381, 48
        %v2522 = vpop.permute.xlu0 %2521
        %2523 = vrot.lane.b32.xlu0 %v2382, 48
        %v2524 = vpop.permute.xlu0 %2523
        %2525 = vrot.lane.b32.xlu0 %v2383, 48
        %v2526 = vpop.permute.xlu0 %2525
        %2527 = vrot.lane.b32.xlu0 %v2384, 48
        %v2528 = vpop.permute.xlu0 %2527
        %2529 = vrot.lane.b32.xlu0 %v2385, 48
        %v2530 = vpop.permute.xlu0 %2529
        %2531 = vrot.lane.b32.xlu0 %v2386, 48
        %v2532 = vpop.permute.xlu0 %2531
        %2533 = vrot.lane.b32.xlu0 %v2387, 48
        %v2534 = vpop.permute.xlu0 %2533
        %2535 = vrot.lane.b32.xlu0 %v2388, 48
        %v2536 = vpop.permute.xlu0 %2535
        %2537 = vrot.lane.b32.xlu0 %v2389, 48
        %v2538 = vpop.permute.xlu0 %2537
        %2539 = vrot.lane.b32.xlu0 %v2390, 48
        %v2540 = vpop.permute.xlu0 %2539
        %2541 = vrot.lane.b32.xlu0 %v2391, 48
        %v2542 = vpop.permute.xlu0 %2541
        %2543 = vrot.lane.b32.xlu0 %v2392, 48
        %v2544 = vpop.permute.xlu0 %2543
        %2545 = vrot.lane.b32.xlu0 %v2393, 48
        %v2546 = vpop.permute.xlu0 %2545
        %2547 = vrot.lane.b32.xlu0 %v2394, 48
        %v2548 = vpop.permute.xlu0 %2547
        %2549 = vrot.lane.b32.xlu0 %v2395, 48
        %v2550 = vpop.permute.xlu0 %2549
        %2551 = vrot.lane.b32.xlu0 %v2396, 48
        %v2552 = vpop.permute.xlu0 %2551
        %2553 = vrot.lane.b32.xlu0 %v2397, 48
        %v2554 = vpop.permute.xlu0 %2553
        %2555 = vrot.lane.b32.xlu0 %v2398, 48
        %v2556 = vpop.permute.xlu0 %2555
        %2557 = vrot.lane.b32.xlu0 %v2399, 48
        %v2558 = vpop.permute.xlu0 %2557
        %2559 = vrot.lane.b32.xlu0 %v2400, 48
        %v2560 = vpop.permute.xlu0 %2559
        %2561 = vrot.lane.b32.xlu0 %v2401, 48
        %v2562 = vpop.permute.xlu0 %2561
        %2563 = vrot.lane.b32.xlu0 %v2402, 48
        %v2564 = vpop.permute.xlu0 %2563
        %2565 = vrot.lane.b32.xlu0 %v2403, 48
        %v2566 = vpop.permute.xlu0 %2565
        %2567 = vrot.lane.b32.xlu0 %v2404, 48
        %v2568 = vpop.permute.xlu0 %2567
        %2569 = vrot.lane.b32.xlu0 %v2405, 48
        %v2570 = vpop.permute.xlu0 %2569
        %2571 = vrot.lane.b32.xlu0 %v2406, 48
        %v2572 = vpop.permute.xlu0 %2571
        %2573 = vrot.lane.b32.xlu0 %v2407, 48
        %v2574 = vpop.permute.xlu0 %2573
        %2575 = vrot.lane.b32.xlu0 %v2408, 48
        %v2576 = vpop.permute.xlu0 %2575
        %2577 = vrot.lane.b32.xlu0 %v2409, 48
        %v2578 = vpop.permute.xlu0 %2577
        %2579 = vrot.lane.b32.xlu0 %v2410, 48
        %v2580 = vpop.permute.xlu0 %2579
        %2581 = vrot.lane.b32.xlu0 %v2411, 48
        %v2582 = vpop.permute.xlu0 %2581
        %2583 = vrot.lane.b32.xlu0 %v2412, 48
        %v2584 = vpop.permute.xlu0 %2583
        %2585 = vrot.lane.b32.xlu0 %v2413, 48
        %v2586 = vpop.permute.xlu0 %2585
        %2587 = vrot.lane.b32.xlu0 %v2414, 48
        %v2588 = vpop.permute.xlu0 %2587
        %2589 = vrot.lane.b32.xlu0 %v2415, 48
        %v2590 = vpop.permute.xlu0 %2589
        %2591 = vrot.lane.b32.xlu0 %v2416, 48
        %v2592 = vpop.permute.xlu0 %2591
        %2593 = vrot.lane.b32.xlu0 %v2417, 48
        %v2594 = vpop.permute.xlu0 %2593
        %2595 = vrot.lane.b32.xlu0 %v2418, 48
        %v2596 = vpop.permute.xlu0 %2595
        %2597 = vrot.lane.b32.xlu0 %v2419, 48
        %v2598 = vpop.permute.xlu0 %2597
        %2599 = vrot.lane.b32.xlu0 %v2420, 48
        %v2600 = vpop.permute.xlu0 %2599
        %2601 = vrot.lane.b32.xlu0 %v2421, 48
        %v2602 = vpop.permute.xlu0 %2601
        %2603 = vrot.lane.b32.xlu0 %v2422, 48
        %v2604 = vpop.permute.xlu0 %2603
        %2605 = vrot.lane.b32.xlu0 %v2423, 48
        %v2606 = vpop.permute.xlu0 %2605
        %2607 = vrot.lane.b32.xlu0 %v2424, 48
        %v2608 = vpop.permute.xlu0 %2607
        %2609 = vrot.lane.b32.xlu0 %v2425, 48
        %v2610 = vpop.permute.xlu0 %2609
        %2611 = vrot.lane.b32.xlu0 %v2426, 48
        %v2612 = vpop.permute.xlu0 %2611
        %2613 = vrot.lane.b32.xlu0 %v2427, 48
        %v2614 = vpop.permute.xlu0 %2613
        %2615 = vrot.lane.b32.xlu0 %v2428, 48
        %v2616 = vpop.permute.xlu0 %2615
        %2617 = vrot.lane.b32.xlu0 %v2429, 48
        %v2618 = vpop.permute.xlu0 %2617
        %2619 = vrot.lane.b32.xlu0 %v2430, 48
        %v2620 = vpop.permute.xlu0 %2619
        %2621 = vrot.lane.b32.xlu0 %v2431, 48
        %v2622 = vpop.permute.xlu0 %2621
        %2623 = vrot.lane.b32.xlu0 %v2432, 48
        %v2624 = vpop.permute.xlu0 %2623
        %vm2689 = vcmask 523648
        %2690 = vst.msk [vmem:[#allocation3] sm:$0xff] %vm2689, %v2498
        %2691 = vst.msk [vmem:[#allocation3 + $0x10] sm:$0xff] %vm2689, %v2500
        %2692 = vst.msk [vmem:[#allocation3 + $0x20] sm:$0xff] %vm2689, %v2502
        %2693 = vst.msk [vmem:[#allocation3 + $0x30] sm:$0xff] %vm2689, %v2504
        %2694 = vst.msk [vmem:[#allocation3 + $0x40] sm:$0xff] %vm2689, %v2506
        %2695 = vst.msk [vmem:[#allocation3 + $0x50] sm:$0xff] %vm2689, %v2508
        %2696 = vst.msk [vmem:[#allocation3 + $0x60] sm:$0xff] %vm2689, %v2510
        %2697 = vst.msk [vmem:[#allocation3 + $0x70] sm:$0xff] %vm2689, %v2512
        %2698 = vst.msk [vmem:[#allocation3 + $0x80] sm:$0xff] %vm2689, %v2514
        %2699 = vst.msk [vmem:[#allocation3 + $0x90] sm:$0xff] %vm2689, %v2516
        %2700 = vst.msk [vmem:[#allocation3 + $0xa0] sm:$0xff] %vm2689, %v2518
        %2701 = vst.msk [vmem:[#allocation3 + $0xb0] sm:$0xff] %vm2689, %v2520
        %2702 = vst.msk [vmem:[#allocation3 + $0xc0] sm:$0xff] %vm2689, %v2522
        %2703 = vst.msk [vmem:[#allocation3 + $0xd0] sm:$0xff] %vm2689, %v2524
        %2704 = vst.msk [vmem:[#allocation3 + $0xe0] sm:$0xff] %vm2689, %v2526
        %2705 = vst.msk [vmem:[#allocation3 + $0xf0] sm:$0xff] %vm2689, %v2528
        %2706 = vst.msk [vmem:[#allocation3 + $0x100] sm:$0xff] %vm2689, %v2530
        %2707 = vst.msk [vmem:[#allocation3 + $0x110] sm:$0xff] %vm2689, %v2532
        %2708 = vst.msk [vmem:[#allocation3 + $0x120] sm:$0xff] %vm2689, %v2534
        %2709 = vst.msk [vmem:[#allocation3 + $0x130] sm:$0xff] %vm2689, %v2536
        %2710 = vst.msk [vmem:[#allocation3 + $0x140] sm:$0xff] %vm2689, %v2538
        %2711 = vst.msk [vmem:[#allocation3 + $0x150] sm:$0xff] %vm2689, %v2540
        %2712 = vst.msk [vmem:[#allocation3 + $0x160] sm:$0xff] %vm2689, %v2542
        %2713 = vst.msk [vmem:[#allocation3 + $0x170] sm:$0xff] %vm2689, %v2544
        %2714 = vst.msk [vmem:[#allocation3 + $0x180] sm:$0xff] %vm2689, %v2546
        %2715 = vst.msk [vmem:[#allocation3 + $0x190] sm:$0xff] %vm2689, %v2548
        %2716 = vst.msk [vmem:[#allocation3 + $0x1a0] sm:$0xff] %vm2689, %v2550
        %2717 = vst.msk [vmem:[#allocation3 + $0x1b0] sm:$0xff] %vm2689, %v2552
        %2718 = vst.msk [vmem:[#allocation3 + $0x1c0] sm:$0xff] %vm2689, %v2554
        %2719 = vst.msk [vmem:[#allocation3 + $0x1d0] sm:$0xff] %vm2689, %v2556
        %2720 = vst.msk [vmem:[#allocation3 + $0x1e0] sm:$0xff] %vm2689, %v2558
        %2721 = vst.msk [vmem:[#allocation3 + $0x1f0] sm:$0xff] %vm2689, %v2560
        %2722 = vst.msk [vmem:[#allocation3 + $0x200] sm:$0xff] %vm2689, %v2562
        %2723 = vst.msk [vmem:[#allocation3 + $0x210] sm:$0xff] %vm2689, %v2564
        %2724 = vst.msk [vmem:[#allocation3 + $0x220] sm:$0xff] %vm2689, %v2566
        %2725 = vst.msk [vmem:[#allocation3 + $0x230] sm:$0xff] %vm2689, %v2568
        %2726 = vst.msk [vmem:[#allocation3 + $0x240] sm:$0xff] %vm2689, %v2570
        %2727 = vst.msk [vmem:[#allocation3 + $0x250] sm:$0xff] %vm2689, %v2572
        %2728 = vst.msk [vmem:[#allocation3 + $0x260] sm:$0xff] %vm2689, %v2574
        %2729 = vst.msk [vmem:[#allocation3 + $0x270] sm:$0xff] %vm2689, %v2576
        %2730 = vst.msk [vmem:[#allocation3 + $0x280] sm:$0xff] %vm2689, %v2578
        %2731 = vst.msk [vmem:[#allocation3 + $0x290] sm:$0xff] %vm2689, %v2580
        %2732 = vst.msk [vmem:[#allocation3 + $0x2a0] sm:$0xff] %vm2689, %v2582
        %2733 = vst.msk [vmem:[#allocation3 + $0x2b0] sm:$0xff] %vm2689, %v2584
        %2734 = vst.msk [vmem:[#allocation3 + $0x2c0] sm:$0xff] %vm2689, %v2586
        %2735 = vst.msk [vmem:[#allocation3 + $0x2d0] sm:$0xff] %vm2689, %v2588
        %2736 = vst.msk [vmem:[#allocation3 + $0x2e0] sm:$0xff] %vm2689, %v2590
        %2737 = vst.msk [vmem:[#allocation3 + $0x2f0] sm:$0xff] %vm2689, %v2592
        %2738 = vst.msk [vmem:[#allocation3 + $0x300] sm:$0xff] %vm2689, %v2594
        %2739 = vst.msk [vmem:[#allocation3 + $0x310] sm:$0xff] %vm2689, %v2596
        %2740 = vst.msk [vmem:[#allocation3 + $0x320] sm:$0xff] %vm2689, %v2598
        %2741 = vst.msk [vmem:[#allocation3 + $0x330] sm:$0xff] %vm2689, %v2600
        %2742 = vst.msk [vmem:[#allocation3 + $0x340] sm:$0xff] %vm2689, %v2602
        %2743 = vst.msk [vmem:[#allocation3 + $0x350] sm:$0xff] %vm2689, %v2604
        %2744 = vst.msk [vmem:[#allocation3 + $0x360] sm:$0xff] %vm2689, %v2606
        %2745 = vst.msk [vmem:[#allocation3 + $0x370] sm:$0xff] %vm2689, %v2608
        %2746 = vst.msk [vmem:[#allocation3 + $0x380] sm:$0xff] %vm2689, %v2610
        %2747 = vst.msk [vmem:[#allocation3 + $0x390] sm:$0xff] %vm2689, %v2612
        %2748 = vst.msk [vmem:[#allocation3 + $0x3a0] sm:$0xff] %vm2689, %v2614
        %2749 = vst.msk [vmem:[#allocation3 + $0x3b0] sm:$0xff] %vm2689, %v2616
        %2750 = vst.msk [vmem:[#allocation3 + $0x3c0] sm:$0xff] %vm2689, %v2618
        %2751 = vst.msk [vmem:[#allocation3 + $0x3d0] sm:$0xff] %vm2689, %v2620
        %2752 = vst.msk [vmem:[#allocation3 + $0x3e0] sm:$0xff] %vm2689, %v2622
        %2753 = vst.msk [vmem:[#allocation3 + $0x3f0] sm:$0xff] %vm2689, %v2624
        %v2754 = vld [vmem:[#allocation2 + $0x11] sm:$0xff]
        %v2755 = vld [vmem:[#allocation2 + $0x19] sm:$0xff]
        %v2756 = vld [vmem:[#allocation2 + $0x21] sm:$0xff]
        %v2757 = vld [vmem:[#allocation2 + $0x29] sm:$0xff]
        %v2758 = vld [vmem:[#allocation2 + $0x31] sm:$0xff]
        %v2759 = vld [vmem:[#allocation2 + $0x39] sm:$0xff]
        %v2760 = vld [vmem:[#allocation2 + $0x41] sm:$0xff]
        %v2761 = vld [vmem:[#allocation2 + $0x49] sm:$0xff]
        %v2762 = vld [vmem:[#allocation2 + $0x51] sm:$0xff]
        %v2763 = vld [vmem:[#allocation2 + $0x59] sm:$0xff]
        %v2764 = vld [vmem:[#allocation2 + $0x61] sm:$0xff]
        %v2765 = vld [vmem:[#allocation2 + $0x69] sm:$0xff]
        %v2766 = vld [vmem:[#allocation2 + $0x71] sm:$0xff]
        %v2767 = vld [vmem:[#allocation2 + $0x79] sm:$0xff]
        %v2768 = vld [vmem:[#allocation2 + $0x81] sm:$0xff]
        %v2769 = vld [vmem:[#allocation2 + $0x89] sm:$0xff]
        %v2770 = vld [vmem:[#allocation2 + $0x91] sm:$0xff]
        %v2771 = vld [vmem:[#allocation2 + $0x99] sm:$0xff]
        %v2772 = vld [vmem:[#allocation2 + $0xa1] sm:$0xff]
        %v2773 = vld [vmem:[#allocation2 + $0xa9] sm:$0xff]
        %v2774 = vld [vmem:[#allocation2 + $0xb1] sm:$0xff]
        %v2775 = vld [vmem:[#allocation2 + $0xb9] sm:$0xff]
        %v2776 = vld [vmem:[#allocation2 + $0xc1] sm:$0xff]
        %v2777 = vld [vmem:[#allocation2 + $0xc9] sm:$0xff]
        %v2778 = vld [vmem:[#allocation2 + $0xd1] sm:$0xff]
        %v2779 = vld [vmem:[#allocation2 + $0xd9] sm:$0xff]
        %v2780 = vld [vmem:[#allocation2 + $0xe1] sm:$0xff]
        %v2781 = vld [vmem:[#allocation2 + $0xe9] sm:$0xff]
        %v2782 = vld [vmem:[#allocation2 + $0xf1] sm:$0xff]
        %v2783 = vld [vmem:[#allocation2 + $0xf9] sm:$0xff]
        %v2784 = vld [vmem:[#allocation2 + $0x101] sm:$0xff]
        %v2785 = vld [vmem:[#allocation2 + $0x109] sm:$0xff]
        %v2786 = vld [vmem:[#allocation2 + $0x111] sm:$0xff]
        %v2787 = vld [vmem:[#allocation2 + $0x119] sm:$0xff]
        %v2788 = vld [vmem:[#allocation2 + $0x121] sm:$0xff]
        %v2789 = vld [vmem:[#allocation2 + $0x129] sm:$0xff]
        %v2790 = vld [vmem:[#allocation2 + $0x131] sm:$0xff]
        %v2791 = vld [vmem:[#allocation2 + $0x139] sm:$0xff]
        %v2792 = vld [vmem:[#allocation2 + $0x141] sm:$0xff]
        %v2793 = vld [vmem:[#allocation2 + $0x149] sm:$0xff]
        %v2794 = vld [vmem:[#allocation2 + $0x151] sm:$0xff]
        %v2795 = vld [vmem:[#allocation2 + $0x159] sm:$0xff]
        %v2796 = vld [vmem:[#allocation2 + $0x161] sm:$0xff]
        %v2797 = vld [vmem:[#allocation2 + $0x169] sm:$0xff]
        %v2798 = vld [vmem:[#allocation2 + $0x171] sm:$0xff]
        %v2799 = vld [vmem:[#allocation2 + $0x179] sm:$0xff]
        %v2800 = vld [vmem:[#allocation2 + $0x181] sm:$0xff]
        %v2801 = vld [vmem:[#allocation2 + $0x189] sm:$0xff]
        %v2802 = vld [vmem:[#allocation2 + $0x191] sm:$0xff]
        %v2803 = vld [vmem:[#allocation2 + $0x199] sm:$0xff]
        %v2804 = vld [vmem:[#allocation2 + $0x1a1] sm:$0xff]
        %v2805 = vld [vmem:[#allocation2 + $0x1a9] sm:$0xff]
        %v2806 = vld [vmem:[#allocation2 + $0x1b1] sm:$0xff]
        %v2807 = vld [vmem:[#allocation2 + $0x1b9] sm:$0xff]
        %v2808 = vld [vmem:[#allocation2 + $0x1c1] sm:$0xff]
        %v2809 = vld [vmem:[#allocation2 + $0x1c9] sm:$0xff]
        %v2810 = vld [vmem:[#allocation2 + $0x1d1] sm:$0xff]
        %v2811 = vld [vmem:[#allocation2 + $0x1d9] sm:$0xff]
        %v2812 = vld [vmem:[#allocation2 + $0x1e1] sm:$0xff]
        %v2813 = vld [vmem:[#allocation2 + $0x1e9] sm:$0xff]
        %v2814 = vld [vmem:[#allocation2 + $0x1f1] sm:$0xff]
        %v2815 = vld [vmem:[#allocation2 + $0x1f9] sm:$0xff]
        %v2816 = vld [vmem:[#allocation2 + $0x201] sm:$0xff]
        %v2817 = vld [vmem:[#allocation2 + $0x209] sm:$0xff]
        %2882 = vrot.lane.b32.xlu0 %v2754, 64
        %v2883 = vpop.permute.xlu0 %2882
        %2884 = vrot.lane.b32.xlu0 %v2755, 64
        %v2885 = vpop.permute.xlu0 %2884
        %2886 = vrot.lane.b32.xlu0 %v2756, 64
        %v2887 = vpop.permute.xlu0 %2886
        %2888 = vrot.lane.b32.xlu0 %v2757, 64
        %v2889 = vpop.permute.xlu0 %2888
        %2890 = vrot.lane.b32.xlu0 %v2758, 64
        %v2891 = vpop.permute.xlu0 %2890
        %2892 = vrot.lane.b32.xlu0 %v2759, 64
        %v2893 = vpop.permute.xlu0 %2892
        %2894 = vrot.lane.b32.xlu0 %v2760, 64
        %v2895 = vpop.permute.xlu0 %2894
        %2896 = vrot.lane.b32.xlu0 %v2761, 64
        %v2897 = vpop.permute.xlu0 %2896
        %2898 = vrot.lane.b32.xlu0 %v2762, 64
        %v2899 = vpop.permute.xlu0 %2898
        %2900 = vrot.lane.b32.xlu0 %v2763, 64
        %v2901 = vpop.permute.xlu0 %2900
        %2902 = vrot.lane.b32.xlu0 %v2764, 64
        %v2903 = vpop.permute.xlu0 %2902
        %2904 = vrot.lane.b32.xlu0 %v2765, 64
        %v2905 = vpop.permute.xlu0 %2904
        %2906 = vrot.lane.b32.xlu0 %v2766, 64
        %v2907 = vpop.permute.xlu0 %2906
        %2908 = vrot.lane.b32.xlu0 %v2767, 64
        %v2909 = vpop.permute.xlu0 %2908
        %2910 = vrot.lane.b32.xlu0 %v2768, 64
        %v2911 = vpop.permute.xlu0 %2910
        %2912 = vrot.lane.b32.xlu0 %v2769, 64
        %v2913 = vpop.permute.xlu0 %2912
        %2914 = vrot.lane.b32.xlu0 %v2770, 64
        %v2915 = vpop.permute.xlu0 %2914
        %2916 = vrot.lane.b32.xlu0 %v2771, 64
        %v2917 = vpop.permute.xlu0 %2916
        %2918 = vrot.lane.b32.xlu0 %v2772, 64
        %v2919 = vpop.permute.xlu0 %2918
        %2920 = vrot.lane.b32.xlu0 %v2773, 64
        %v2921 = vpop.permute.xlu0 %2920
        %2922 = vrot.lane.b32.xlu0 %v2774, 64
        %v2923 = vpop.permute.xlu0 %2922
        %2924 = vrot.lane.b32.xlu0 %v2775, 64
        %v2925 = vpop.permute.xlu0 %2924
        %2926 = vrot.lane.b32.xlu0 %v2776, 64
        %v2927 = vpop.permute.xlu0 %2926
        %2928 = vrot.lane.b32.xlu0 %v2777, 64
        %v2929 = vpop.permute.xlu0 %2928
        %2930 = vrot.lane.b32.xlu0 %v2778, 64
        %v2931 = vpop.permute.xlu0 %2930
        %2932 = vrot.lane.b32.xlu0 %v2779, 64
        %v2933 = vpop.permute.xlu0 %2932
        %2934 = vrot.lane.b32.xlu0 %v2780, 64
        %v2935 = vpop.permute.xlu0 %2934
        %2936 = vrot.lane.b32.xlu0 %v2781, 64
        %v2937 = vpop.permute.xlu0 %2936
        %2938 = vrot.lane.b32.xlu0 %v2782, 64
        %v2939 = vpop.permute.xlu0 %2938
        %2940 = vrot.lane.b32.xlu0 %v2783, 64
        %v2941 = vpop.permute.xlu0 %2940
        %2942 = vrot.lane.b32.xlu0 %v2784, 64
        %v2943 = vpop.permute.xlu0 %2942
        %2944 = vrot.lane.b32.xlu0 %v2785, 64
        %v2945 = vpop.permute.xlu0 %2944
        %2946 = vrot.lane.b32.xlu0 %v2786, 64
        %v2947 = vpop.permute.xlu0 %2946
        %2948 = vrot.lane.b32.xlu0 %v2787, 64
        %v2949 = vpop.permute.xlu0 %2948
        %2950 = vrot.lane.b32.xlu0 %v2788, 64
        %v2951 = vpop.permute.xlu0 %2950
        %2952 = vrot.lane.b32.xlu0 %v2789, 64
        %v2953 = vpop.permute.xlu0 %2952
        %2954 = vrot.lane.b32.xlu0 %v2790, 64
        %v2955 = vpop.permute.xlu0 %2954
        %2956 = vrot.lane.b32.xlu0 %v2791, 64
        %v2957 = vpop.permute.xlu0 %2956
        %2958 = vrot.lane.b32.xlu0 %v2792, 64
        %v2959 = vpop.permute.xlu0 %2958
        %2960 = vrot.lane.b32.xlu0 %v2793, 64
        %v2961 = vpop.permute.xlu0 %2960
        %2962 = vrot.lane.b32.xlu0 %v2794, 64
        %v2963 = vpop.permute.xlu0 %2962
        %2964 = vrot.lane.b32.xlu0 %v2795, 64
        %v2965 = vpop.permute.xlu0 %2964
        %2966 = vrot.lane.b32.xlu0 %v2796, 64
        %v2967 = vpop.permute.xlu0 %2966
        %2968 = vrot.lane.b32.xlu0 %v2797, 64
        %v2969 = vpop.permute.xlu0 %2968
        %2970 = vrot.lane.b32.xlu0 %v2798, 64
        %v2971 = vpop.permute.xlu0 %2970
        %2972 = vrot.lane.b32.xlu0 %v2799, 64
        %v2973 = vpop.permute.xlu0 %2972
        %2974 = vrot.lane.b32.xlu0 %v2800, 64
        %v2975 = vpop.permute.xlu0 %2974
        %2976 = vrot.lane.b32.xlu0 %v2801, 64
        %v2977 = vpop.permute.xlu0 %2976
        %2978 = vrot.lane.b32.xlu0 %v2802, 64
        %v2979 = vpop.permute.xlu0 %2978
        %2980 = vrot.lane.b32.xlu0 %v2803, 64
        %v2981 = vpop.permute.xlu0 %2980
        %2982 = vrot.lane.b32.xlu0 %v2804, 64
        %v2983 = vpop.permute.xlu0 %2982
        %2984 = vrot.lane.b32.xlu0 %v2805, 64
        %v2985 = vpop.permute.xlu0 %2984
        %2986 = vrot.lane.b32.xlu0 %v2806, 64
        %v2987 = vpop.permute.xlu0 %2986
        %2988 = vrot.lane.b32.xlu0 %v2807, 64
        %v2989 = vpop.permute.xlu0 %2988
        %2990 = vrot.lane.b32.xlu0 %v2808, 64
        %v2991 = vpop.permute.xlu0 %2990
        %2992 = vrot.lane.b32.xlu0 %v2809, 64
        %v2993 = vpop.permute.xlu0 %2992
        %2994 = vrot.lane.b32.xlu0 %v2810, 64
        %v2995 = vpop.permute.xlu0 %2994
        %2996 = vrot.lane.b32.xlu0 %v2811, 64
        %v2997 = vpop.permute.xlu0 %2996
        %2998 = vrot.lane.b32.xlu0 %v2812, 64
        %v2999 = vpop.permute.xlu0 %2998
        %3000 = vrot.lane.b32.xlu0 %v2813, 64
        %v3001 = vpop.permute.xlu0 %3000
        %3002 = vrot.lane.b32.xlu0 %v2814, 64
        %v3003 = vpop.permute.xlu0 %3002
        %3004 = vrot.lane.b32.xlu0 %v2815, 64
        %v3005 = vpop.permute.xlu0 %3004
        %3006 = vrot.lane.b32.xlu0 %v2816, 64
        %v3007 = vpop.permute.xlu0 %3006
        %3008 = vrot.lane.b32.xlu0 %v2817, 64
        %v3009 = vpop.permute.xlu0 %3008
        %vm3074 = vcmask 654848
        %3075 = vst.msk [vmem:[#allocation3] sm:$0xff] %vm3074, %v2883
        %3076 = vst.msk [vmem:[#allocation3 + $0x10] sm:$0xff] %vm3074, %v2885
        %3077 = vst.msk [vmem:[#allocation3 + $0x20] sm:$0xff] %vm3074, %v2887
        %3078 = vst.msk [vmem:[#allocation3 + $0x30] sm:$0xff] %vm3074, %v2889
        %3079 = vst.msk [vmem:[#allocation3 + $0x40] sm:$0xff] %vm3074, %v2891
        %3080 = vst.msk [vmem:[#allocation3 + $0x50] sm:$0xff] %vm3074, %v2893
        %3081 = vst.msk [vmem:[#allocation3 + $0x60] sm:$0xff] %vm3074, %v2895
        %3082 = vst.msk [vmem:[#allocation3 + $0x70] sm:$0xff] %vm3074, %v2897
        %3083 = vst.msk [vmem:[#allocation3 + $0x80] sm:$0xff] %vm3074, %v2899
        %3084 = vst.msk [vmem:[#allocation3 + $0x90] sm:$0xff] %vm3074, %v2901
        %3085 = vst.msk [vmem:[#allocation3 + $0xa0] sm:$0xff] %vm3074, %v2903
        %3086 = vst.msk [vmem:[#allocation3 + $0xb0] sm:$0xff] %vm3074, %v2905
        %3087 = vst.msk [vmem:[#allocation3 + $0xc0] sm:$0xff] %vm3074, %v2907
        %3088 = vst.msk [vmem:[#allocation3 + $0xd0] sm:$0xff] %vm3074, %v2909
        %3089 = vst.msk [vmem:[#allocation3 + $0xe0] sm:$0xff] %vm3074, %v2911
        %3090 = vst.msk [vmem:[#allocation3 + $0xf0] sm:$0xff] %vm3074, %v2913
        %3091 = vst.msk [vmem:[#allocation3 + $0x100] sm:$0xff] %vm3074, %v2915
        %3092 = vst.msk [vmem:[#allocation3 + $0x110] sm:$0xff] %vm3074, %v2917
        %3093 = vst.msk [vmem:[#allocation3 + $0x120] sm:$0xff] %vm3074, %v2919
        %3094 = vst.msk [vmem:[#allocation3 + $0x130] sm:$0xff] %vm3074, %v2921
        %3095 = vst.msk [vmem:[#allocation3 + $0x140] sm:$0xff] %vm3074, %v2923
        %3096 = vst.msk [vmem:[#allocation3 + $0x150] sm:$0xff] %vm3074, %v2925
        %3097 = vst.msk [vmem:[#allocation3 + $0x160] sm:$0xff] %vm3074, %v2927
        %3098 = vst.msk [vmem:[#allocation3 + $0x170] sm:$0xff] %vm3074, %v2929
        %3099 = vst.msk [vmem:[#allocation3 + $0x180] sm:$0xff] %vm3074, %v2931
        %3100 = vst.msk [vmem:[#allocation3 + $0x190] sm:$0xff] %vm3074, %v2933
        %3101 = vst.msk [vmem:[#allocation3 + $0x1a0] sm:$0xff] %vm3074, %v2935
        %3102 = vst.msk [vmem:[#allocation3 + $0x1b0] sm:$0xff] %vm3074, %v2937
        %3103 = vst.msk [vmem:[#allocation3 + $0x1c0] sm:$0xff] %vm3074, %v2939
        %3104 = vst.msk [vmem:[#allocation3 + $0x1d0] sm:$0xff] %vm3074, %v2941
        %3105 = vst.msk [vmem:[#allocation3 + $0x1e0] sm:$0xff] %vm3074, %v2943
        %3106 = vst.msk [vmem:[#allocation3 + $0x1f0] sm:$0xff] %vm3074, %v2945
        %3107 = vst.msk [vmem:[#allocation3 + $0x200] sm:$0xff] %vm3074, %v2947
        %3108 = vst.msk [vmem:[#allocation3 + $0x210] sm:$0xff] %vm3074, %v2949
        %3109 = vst.msk [vmem:[#allocation3 + $0x220] sm:$0xff] %vm3074, %v2951
        %3110 = vst.msk [vmem:[#allocation3 + $0x230] sm:$0xff] %vm3074, %v2953
        %3111 = vst.msk [vmem:[#allocation3 + $0x240] sm:$0xff] %vm3074, %v2955
        %3112 = vst.msk [vmem:[#allocation3 + $0x250] sm:$0xff] %vm3074, %v2957
        %3113 = vst.msk [vmem:[#allocation3 + $0x260] sm:$0xff] %vm3074, %v2959
        %3114 = vst.msk [vmem:[#allocation3 + $0x270] sm:$0xff] %vm3074, %v2961
        %3115 = vst.msk [vmem:[#allocation3 + $0x280] sm:$0xff] %vm3074, %v2963
        %3116 = vst.msk [vmem:[#allocation3 + $0x290] sm:$0xff] %vm3074, %v2965
        %3117 = vst.msk [vmem:[#allocation3 + $0x2a0] sm:$0xff] %vm3074, %v2967
        %3118 = vst.msk [vmem:[#allocation3 + $0x2b0] sm:$0xff] %vm3074, %v2969
        %3119 = vst.msk [vmem:[#allocation3 + $0x2c0] sm:$0xff] %vm3074, %v2971
        %3120 = vst.msk [vmem:[#allocation3 + $0x2d0] sm:$0xff] %vm3074, %v2973
        %3121 = vst.msk [vmem:[#allocation3 + $0x2e0] sm:$0xff] %vm3074, %v2975
        %3122 = vst.msk [vmem:[#allocation3 + $0x2f0] sm:$0xff] %vm3074, %v2977
        %3123 = vst.msk [vmem:[#allocation3 + $0x300] sm:$0xff] %vm3074, %v2979
        %3124 = vst.msk [vmem:[#allocation3 + $0x310] sm:$0xff] %vm3074, %v2981
        %3125 = vst.msk [vmem:[#allocation3 + $0x320] sm:$0xff] %vm3074, %v2983
        %3126 = vst.msk [vmem:[#allocation3 + $0x330] sm:$0xff] %vm3074, %v2985
        %3127 = vst.msk [vmem:[#allocation3 + $0x340] sm:$0xff] %vm3074, %v2987
        %3128 = vst.msk [vmem:[#allocation3 + $0x350] sm:$0xff] %vm3074, %v2989
        %3129 = vst.msk [vmem:[#allocation3 + $0x360] sm:$0xff] %vm3074, %v2991
        %3130 = vst.msk [vmem:[#allocation3 + $0x370] sm:$0xff] %vm3074, %v2993
        %3131 = vst.msk [vmem:[#allocation3 + $0x380] sm:$0xff] %vm3074, %v2995
        %3132 = vst.msk [vmem:[#allocation3 + $0x390] sm:$0xff] %vm3074, %v2997
        %3133 = vst.msk [vmem:[#allocation3 + $0x3a0] sm:$0xff] %vm3074, %v2999
        %3134 = vst.msk [vmem:[#allocation3 + $0x3b0] sm:$0xff] %vm3074, %v3001
        %3135 = vst.msk [vmem:[#allocation3 + $0x3c0] sm:$0xff] %vm3074, %v3003
        %3136 = vst.msk [vmem:[#allocation3 + $0x3d0] sm:$0xff] %vm3074, %v3005
        %3137 = vst.msk [vmem:[#allocation3 + $0x3e0] sm:$0xff] %vm3074, %v3007
        %3138 = vst.msk [vmem:[#allocation3 + $0x3f0] sm:$0xff] %vm3074, %v3009
        %v3139 = vld [vmem:[#allocation2 + $0x12] sm:$0xff]
        %v3140 = vld [vmem:[#allocation2 + $0x1a] sm:$0xff]
        %v3141 = vld [vmem:[#allocation2 + $0x22] sm:$0xff]
        %v3142 = vld [vmem:[#allocation2 + $0x2a] sm:$0xff]
        %v3143 = vld [vmem:[#allocation2 + $0x32] sm:$0xff]
        %v3144 = vld [vmem:[#allocation2 + $0x3a] sm:$0xff]
        %v3145 = vld [vmem:[#allocation2 + $0x42] sm:$0xff]
        %v3146 = vld [vmem:[#allocation2 + $0x4a] sm:$0xff]
        %v3147 = vld [vmem:[#allocation2 + $0x52] sm:$0xff]
        %v3148 = vld [vmem:[#allocation2 + $0x5a] sm:$0xff]
        %v3149 = vld [vmem:[#allocation2 + $0x62] sm:$0xff]
        %v3150 = vld [vmem:[#allocation2 + $0x6a] sm:$0xff]
        %v3151 = vld [vmem:[#allocation2 + $0x72] sm:$0xff]
        %v3152 = vld [vmem:[#allocation2 + $0x7a] sm:$0xff]
        %v3153 = vld [vmem:[#allocation2 + $0x82] sm:$0xff]
        %v3154 = vld [vmem:[#allocation2 + $0x8a] sm:$0xff]
        %v3155 = vld [vmem:[#allocation2 + $0x92] sm:$0xff]
        %v3156 = vld [vmem:[#allocation2 + $0x9a] sm:$0xff]
        %v3157 = vld [vmem:[#allocation2 + $0xa2] sm:$0xff]
        %v3158 = vld [vmem:[#allocation2 + $0xaa] sm:$0xff]
        %v3159 = vld [vmem:[#allocation2 + $0xb2] sm:$0xff]
        %v3160 = vld [vmem:[#allocation2 + $0xba] sm:$0xff]
        %v3161 = vld [vmem:[#allocation2 + $0xc2] sm:$0xff]
        %v3162 = vld [vmem:[#allocation2 + $0xca] sm:$0xff]
        %v3163 = vld [vmem:[#allocation2 + $0xd2] sm:$0xff]
        %v3164 = vld [vmem:[#allocation2 + $0xda] sm:$0xff]
        %v3165 = vld [vmem:[#allocation2 + $0xe2] sm:$0xff]
        %v3166 = vld [vmem:[#allocation2 + $0xea] sm:$0xff]
        %v3167 = vld [vmem:[#allocation2 + $0xf2] sm:$0xff]
        %v3168 = vld [vmem:[#allocation2 + $0xfa] sm:$0xff]
        %v3169 = vld [vmem:[#allocation2 + $0x102] sm:$0xff]
        %v3170 = vld [vmem:[#allocation2 + $0x10a] sm:$0xff]
        %v3171 = vld [vmem:[#allocation2 + $0x112] sm:$0xff]
        %v3172 = vld [vmem:[#allocation2 + $0x11a] sm:$0xff]
        %v3173 = vld [vmem:[#allocation2 + $0x122] sm:$0xff]
        %v3174 = vld [vmem:[#allocation2 + $0x12a] sm:$0xff]
        %v3175 = vld [vmem:[#allocation2 + $0x132] sm:$0xff]
        %v3176 = vld [vmem:[#allocation2 + $0x13a] sm:$0xff]
        %v3177 = vld [vmem:[#allocation2 + $0x142] sm:$0xff]
        %v3178 = vld [vmem:[#allocation2 + $0x14a] sm:$0xff]
        %v3179 = vld [vmem:[#allocation2 + $0x152] sm:$0xff]
        %v3180 = vld [vmem:[#allocation2 + $0x15a] sm:$0xff]
        %v3181 = vld [vmem:[#allocation2 + $0x162] sm:$0xff]
        %v3182 = vld [vmem:[#allocation2 + $0x16a] sm:$0xff]
        %v3183 = vld [vmem:[#allocation2 + $0x172] sm:$0xff]
        %v3184 = vld [vmem:[#allocation2 + $0x17a] sm:$0xff]
        %v3185 = vld [vmem:[#allocation2 + $0x182] sm:$0xff]
        %v3186 = vld [vmem:[#allocation2 + $0x18a] sm:$0xff]
        %v3187 = vld [vmem:[#allocation2 + $0x192] sm:$0xff]
        %v3188 = vld [vmem:[#allocation2 + $0x19a] sm:$0xff]
        %v3189 = vld [vmem:[#allocation2 + $0x1a2] sm:$0xff]
        %v3190 = vld [vmem:[#allocation2 + $0x1aa] sm:$0xff]
        %v3191 = vld [vmem:[#allocation2 + $0x1b2] sm:$0xff]
        %v3192 = vld [vmem:[#allocation2 + $0x1ba] sm:$0xff]
        %v3193 = vld [vmem:[#allocation2 + $0x1c2] sm:$0xff]
        %v3194 = vld [vmem:[#allocation2 + $0x1ca] sm:$0xff]
        %v3195 = vld [vmem:[#allocation2 + $0x1d2] sm:$0xff]
        %v3196 = vld [vmem:[#allocation2 + $0x1da] sm:$0xff]
        %v3197 = vld [vmem:[#allocation2 + $0x1e2] sm:$0xff]
        %v3198 = vld [vmem:[#allocation2 + $0x1ea] sm:$0xff]
        %v3199 = vld [vmem:[#allocation2 + $0x1f2] sm:$0xff]
        %v3200 = vld [vmem:[#allocation2 + $0x1fa] sm:$0xff]
        %v3201 = vld [vmem:[#allocation2 + $0x202] sm:$0xff]
        %v3202 = vld [vmem:[#allocation2 + $0x20a] sm:$0xff]
        %3267 = vrot.lane.b32.xlu0 %v3139, 80
        %v3268 = vpop.permute.xlu0 %3267
        %3269 = vrot.lane.b32.xlu0 %v3140, 80
        %v3270 = vpop.permute.xlu0 %3269
        %3271 = vrot.lane.b32.xlu0 %v3141, 80
        %v3272 = vpop.permute.xlu0 %3271
        %3273 = vrot.lane.b32.xlu0 %v3142, 80
        %v3274 = vpop.permute.xlu0 %3273
        %3275 = vrot.lane.b32.xlu0 %v3143, 80
        %v3276 = vpop.permute.xlu0 %3275
        %3277 = vrot.lane.b32.xlu0 %v3144, 80
        %v3278 = vpop.permute.xlu0 %3277
        %3279 = vrot.lane.b32.xlu0 %v3145, 80
        %v3280 = vpop.permute.xlu0 %3279
        %3281 = vrot.lane.b32.xlu0 %v3146, 80
        %v3282 = vpop.permute.xlu0 %3281
        %3283 = vrot.lane.b32.xlu0 %v3147, 80
        %v3284 = vpop.permute.xlu0 %3283
        %3285 = vrot.lane.b32.xlu0 %v3148, 80
        %v3286 = vpop.permute.xlu0 %3285
        %3287 = vrot.lane.b32.xlu0 %v3149, 80
        %v3288 = vpop.permute.xlu0 %3287
        %3289 = vrot.lane.b32.xlu0 %v3150, 80
        %v3290 = vpop.permute.xlu0 %3289
        %3291 = vrot.lane.b32.xlu0 %v3151, 80
        %v3292 = vpop.permute.xlu0 %3291
        %3293 = vrot.lane.b32.xlu0 %v3152, 80
        %v3294 = vpop.permute.xlu0 %3293
        %3295 = vrot.lane.b32.xlu0 %v3153, 80
        %v3296 = vpop.permute.xlu0 %3295
        %3297 = vrot.lane.b32.xlu0 %v3154, 80
        %v3298 = vpop.permute.xlu0 %3297
        %3299 = vrot.lane.b32.xlu0 %v3155, 80
        %v3300 = vpop.permute.xlu0 %3299
        %3301 = vrot.lane.b32.xlu0 %v3156, 80
        %v3302 = vpop.permute.xlu0 %3301
        %3303 = vrot.lane.b32.xlu0 %v3157, 80
        %v3304 = vpop.permute.xlu0 %3303
        %3305 = vrot.lane.b32.xlu0 %v3158, 80
        %v3306 = vpop.permute.xlu0 %3305
        %3307 = vrot.lane.b32.xlu0 %v3159, 80
        %v3308 = vpop.permute.xlu0 %3307
        %3309 = vrot.lane.b32.xlu0 %v3160, 80
        %v3310 = vpop.permute.xlu0 %3309
        %3311 = vrot.lane.b32.xlu0 %v3161, 80
        %v3312 = vpop.permute.xlu0 %3311
        %3313 = vrot.lane.b32.xlu0 %v3162, 80
        %v3314 = vpop.permute.xlu0 %3313
        %3315 = vrot.lane.b32.xlu0 %v3163, 80
        %v3316 = vpop.permute.xlu0 %3315
        %3317 = vrot.lane.b32.xlu0 %v3164, 80
        %v3318 = vpop.permute.xlu0 %3317
        %3319 = vrot.lane.b32.xlu0 %v3165, 80
        %v3320 = vpop.permute.xlu0 %3319
        %3321 = vrot.lane.b32.xlu0 %v3166, 80
        %v3322 = vpop.permute.xlu0 %3321
        %3323 = vrot.lane.b32.xlu0 %v3167, 80
        %v3324 = vpop.permute.xlu0 %3323
        %3325 = vrot.lane.b32.xlu0 %v3168, 80
        %v3326 = vpop.permute.xlu0 %3325
        %3327 = vrot.lane.b32.xlu0 %v3169, 80
        %v3328 = vpop.permute.xlu0 %3327
        %3329 = vrot.lane.b32.xlu0 %v3170, 80
        %v3330 = vpop.permute.xlu0 %3329
        %3331 = vrot.lane.b32.xlu0 %v3171, 80
        %v3332 = vpop.permute.xlu0 %3331
        %3333 = vrot.lane.b32.xlu0 %v3172, 80
        %v3334 = vpop.permute.xlu0 %3333
        %3335 = vrot.lane.b32.xlu0 %v3173, 80
        %v3336 = vpop.permute.xlu0 %3335
        %3337 = vrot.lane.b32.xlu0 %v3174, 80
        %v3338 = vpop.permute.xlu0 %3337
        %3339 = vrot.lane.b32.xlu0 %v3175, 80
        %v3340 = vpop.permute.xlu0 %3339
        %3341 = vrot.lane.b32.xlu0 %v3176, 80
        %v3342 = vpop.permute.xlu0 %3341
        %3343 = vrot.lane.b32.xlu0 %v3177, 80
        %v3344 = vpop.permute.xlu0 %3343
        %3345 = vrot.lane.b32.xlu0 %v3178, 80
        %v3346 = vpop.permute.xlu0 %3345
        %3347 = vrot.lane.b32.xlu0 %v3179, 80
        %v3348 = vpop.permute.xlu0 %3347
        %3349 = vrot.lane.b32.xlu0 %v3180, 80
        %v3350 = vpop.permute.xlu0 %3349
        %3351 = vrot.lane.b32.xlu0 %v3181, 80
        %v3352 = vpop.permute.xlu0 %3351
        %3353 = vrot.lane.b32.xlu0 %v3182, 80
        %v3354 = vpop.permute.xlu0 %3353
        %3355 = vrot.lane.b32.xlu0 %v3183, 80
        %v3356 = vpop.permute.xlu0 %3355
        %3357 = vrot.lane.b32.xlu0 %v3184, 80
        %v3358 = vpop.permute.xlu0 %3357
        %3359 = vrot.lane.b32.xlu0 %v3185, 80
        %v3360 = vpop.permute.xlu0 %3359
        %3361 = vrot.lane.b32.xlu0 %v3186, 80
        %v3362 = vpop.permute.xlu0 %3361
        %3363 = vrot.lane.b32.xlu0 %v3187, 80
        %v3364 = vpop.permute.xlu0 %3363
        %3365 = vrot.lane.b32.xlu0 %v3188, 80
        %v3366 = vpop.permute.xlu0 %3365
        %3367 = vrot.lane.b32.xlu0 %v3189, 80
        %v3368 = vpop.permute.xlu0 %3367
        %3369 = vrot.lane.b32.xlu0 %v3190, 80
        %v3370 = vpop.permute.xlu0 %3369
        %3371 = vrot.lane.b32.xlu0 %v3191, 80
        %v3372 = vpop.permute.xlu0 %3371
        %3373 = vrot.lane.b32.xlu0 %v3192, 80
        %v3374 = vpop.permute.xlu0 %3373
        %3375 = vrot.lane.b32.xlu0 %v3193, 80
        %v3376 = vpop.permute.xlu0 %3375
        %3377 = vrot.lane.b32.xlu0 %v3194, 80
        %v3378 = vpop.permute.xlu0 %3377
        %3379 = vrot.lane.b32.xlu0 %v3195, 80
        %v3380 = vpop.permute.xlu0 %3379
        %3381 = vrot.lane.b32.xlu0 %v3196, 80
        %v3382 = vpop.permute.xlu0 %3381
        %3383 = vrot.lane.b32.xlu0 %v3197, 80
        %v3384 = vpop.permute.xlu0 %3383
        %3385 = vrot.lane.b32.xlu0 %v3198, 80
        %v3386 = vpop.permute.xlu0 %3385
        %3387 = vrot.lane.b32.xlu0 %v3199, 80
        %v3388 = vpop.permute.xlu0 %3387
        %3389 = vrot.lane.b32.xlu0 %v3200, 80
        %v3390 = vpop.permute.xlu0 %3389
        %3391 = vrot.lane.b32.xlu0 %v3201, 80
        %v3392 = vpop.permute.xlu0 %3391
        %3393 = vrot.lane.b32.xlu0 %v3202, 80
        %v3394 = vpop.permute.xlu0 %3393
        %vm3459 = vcmask 786048
        %3460 = vst.msk [vmem:[#allocation3] sm:$0xff] %vm3459, %v3268
        %3461 = vst.msk [vmem:[#allocation3 + $0x10] sm:$0xff] %vm3459, %v3270
        %3462 = vst.msk [vmem:[#allocation3 + $0x20] sm:$0xff] %vm3459, %v3272
        %3463 = vst.msk [vmem:[#allocation3 + $0x30] sm:$0xff] %vm3459, %v3274
        %3464 = vst.msk [vmem:[#allocation3 + $0x40] sm:$0xff] %vm3459, %v3276
        %3465 = vst.msk [vmem:[#allocation3 + $0x50] sm:$0xff] %vm3459, %v3278
        %3466 = vst.msk [vmem:[#allocation3 + $0x60] sm:$0xff] %vm3459, %v3280
        %3467 = vst.msk [vmem:[#allocation3 + $0x70] sm:$0xff] %vm3459, %v3282
        %3468 = vst.msk [vmem:[#allocation3 + $0x80] sm:$0xff] %vm3459, %v3284
        %3469 = vst.msk [vmem:[#allocation3 + $0x90] sm:$0xff] %vm3459, %v3286
        %3470 = vst.msk [vmem:[#allocation3 + $0xa0] sm:$0xff] %vm3459, %v3288
        %3471 = vst.msk [vmem:[#allocation3 + $0xb0] sm:$0xff] %vm3459, %v3290
        %3472 = vst.msk [vmem:[#allocation3 + $0xc0] sm:$0xff] %vm3459, %v3292
        %3473 = vst.msk [vmem:[#allocation3 + $0xd0] sm:$0xff] %vm3459, %v3294
        %3474 = vst.msk [vmem:[#allocation3 + $0xe0] sm:$0xff] %vm3459, %v3296
        %3475 = vst.msk [vmem:[#allocation3 + $0xf0] sm:$0xff] %vm3459, %v3298
        %3476 = vst.msk [vmem:[#allocation3 + $0x100] sm:$0xff] %vm3459, %v3300
        %3477 = vst.msk [vmem:[#allocation3 + $0x110] sm:$0xff] %vm3459, %v3302
        %3478 = vst.msk [vmem:[#allocation3 + $0x120] sm:$0xff] %vm3459, %v3304
        %3479 = vst.msk [vmem:[#allocation3 + $0x130] sm:$0xff] %vm3459, %v3306
        %3480 = vst.msk [vmem:[#allocation3 + $0x140] sm:$0xff] %vm3459, %v3308
        %3481 = vst.msk [vmem:[#allocation3 + $0x150] sm:$0xff] %vm3459, %v3310
        %3482 = vst.msk [vmem:[#allocation3 + $0x160] sm:$0xff] %vm3459, %v3312
        %3483 = vst.msk [vmem:[#allocation3 + $0x170] sm:$0xff] %vm3459, %v3314
        %3484 = vst.msk [vmem:[#allocation3 + $0x180] sm:$0xff] %vm3459, %v3316
        %3485 = vst.msk [vmem:[#allocation3 + $0x190] sm:$0xff] %vm3459, %v3318
        %3486 = vst.msk [vmem:[#allocation3 + $0x1a0] sm:$0xff] %vm3459, %v3320
        %3487 = vst.msk [vmem:[#allocation3 + $0x1b0] sm:$0xff] %vm3459, %v3322
        %3488 = vst.msk [vmem:[#allocation3 + $0x1c0] sm:$0xff] %vm3459, %v3324
        %3489 = vst.msk [vmem:[#allocation3 + $0x1d0] sm:$0xff] %vm3459, %v3326
        %3490 = vst.msk [vmem:[#allocation3 + $0x1e0] sm:$0xff] %vm3459, %v3328
        %3491 = vst.msk [vmem:[#allocation3 + $0x1f0] sm:$0xff] %vm3459, %v3330
        %3492 = vst.msk [vmem:[#allocation3 + $0x200] sm:$0xff] %vm3459, %v3332
        %3493 = vst.msk [vmem:[#allocation3 + $0x210] sm:$0xff] %vm3459, %v3334
        %3494 = vst.msk [vmem:[#allocation3 + $0x220] sm:$0xff] %vm3459, %v3336
        %3495 = vst.msk [vmem:[#allocation3 + $0x230] sm:$0xff] %vm3459, %v3338
        %3496 = vst.msk [vmem:[#allocation3 + $0x240] sm:$0xff] %vm3459, %v3340
        %3497 = vst.msk [vmem:[#allocation3 + $0x250] sm:$0xff] %vm3459, %v3342
        %3498 = vst.msk [vmem:[#allocation3 + $0x260] sm:$0xff] %vm3459, %v3344
        %3499 = vst.msk [vmem:[#allocation3 + $0x270] sm:$0xff] %vm3459, %v3346
        %3500 = vst.msk [vmem:[#allocation3 + $0x280] sm:$0xff] %vm3459, %v3348
        %3501 = vst.msk [vmem:[#allocation3 + $0x290] sm:$0xff] %vm3459, %v3350
        %3502 = vst.msk [vmem:[#allocation3 + $0x2a0] sm:$0xff] %vm3459, %v3352
        %3503 = vst.msk [vmem:[#allocation3 + $0x2b0] sm:$0xff] %vm3459, %v3354
        %3504 = vst.msk [vmem:[#allocation3 + $0x2c0] sm:$0xff] %vm3459, %v3356
        %3505 = vst.msk [vmem:[#allocation3 + $0x2d0] sm:$0xff] %vm3459, %v3358
        %3506 = vst.msk [vmem:[#allocation3 + $0x2e0] sm:$0xff] %vm3459, %v3360
        %3507 = vst.msk [vmem:[#allocation3 + $0x2f0] sm:$0xff] %vm3459, %v3362
        %3508 = vst.msk [vmem:[#allocation3 + $0x300] sm:$0xff] %vm3459, %v3364
        %3509 = vst.msk [vmem:[#allocation3 + $0x310] sm:$0xff] %vm3459, %v3366
        %3510 = vst.msk [vmem:[#allocation3 + $0x320] sm:$0xff] %vm3459, %v3368
        %3511 = vst.msk [vmem:[#allocation3 + $0x330] sm:$0xff] %vm3459, %v3370
        %3512 = vst.msk [vmem:[#allocation3 + $0x340] sm:$0xff] %vm3459, %v3372
        %3513 = vst.msk [vmem:[#allocation3 + $0x350] sm:$0xff] %vm3459, %v3374
        %3514 = vst.msk [vmem:[#allocation3 + $0x360] sm:$0xff] %vm3459, %v3376
        %3515 = vst.msk [vmem:[#allocation3 + $0x370] sm:$0xff] %vm3459, %v3378
        %3516 = vst.msk [vmem:[#allocation3 + $0x380] sm:$0xff] %vm3459, %v3380
        %3517 = vst.msk [vmem:[#allocation3 + $0x390] sm:$0xff] %vm3459, %v3382
        %3518 = vst.msk [vmem:[#allocation3 + $0x3a0] sm:$0xff] %vm3459, %v3384
        %3519 = vst.msk [vmem:[#allocation3 + $0x3b0] sm:$0xff] %vm3459, %v3386
        %3520 = vst.msk [vmem:[#allocation3 + $0x3c0] sm:$0xff] %vm3459, %v3388
        %3521 = vst.msk [vmem:[#allocation3 + $0x3d0] sm:$0xff] %vm3459, %v3390
        %3522 = vst.msk [vmem:[#allocation3 + $0x3e0] sm:$0xff] %vm3459, %v3392
        %3523 = vst.msk [vmem:[#allocation3 + $0x3f0] sm:$0xff] %vm3459, %v3394
        %v3524 = vld [vmem:[#allocation2 + $0x20] sm:$0xff]
        %v3525 = vld [vmem:[#allocation2 + $0x28] sm:$0xff]
        %v3526 = vld [vmem:[#allocation2 + $0x30] sm:$0xff]
        %v3527 = vld [vmem:[#allocation2 + $0x38] sm:$0xff]
        %v3528 = vld [vmem:[#allocation2 + $0x40] sm:$0xff]
        %v3529 = vld [vmem:[#allocation2 + $0x48] sm:$0xff]
        %v3530 = vld [vmem:[#allocation2 + $0x50] sm:$0xff]
        %v3531 = vld [vmem:[#allocation2 + $0x58] sm:$0xff]
        %v3532 = vld [vmem:[#allocation2 + $0x60] sm:$0xff]
        %v3533 = vld [vmem:[#allocation2 + $0x68] sm:$0xff]
        %v3534 = vld [vmem:[#allocation2 + $0x70] sm:$0xff]
        %v3535 = vld [vmem:[#allocation2 + $0x78] sm:$0xff]
        %v3536 = vld [vmem:[#allocation2 + $0x80] sm:$0xff]
        %v3537 = vld [vmem:[#allocation2 + $0x88] sm:$0xff]
        %v3538 = vld [vmem:[#allocation2 + $0x90] sm:$0xff]
        %v3539 = vld [vmem:[#allocation2 + $0x98] sm:$0xff]
        %v3540 = vld [vmem:[#allocation2 + $0xa0] sm:$0xff]
        %v3541 = vld [vmem:[#allocation2 + $0xa8] sm:$0xff]
        %v3542 = vld [vmem:[#allocation2 + $0xb0] sm:$0xff]
        %v3543 = vld [vmem:[#allocation2 + $0xb8] sm:$0xff]
        %v3544 = vld [vmem:[#allocation2 + $0xc0] sm:$0xff]
        %v3545 = vld [vmem:[#allocation2 + $0xc8] sm:$0xff]
        %v3546 = vld [vmem:[#allocation2 + $0xd0] sm:$0xff]
        %v3547 = vld [vmem:[#allocation2 + $0xd8] sm:$0xff]
        %v3548 = vld [vmem:[#allocation2 + $0xe0] sm:$0xff]
        %v3549 = vld [vmem:[#allocation2 + $0xe8] sm:$0xff]
        %v3550 = vld [vmem:[#allocation2 + $0xf0] sm:$0xff]
        %v3551 = vld [vmem:[#allocation2 + $0xf8] sm:$0xff]
        %v3552 = vld [vmem:[#allocation2 + $0x100] sm:$0xff]
        %v3553 = vld [vmem:[#allocation2 + $0x108] sm:$0xff]
        %v3554 = vld [vmem:[#allocation2 + $0x110] sm:$0xff]
        %v3555 = vld [vmem:[#allocation2 + $0x118] sm:$0xff]
        %v3556 = vld [vmem:[#allocation2 + $0x120] sm:$0xff]
        %v3557 = vld [vmem:[#allocation2 + $0x128] sm:$0xff]
        %v3558 = vld [vmem:[#allocation2 + $0x130] sm:$0xff]
        %v3559 = vld [vmem:[#allocation2 + $0x138] sm:$0xff]
        %v3560 = vld [vmem:[#allocation2 + $0x140] sm:$0xff]
        %v3561 = vld [vmem:[#allocation2 + $0x148] sm:$0xff]
        %v3562 = vld [vmem:[#allocation2 + $0x150] sm:$0xff]
        %v3563 = vld [vmem:[#allocation2 + $0x158] sm:$0xff]
        %v3564 = vld [vmem:[#allocation2 + $0x160] sm:$0xff]
        %v3565 = vld [vmem:[#allocation2 + $0x168] sm:$0xff]
        %v3566 = vld [vmem:[#allocation2 + $0x170] sm:$0xff]
        %v3567 = vld [vmem:[#allocation2 + $0x178] sm:$0xff]
        %v3568 = vld [vmem:[#allocation2 + $0x180] sm:$0xff]
        %v3569 = vld [vmem:[#allocation2 + $0x188] sm:$0xff]
        %v3570 = vld [vmem:[#allocation2 + $0x190] sm:$0xff]
        %v3571 = vld [vmem:[#allocation2 + $0x198] sm:$0xff]
        %v3572 = vld [vmem:[#allocation2 + $0x1a0] sm:$0xff]
        %v3573 = vld [vmem:[#allocation2 + $0x1a8] sm:$0xff]
        %v3574 = vld [vmem:[#allocation2 + $0x1b0] sm:$0xff]
        %v3575 = vld [vmem:[#allocation2 + $0x1b8] sm:$0xff]
        %v3576 = vld [vmem:[#allocation2 + $0x1c0] sm:$0xff]
        %v3577 = vld [vmem:[#allocation2 + $0x1c8] sm:$0xff]
        %v3578 = vld [vmem:[#allocation2 + $0x1d0] sm:$0xff]
        %v3579 = vld [vmem:[#allocation2 + $0x1d8] sm:$0xff]
        %v3580 = vld [vmem:[#allocation2 + $0x1e0] sm:$0xff]
        %v3581 = vld [vmem:[#allocation2 + $0x1e8] sm:$0xff]
        %v3582 = vld [vmem:[#allocation2 + $0x1f0] sm:$0xff]
        %v3583 = vld [vmem:[#allocation2 + $0x1f8] sm:$0xff]
        %v3584 = vld [vmem:[#allocation2 + $0x200] sm:$0xff]
        %v3585 = vld [vmem:[#allocation2 + $0x208] sm:$0xff]
        %v3586 = vld [vmem:[#allocation2 + $0x210] sm:$0xff]
        %v3587 = vld [vmem:[#allocation2 + $0x218] sm:$0xff]
        %3652 = vrot.lane.b32.xlu0 %v3524, 96
        %v3653 = vpop.permute.xlu0 %3652
        %3654 = vrot.lane.b32.xlu0 %v3525, 96
        %v3655 = vpop.permute.xlu0 %3654
        %3656 = vrot.lane.b32.xlu0 %v3526, 96
        %v3657 = vpop.permute.xlu0 %3656
        %3658 = vrot.lane.b32.xlu0 %v3527, 96
        %v3659 = vpop.permute.xlu0 %3658
        %3660 = vrot.lane.b32.xlu0 %v3528, 96
        %v3661 = vpop.permute.xlu0 %3660
        %3662 = vrot.lane.b32.xlu0 %v3529, 96
        %v3663 = vpop.permute.xlu0 %3662
        %3664 = vrot.lane.b32.xlu0 %v3530, 96
        %v3665 = vpop.permute.xlu0 %3664
        %3666 = vrot.lane.b32.xlu0 %v3531, 96
        %v3667 = vpop.permute.xlu0 %3666
        %3668 = vrot.lane.b32.xlu0 %v3532, 96
        %v3669 = vpop.permute.xlu0 %3668
        %3670 = vrot.lane.b32.xlu0 %v3533, 96
        %v3671 = vpop.permute.xlu0 %3670
        %3672 = vrot.lane.b32.xlu0 %v3534, 96
        %v3673 = vpop.permute.xlu0 %3672
        %3674 = vrot.lane.b32.xlu0 %v3535, 96
        %v3675 = vpop.permute.xlu0 %3674
        %3676 = vrot.lane.b32.xlu0 %v3536, 96
        %v3677 = vpop.permute.xlu0 %3676
        %3678 = vrot.lane.b32.xlu0 %v3537, 96
        %v3679 = vpop.permute.xlu0 %3678
        %3680 = vrot.lane.b32.xlu0 %v3538, 96
        %v3681 = vpop.permute.xlu0 %3680
        %3682 = vrot.lane.b32.xlu0 %v3539, 96
        %v3683 = vpop.permute.xlu0 %3682
        %3684 = vrot.lane.b32.xlu0 %v3540, 96
        %v3685 = vpop.permute.xlu0 %3684
        %3686 = vrot.lane.b32.xlu0 %v3541, 96
        %v3687 = vpop.permute.xlu0 %3686
        %3688 = vrot.lane.b32.xlu0 %v3542, 96
        %v3689 = vpop.permute.xlu0 %3688
        %3690 = vrot.lane.b32.xlu0 %v3543, 96
        %v3691 = vpop.permute.xlu0 %3690
        %3692 = vrot.lane.b32.xlu0 %v3544, 96
        %v3693 = vpop.permute.xlu0 %3692
        %3694 = vrot.lane.b32.xlu0 %v3545, 96
        %v3695 = vpop.permute.xlu0 %3694
        %3696 = vrot.lane.b32.xlu0 %v3546, 96
        %v3697 = vpop.permute.xlu0 %3696
        %3698 = vrot.lane.b32.xlu0 %v3547, 96
        %v3699 = vpop.permute.xlu0 %3698
        %3700 = vrot.lane.b32.xlu0 %v3548, 96
        %v3701 = vpop.permute.xlu0 %3700
        %3702 = vrot.lane.b32.xlu0 %v3549, 96
        %v3703 = vpop.permute.xlu0 %3702
        %3704 = vrot.lane.b32.xlu0 %v3550, 96
        %v3705 = vpop.permute.xlu0 %3704
        %3706 = vrot.lane.b32.xlu0 %v3551, 96
        %v3707 = vpop.permute.xlu0 %3706
        %3708 = vrot.lane.b32.xlu0 %v3552, 96
        %v3709 = vpop.permute.xlu0 %3708
        %3710 = vrot.lane.b32.xlu0 %v3553, 96
        %v3711 = vpop.permute.xlu0 %3710
        %3712 = vrot.lane.b32.xlu0 %v3554, 96
        %v3713 = vpop.permute.xlu0 %3712
        %3714 = vrot.lane.b32.xlu0 %v3555, 96
        %v3715 = vpop.permute.xlu0 %3714
        %3716 = vrot.lane.b32.xlu0 %v3556, 96
        %v3717 = vpop.permute.xlu0 %3716
        %3718 = vrot.lane.b32.xlu0 %v3557, 96
        %v3719 = vpop.permute.xlu0 %3718
        %3720 = vrot.lane.b32.xlu0 %v3558, 96
        %v3721 = vpop.permute.xlu0 %3720
        %3722 = vrot.lane.b32.xlu0 %v3559, 96
        %v3723 = vpop.permute.xlu0 %3722
        %3724 = vrot.lane.b32.xlu0 %v3560, 96
        %v3725 = vpop.permute.xlu0 %3724
        %3726 = vrot.lane.b32.xlu0 %v3561, 96
        %v3727 = vpop.permute.xlu0 %3726
        %3728 = vrot.lane.b32.xlu0 %v3562, 96
        %v3729 = vpop.permute.xlu0 %3728
        %3730 = vrot.lane.b32.xlu0 %v3563, 96
        %v3731 = vpop.permute.xlu0 %3730
        %3732 = vrot.lane.b32.xlu0 %v3564, 96
        %v3733 = vpop.permute.xlu0 %3732
        %3734 = vrot.lane.b32.xlu0 %v3565, 96
        %v3735 = vpop.permute.xlu0 %3734
        %3736 = vrot.lane.b32.xlu0 %v3566, 96
        %v3737 = vpop.permute.xlu0 %3736
        %3738 = vrot.lane.b32.xlu0 %v3567, 96
        %v3739 = vpop.permute.xlu0 %3738
        %3740 = vrot.lane.b32.xlu0 %v3568, 96
        %v3741 = vpop.permute.xlu0 %3740
        %3742 = vrot.lane.b32.xlu0 %v3569, 96
        %v3743 = vpop.permute.xlu0 %3742
        %3744 = vrot.lane.b32.xlu0 %v3570, 96
        %v3745 = vpop.permute.xlu0 %3744
        %3746 = vrot.lane.b32.xlu0 %v3571, 96
        %v3747 = vpop.permute.xlu0 %3746
        %3748 = vrot.lane.b32.xlu0 %v3572, 96
        %v3749 = vpop.permute.xlu0 %3748
        %3750 = vrot.lane.b32.xlu0 %v3573, 96
        %v3751 = vpop.permute.xlu0 %3750
        %3752 = vrot.lane.b32.xlu0 %v3574, 96
        %v3753 = vpop.permute.xlu0 %3752
        %3754 = vrot.lane.b32.xlu0 %v3575, 96
        %v3755 = vpop.permute.xlu0 %3754
        %3756 = vrot.lane.b32.xlu0 %v3576, 96
        %v3757 = vpop.permute.xlu0 %3756
        %3758 = vrot.lane.b32.xlu0 %v3577, 96
        %v3759 = vpop.permute.xlu0 %3758
        %3760 = vrot.lane.b32.xlu0 %v3578, 96
        %v3761 = vpop.permute.xlu0 %3760
        %3762 = vrot.lane.b32.xlu0 %v3579, 96
        %v3763 = vpop.permute.xlu0 %3762
        %3764 = vrot.lane.b32.xlu0 %v3580, 96
        %v3765 = vpop.permute.xlu0 %3764
        %3766 = vrot.lane.b32.xlu0 %v3581, 96
        %v3767 = vpop.permute.xlu0 %3766
        %3768 = vrot.lane.b32.xlu0 %v3582, 96
        %v3769 = vpop.permute.xlu0 %3768
        %3770 = vrot.lane.b32.xlu0 %v3583, 96
        %v3771 = vpop.permute.xlu0 %3770
        %3772 = vrot.lane.b32.xlu0 %v3584, 96
        %v3773 = vpop.permute.xlu0 %3772
        %3774 = vrot.lane.b32.xlu0 %v3585, 96
        %v3775 = vpop.permute.xlu0 %3774
        %3776 = vrot.lane.b32.xlu0 %v3586, 96
        %v3777 = vpop.permute.xlu0 %3776
        %3778 = vrot.lane.b32.xlu0 %v3587, 96
        %v3779 = vpop.permute.xlu0 %3778
        %vm3844 = vcmask 917248
        %3845 = vst.msk [vmem:[#allocation3] sm:$0xff] %vm3844, %v3653
        %3846 = vst.msk [vmem:[#allocation3 + $0x10] sm:$0xff] %vm3844, %v3655
        %3847 = vst.msk [vmem:[#allocation3 + $0x20] sm:$0xff] %vm3844, %v3657
        %3848 = vst.msk [vmem:[#allocation3 + $0x30] sm:$0xff] %vm3844, %v3659
        %3849 = vst.msk [vmem:[#allocation3 + $0x40] sm:$0xff] %vm3844, %v3661
        %3850 = vst.msk [vmem:[#allocation3 + $0x50] sm:$0xff] %vm3844, %v3663
        %3851 = vst.msk [vmem:[#allocation3 + $0x60] sm:$0xff] %vm3844, %v3665
        %3852 = vst.msk [vmem:[#allocation3 + $0x70] sm:$0xff] %vm3844, %v3667
        %3853 = vst.msk [vmem:[#allocation3 + $0x80] sm:$0xff] %vm3844, %v3669
        %3854 = vst.msk [vmem:[#allocation3 + $0x90] sm:$0xff] %vm3844, %v3671
        %3855 = vst.msk [vmem:[#allocation3 + $0xa0] sm:$0xff] %vm3844, %v3673
        %3856 = vst.msk [vmem:[#allocation3 + $0xb0] sm:$0xff] %vm3844, %v3675
        %3857 = vst.msk [vmem:[#allocation3 + $0xc0] sm:$0xff] %vm3844, %v3677
        %3858 = vst.msk [vmem:[#allocation3 + $0xd0] sm:$0xff] %vm3844, %v3679
        %3859 = vst.msk [vmem:[#allocation3 + $0xe0] sm:$0xff] %vm3844, %v3681
        %3860 = vst.msk [vmem:[#allocation3 + $0xf0] sm:$0xff] %vm3844, %v3683
        %3861 = vst.msk [vmem:[#allocation3 + $0x100] sm:$0xff] %vm3844, %v3685
        %3862 = vst.msk [vmem:[#allocation3 + $0x110] sm:$0xff] %vm3844, %v3687
        %3863 = vst.msk [vmem:[#allocation3 + $0x120] sm:$0xff] %vm3844, %v3689
        %3864 = vst.msk [vmem:[#allocation3 + $0x130] sm:$0xff] %vm3844, %v3691
        %3865 = vst.msk [vmem:[#allocation3 + $0x140] sm:$0xff] %vm3844, %v3693
        %3866 = vst.msk [vmem:[#allocation3 + $0x150] sm:$0xff] %vm3844, %v3695
        %3867 = vst.msk [vmem:[#allocation3 + $0x160] sm:$0xff] %vm3844, %v3697
        %3868 = vst.msk [vmem:[#allocation3 + $0x170] sm:$0xff] %vm3844, %v3699
        %3869 = vst.msk [vmem:[#allocation3 + $0x180] sm:$0xff] %vm3844, %v3701
        %3870 = vst.msk [vmem:[#allocation3 + $0x190] sm:$0xff] %vm3844, %v3703
        %3871 = vst.msk [vmem:[#allocation3 + $0x1a0] sm:$0xff] %vm3844, %v3705
        %3872 = vst.msk [vmem:[#allocation3 + $0x1b0] sm:$0xff] %vm3844, %v3707
        %3873 = vst.msk [vmem:[#allocation3 + $0x1c0] sm:$0xff] %vm3844, %v3709
        %3874 = vst.msk [vmem:[#allocation3 + $0x1d0] sm:$0xff] %vm3844, %v3711
        %3875 = vst.msk [vmem:[#allocation3 + $0x1e0] sm:$0xff] %vm3844, %v3713
        %3876 = vst.msk [vmem:[#allocation3 + $0x1f0] sm:$0xff] %vm3844, %v3715
        %3877 = vst.msk [vmem:[#allocation3 + $0x200] sm:$0xff] %vm3844, %v3717
        %3878 = vst.msk [vmem:[#allocation3 + $0x210] sm:$0xff] %vm3844, %v3719
        %3879 = vst.msk [vmem:[#allocation3 + $0x220] sm:$0xff] %vm3844, %v3721
        %3880 = vst.msk [vmem:[#allocation3 + $0x230] sm:$0xff] %vm3844, %v3723
        %3881 = vst.msk [vmem:[#allocation3 + $0x240] sm:$0xff] %vm3844, %v3725
        %3882 = vst.msk [vmem:[#allocation3 + $0x250] sm:$0xff] %vm3844, %v3727
        %3883 = vst.msk [vmem:[#allocation3 + $0x260] sm:$0xff] %vm3844, %v3729
        %3884 = vst.msk [vmem:[#allocation3 + $0x270] sm:$0xff] %vm3844, %v3731
        %3885 = vst.msk [vmem:[#allocation3 + $0x280] sm:$0xff] %vm3844, %v3733
        %3886 = vst.msk [vmem:[#allocation3 + $0x290] sm:$0xff] %vm3844, %v3735
        %3887 = vst.msk [vmem:[#allocation3 + $0x2a0] sm:$0xff] %vm3844, %v3737
        %3888 = vst.msk [vmem:[#allocation3 + $0x2b0] sm:$0xff] %vm3844, %v3739
        %3889 = vst.msk [vmem:[#allocation3 + $0x2c0] sm:$0xff] %vm3844, %v3741
        %3890 = vst.msk [vmem:[#allocation3 + $0x2d0] sm:$0xff] %vm3844, %v3743
        %3891 = vst.msk [vmem:[#allocation3 + $0x2e0] sm:$0xff] %vm3844, %v3745
        %3892 = vst.msk [vmem:[#allocation3 + $0x2f0] sm:$0xff] %vm3844, %v3747
        %3893 = vst.msk [vmem:[#allocation3 + $0x300] sm:$0xff] %vm3844, %v3749
        %3894 = vst.msk [vmem:[#allocation3 + $0x310] sm:$0xff] %vm3844, %v3751
        %3895 = vst.msk [vmem:[#allocation3 + $0x320] sm:$0xff] %vm3844, %v3753
        %3896 = vst.msk [vmem:[#allocation3 + $0x330] sm:$0xff] %vm3844, %v3755
        %3897 = vst.msk [vmem:[#allocation3 + $0x340] sm:$0xff] %vm3844, %v3757
        %3898 = vst.msk [vmem:[#allocation3 + $0x350] sm:$0xff] %vm3844, %v3759
        %3899 = vst.msk [vmem:[#allocation3 + $0x360] sm:$0xff] %vm3844, %v3761
        %3900 = vst.msk [vmem:[#allocation3 + $0x370] sm:$0xff] %vm3844, %v3763
        %3901 = vst.msk [vmem:[#allocation3 + $0x380] sm:$0xff] %vm3844, %v3765
        %3902 = vst.msk [vmem:[#allocation3 + $0x390] sm:$0xff] %vm3844, %v3767
        %3903 = vst.msk [vmem:[#allocation3 + $0x3a0] sm:$0xff] %vm3844, %v3769
        %3904 = vst.msk [vmem:[#allocation3 + $0x3b0] sm:$0xff] %vm3844, %v3771
        %3905 = vst.msk [vmem:[#allocation3 + $0x3c0] sm:$0xff] %vm3844, %v3773
        %3906 = vst.msk [vmem:[#allocation3 + $0x3d0] sm:$0xff] %vm3844, %v3775
        %3907 = vst.msk [vmem:[#allocation3 + $0x3e0] sm:$0xff] %vm3844, %v3777
        %3908 = vst.msk [vmem:[#allocation3 + $0x3f0] sm:$0xff] %vm3844, %v3779
        %v3909 = vld [vmem:[#allocation2 + $0x21] sm:$0xff]
        %v3910 = vld [vmem:[#allocation2 + $0x29] sm:$0xff]
        %v3911 = vld [vmem:[#allocation2 + $0x31] sm:$0xff]
        %v3912 = vld [vmem:[#allocation2 + $0x39] sm:$0xff]
        %v3913 = vld [vmem:[#allocation2 + $0x41] sm:$0xff]
        %v3914 = vld [vmem:[#allocation2 + $0x49] sm:$0xff]
        %v3915 = vld [vmem:[#allocation2 + $0x51] sm:$0xff]
        %v3916 = vld [vmem:[#allocation2 + $0x59] sm:$0xff]
        %v3917 = vld [vmem:[#allocation2 + $0x61] sm:$0xff]
        %v3918 = vld [vmem:[#allocation2 + $0x69] sm:$0xff]
        %v3919 = vld [vmem:[#allocation2 + $0x71] sm:$0xff]
        %v3920 = vld [vmem:[#allocation2 + $0x79] sm:$0xff]
        %v3921 = vld [vmem:[#allocation2 + $0x81] sm:$0xff]
        %v3922 = vld [vmem:[#allocation2 + $0x89] sm:$0xff]
        %v3923 = vld [vmem:[#allocation2 + $0x91] sm:$0xff]
        %v3924 = vld [vmem:[#allocation2 + $0x99] sm:$0xff]
        %v3925 = vld [vmem:[#allocation2 + $0xa1] sm:$0xff]
        %v3926 = vld [vmem:[#allocation2 + $0xa9] sm:$0xff]
        %v3927 = vld [vmem:[#allocation2 + $0xb1] sm:$0xff]
        %v3928 = vld [vmem:[#allocation2 + $0xb9] sm:$0xff]
        %v3929 = vld [vmem:[#allocation2 + $0xc1] sm:$0xff]
        %v3930 = vld [vmem:[#allocation2 + $0xc9] sm:$0xff]
        %v3931 = vld [vmem:[#allocation2 + $0xd1] sm:$0xff]
        %v3932 = vld [vmem:[#allocation2 + $0xd9] sm:$0xff]
        %v3933 = vld [vmem:[#allocation2 + $0xe1] sm:$0xff]
        %v3934 = vld [vmem:[#allocation2 + $0xe9] sm:$0xff]
        %v3935 = vld [vmem:[#allocation2 + $0xf1] sm:$0xff]
        %v3936 = vld [vmem:[#allocation2 + $0xf9] sm:$0xff]
        %v3937 = vld [vmem:[#allocation2 + $0x101] sm:$0xff]
        %v3938 = vld [vmem:[#allocation2 + $0x109] sm:$0xff]
        %v3939 = vld [vmem:[#allocation2 + $0x111] sm:$0xff]
        %v3940 = vld [vmem:[#allocation2 + $0x119] sm:$0xff]
        %v3941 = vld [vmem:[#allocation2 + $0x121] sm:$0xff]
        %v3942 = vld [vmem:[#allocation2 + $0x129] sm:$0xff]
        %v3943 = vld [vmem:[#allocation2 + $0x131] sm:$0xff]
        %v3944 = vld [vmem:[#allocation2 + $0x139] sm:$0xff]
        %v3945 = vld [vmem:[#allocation2 + $0x141] sm:$0xff]
        %v3946 = vld [vmem:[#allocation2 + $0x149] sm:$0xff]
        %v3947 = vld [vmem:[#allocation2 + $0x151] sm:$0xff]
        %v3948 = vld [vmem:[#allocation2 + $0x159] sm:$0xff]
        %v3949 = vld [vmem:[#allocation2 + $0x161] sm:$0xff]
        %v3950 = vld [vmem:[#allocation2 + $0x169] sm:$0xff]
        %v3951 = vld [vmem:[#allocation2 + $0x171] sm:$0xff]
        %v3952 = vld [vmem:[#allocation2 + $0x179] sm:$0xff]
        %v3953 = vld [vmem:[#allocation2 + $0x181] sm:$0xff]
        %v3954 = vld [vmem:[#allocation2 + $0x189] sm:$0xff]
        %v3955 = vld [vmem:[#allocation2 + $0x191] sm:$0xff]
        %v3956 = vld [vmem:[#allocation2 + $0x199] sm:$0xff]
        %v3957 = vld [vmem:[#allocation2 + $0x1a1] sm:$0xff]
        %v3958 = vld [vmem:[#allocation2 + $0x1a9] sm:$0xff]
        %v3959 = vld [vmem:[#allocation2 + $0x1b1] sm:$0xff]
        %v3960 = vld [vmem:[#allocation2 + $0x1b9] sm:$0xff]
        %v3961 = vld [vmem:[#allocation2 + $0x1c1] sm:$0xff]
        %v3962 = vld [vmem:[#allocation2 + $0x1c9] sm:$0xff]
        %v3963 = vld [vmem:[#allocation2 + $0x1d1] sm:$0xff]
        %v3964 = vld [vmem:[#allocation2 + $0x1d9] sm:$0xff]
        %v3965 = vld [vmem:[#allocation2 + $0x1e1] sm:$0xff]
        %v3966 = vld [vmem:[#allocation2 + $0x1e9] sm:$0xff]
        %v3967 = vld [vmem:[#allocation2 + $0x1f1] sm:$0xff]
        %v3968 = vld [vmem:[#allocation2 + $0x1f9] sm:$0xff]
        %v3969 = vld [vmem:[#allocation2 + $0x201] sm:$0xff]
        %v3970 = vld [vmem:[#allocation2 + $0x209] sm:$0xff]
        %v3971 = vld [vmem:[#allocation2 + $0x211] sm:$0xff]
        %v3972 = vld [vmem:[#allocation2 + $0x219] sm:$0xff]
        %4037 = vrot.lane.b32.xlu0 %v3909, 112
        %v4038 = vpop.permute.xlu0 %4037
        %4039 = vrot.lane.b32.xlu0 %v3910, 112
        %v4040 = vpop.permute.xlu0 %4039
        %4041 = vrot.lane.b32.xlu0 %v3911, 112
        %v4042 = vpop.permute.xlu0 %4041
        %4043 = vrot.lane.b32.xlu0 %v3912, 112
        %v4044 = vpop.permute.xlu0 %4043
        %4045 = vrot.lane.b32.xlu0 %v3913, 112
        %v4046 = vpop.permute.xlu0 %4045
        %4047 = vrot.lane.b32.xlu0 %v3914, 112
        %v4048 = vpop.permute.xlu0 %4047
        %4049 = vrot.lane.b32.xlu0 %v3915, 112
        %v4050 = vpop.permute.xlu0 %4049
        %4051 = vrot.lane.b32.xlu0 %v3916, 112
        %v4052 = vpop.permute.xlu0 %4051
        %4053 = vrot.lane.b32.xlu0 %v3917, 112
        %v4054 = vpop.permute.xlu0 %4053
        %4055 = vrot.lane.b32.xlu0 %v3918, 112
        %v4056 = vpop.permute.xlu0 %4055
        %4057 = vrot.lane.b32.xlu0 %v3919, 112
        %v4058 = vpop.permute.xlu0 %4057
        %4059 = vrot.lane.b32.xlu0 %v3920, 112
        %v4060 = vpop.permute.xlu0 %4059
        %4061 = vrot.lane.b32.xlu0 %v3921, 112
        %v4062 = vpop.permute.xlu0 %4061
        %4063 = vrot.lane.b32.xlu0 %v3922, 112
        %v4064 = vpop.permute.xlu0 %4063
        %4065 = vrot.lane.b32.xlu0 %v3923, 112
        %v4066 = vpop.permute.xlu0 %4065
        %4067 = vrot.lane.b32.xlu0 %v3924, 112
        %v4068 = vpop.permute.xlu0 %4067
        %4069 = vrot.lane.b32.xlu0 %v3925, 112
        %v4070 = vpop.permute.xlu0 %4069
        %4071 = vrot.lane.b32.xlu0 %v3926, 112
        %v4072 = vpop.permute.xlu0 %4071
        %4073 = vrot.lane.b32.xlu0 %v3927, 112
        %v4074 = vpop.permute.xlu0 %4073
        %4075 = vrot.lane.b32.xlu0 %v3928, 112
        %v4076 = vpop.permute.xlu0 %4075
        %4077 = vrot.lane.b32.xlu0 %v3929, 112
        %v4078 = vpop.permute.xlu0 %4077
        %4079 = vrot.lane.b32.xlu0 %v3930, 112
        %v4080 = vpop.permute.xlu0 %4079
        %4081 = vrot.lane.b32.xlu0 %v3931, 112
        %v4082 = vpop.permute.xlu0 %4081
        %4083 = vrot.lane.b32.xlu0 %v3932, 112
        %v4084 = vpop.permute.xlu0 %4083
        %4085 = vrot.lane.b32.xlu0 %v3933, 112
        %v4086 = vpop.permute.xlu0 %4085
        %4087 = vrot.lane.b32.xlu0 %v3934, 112
        %v4088 = vpop.permute.xlu0 %4087
        %4089 = vrot.lane.b32.xlu0 %v3935, 112
        %v4090 = vpop.permute.xlu0 %4089
        %4091 = vrot.lane.b32.xlu0 %v3936, 112
        %v4092 = vpop.permute.xlu0 %4091
        %4093 = vrot.lane.b32.xlu0 %v3937, 112
        %v4094 = vpop.permute.xlu0 %4093
        %4095 = vrot.lane.b32.xlu0 %v3938, 112
        %v4096 = vpop.permute.xlu0 %4095
        %4097 = vrot.lane.b32.xlu0 %v3939, 112
        %v4098 = vpop.permute.xlu0 %4097
        %4099 = vrot.lane.b32.xlu0 %v3940, 112
        %v4100 = vpop.permute.xlu0 %4099
        %4101 = vrot.lane.b32.xlu0 %v3941, 112
        %v4102 = vpop.permute.xlu0 %4101
        %4103 = vrot.lane.b32.xlu0 %v3942, 112
        %v4104 = vpop.permute.xlu0 %4103
        %4105 = vrot.lane.b32.xlu0 %v3943, 112
        %v4106 = vpop.permute.xlu0 %4105
        %4107 = vrot.lane.b32.xlu0 %v3944, 112
        %v4108 = vpop.permute.xlu0 %4107
        %4109 = vrot.lane.b32.xlu0 %v3945, 112
        %v4110 = vpop.permute.xlu0 %4109
        %4111 = vrot.lane.b32.xlu0 %v3946, 112
        %v4112 = vpop.permute.xlu0 %4111
        %4113 = vrot.lane.b32.xlu0 %v3947, 112
        %v4114 = vpop.permute.xlu0 %4113
        %4115 = vrot.lane.b32.xlu0 %v3948, 112
        %v4116 = vpop.permute.xlu0 %4115
        %4117 = vrot.lane.b32.xlu0 %v3949, 112
        %v4118 = vpop.permute.xlu0 %4117
        %4119 = vrot.lane.b32.xlu0 %v3950, 112
        %v4120 = vpop.permute.xlu0 %4119
        %4121 = vrot.lane.b32.xlu0 %v3951, 112
        %v4122 = vpop.permute.xlu0 %4121
        %4123 = vrot.lane.b32.xlu0 %v3952, 112
        %v4124 = vpop.permute.xlu0 %4123
        %4125 = vrot.lane.b32.xlu0 %v3953, 112
        %v4126 = vpop.permute.xlu0 %4125
        %4127 = vrot.lane.b32.xlu0 %v3954, 112
        %v4128 = vpop.permute.xlu0 %4127
        %4129 = vrot.lane.b32.xlu0 %v3955, 112
        %v4130 = vpop.permute.xlu0 %4129
        %4131 = vrot.lane.b32.xlu0 %v3956, 112
        %v4132 = vpop.permute.xlu0 %4131
        %4133 = vrot.lane.b32.xlu0 %v3957, 112
        %v4134 = vpop.permute.xlu0 %4133
        %4135 = vrot.lane.b32.xlu0 %v3958, 112
        %v4136 = vpop.permute.xlu0 %4135
        %4137 = vrot.lane.b32.xlu0 %v3959, 112
        %v4138 = vpop.permute.xlu0 %4137
        %4139 = vrot.lane.b32.xlu0 %v3960, 112
        %v4140 = vpop.permute.xlu0 %4139
        %4141 = vrot.lane.b32.xlu0 %v3961, 112
        %v4142 = vpop.permute.xlu0 %4141
        %4143 = vrot.lane.b32.xlu0 %v3962, 112
        %v4144 = vpop.permute.xlu0 %4143
        %4145 = vrot.lane.b32.xlu0 %v3963, 112
        %v4146 = vpop.permute.xlu0 %4145
        %4147 = vrot.lane.b32.xlu0 %v3964, 112
        %v4148 = vpop.permute.xlu0 %4147
        %4149 = vrot.lane.b32.xlu0 %v3965, 112
        %v4150 = vpop.permute.xlu0 %4149
        %4151 = vrot.lane.b32.xlu0 %v3966, 112
        %v4152 = vpop.permute.xlu0 %4151
        %4153 = vrot.lane.b32.xlu0 %v3967, 112
        %v4154 = vpop.permute.xlu0 %4153
        %4155 = vrot.lane.b32.xlu0 %v3968, 112
        %v4156 = vpop.permute.xlu0 %4155
        %4157 = vrot.lane.b32.xlu0 %v3969, 112
        %v4158 = vpop.permute.xlu0 %4157
        %4159 = vrot.lane.b32.xlu0 %v3970, 112
        %v4160 = vpop.permute.xlu0 %4159
        %4161 = vrot.lane.b32.xlu0 %v3971, 112
        %v4162 = vpop.permute.xlu0 %4161
        %4163 = vrot.lane.b32.xlu0 %v3972, 112
        %v4164 = vpop.permute.xlu0 %4163
        %vm4229 = vcmask 1048448
        %4230 = vst.msk [vmem:[#allocation3] sm:$0xff] %vm4229, %v4038
        %4231 = vst.msk [vmem:[#allocation3 + $0x10] sm:$0xff] %vm4229, %v4040
        %4232 = vst.msk [vmem:[#allocation3 + $0x20] sm:$0xff] %vm4229, %v4042
        %4233 = vst.msk [vmem:[#allocation3 + $0x30] sm:$0xff] %vm4229, %v4044
        %4234 = vst.msk [vmem:[#allocation3 + $0x40] sm:$0xff] %vm4229, %v4046
        %4235 = vst.msk [vmem:[#allocation3 + $0x50] sm:$0xff] %vm4229, %v4048
        %4236 = vst.msk [vmem:[#allocation3 + $0x60] sm:$0xff] %vm4229, %v4050
        %4237 = vst.msk [vmem:[#allocation3 + $0x70] sm:$0xff] %vm4229, %v4052
        %4238 = vst.msk [vmem:[#allocation3 + $0x80] sm:$0xff] %vm4229, %v4054
        %4239 = vst.msk [vmem:[#allocation3 + $0x90] sm:$0xff] %vm4229, %v4056
        %4240 = vst.msk [vmem:[#allocation3 + $0xa0] sm:$0xff] %vm4229, %v4058
        %4241 = vst.msk [vmem:[#allocation3 + $0xb0] sm:$0xff] %vm4229, %v4060
        %4242 = vst.msk [vmem:[#allocation3 + $0xc0] sm:$0xff] %vm4229, %v4062
        %4243 = vst.msk [vmem:[#allocation3 + $0xd0] sm:$0xff] %vm4229, %v4064
        %4244 = vst.msk [vmem:[#allocation3 + $0xe0] sm:$0xff] %vm4229, %v4066
        %4245 = vst.msk [vmem:[#allocation3 + $0xf0] sm:$0xff] %vm4229, %v4068
        %4246 = vst.msk [vmem:[#allocation3 + $0x100] sm:$0xff] %vm4229, %v4070
        %4247 = vst.msk [vmem:[#allocation3 + $0x110] sm:$0xff] %vm4229, %v4072
        %4248 = vst.msk [vmem:[#allocation3 + $0x120] sm:$0xff] %vm4229, %v4074
        %4249 = vst.msk [vmem:[#allocation3 + $0x130] sm:$0xff] %vm4229, %v4076
        %4250 = vst.msk [vmem:[#allocation3 + $0x140] sm:$0xff] %vm4229, %v4078
        %4251 = vst.msk [vmem:[#allocation3 + $0x150] sm:$0xff] %vm4229, %v4080
        %4252 = vst.msk [vmem:[#allocation3 + $0x160] sm:$0xff] %vm4229, %v4082
        %4253 = vst.msk [vmem:[#allocation3 + $0x170] sm:$0xff] %vm4229, %v4084
        %4254 = vst.msk [vmem:[#allocation3 + $0x180] sm:$0xff] %vm4229, %v4086
        %4255 = vst.msk [vmem:[#allocation3 + $0x190] sm:$0xff] %vm4229, %v4088
        %4256 = vst.msk [vmem:[#allocation3 + $0x1a0] sm:$0xff] %vm4229, %v4090
        %4257 = vst.msk [vmem:[#allocation3 + $0x1b0] sm:$0xff] %vm4229, %v4092
        %4258 = vst.msk [vmem:[#allocation3 + $0x1c0] sm:$0xff] %vm4229, %v4094
        %4259 = vst.msk [vmem:[#allocation3 + $0x1d0] sm:$0xff] %vm4229, %v4096
        %4260 = vst.msk [vmem:[#allocation3 + $0x1e0] sm:$0xff] %vm4229, %v4098
        %4261 = vst.msk [vmem:[#allocation3 + $0x1f0] sm:$0xff] %vm4229, %v4100
        %4262 = vst.msk [vmem:[#allocation3 + $0x200] sm:$0xff] %vm4229, %v4102
        %4263 = vst.msk [vmem:[#allocation3 + $0x210] sm:$0xff] %vm4229, %v4104
        %4264 = vst.msk [vmem:[#allocation3 + $0x220] sm:$0xff] %vm4229, %v4106
        %4265 = vst.msk [vmem:[#allocation3 + $0x230] sm:$0xff] %vm4229, %v4108
        %4266 = vst.msk [vmem:[#allocation3 + $0x240] sm:$0xff] %vm4229, %v4110
        %4267 = vst.msk [vmem:[#allocation3 + $0x250] sm:$0xff] %vm4229, %v4112
        %4268 = vst.msk [vmem:[#allocation3 + $0x260] sm:$0xff] %vm4229, %v4114
        %4269 = vst.msk [vmem:[#allocation3 + $0x270] sm:$0xff] %vm4229, %v4116
        %4270 = vst.msk [vmem:[#allocation3 + $0x280] sm:$0xff] %vm4229, %v4118
        %4271 = vst.msk [vmem:[#allocation3 + $0x290] sm:$0xff] %vm4229, %v4120
        %4272 = vst.msk [vmem:[#allocation3 + $0x2a0] sm:$0xff] %vm4229, %v4122
        %4273 = vst.msk [vmem:[#allocation3 + $0x2b0] sm:$0xff] %vm4229, %v4124
        %4274 = vst.msk [vmem:[#allocation3 + $0x2c0] sm:$0xff] %vm4229, %v4126
        %4275 = vst.msk [vmem:[#allocation3 + $0x2d0] sm:$0xff] %vm4229, %v4128
        %4276 = vst.msk [vmem:[#allocation3 + $0x2e0] sm:$0xff] %vm4229, %v4130
        %4277 = vst.msk [vmem:[#allocation3 + $0x2f0] sm:$0xff] %vm4229, %v4132
        %4278 = vst.msk [vmem:[#allocation3 + $0x300] sm:$0xff] %vm4229, %v4134
        %4279 = vst.msk [vmem:[#allocation3 + $0x310] sm:$0xff] %vm4229, %v4136
        %4280 = vst.msk [vmem:[#allocation3 + $0x320] sm:$0xff] %vm4229, %v4138
        %4281 = vst.msk [vmem:[#allocation3 + $0x330] sm:$0xff] %vm4229, %v4140
        %4282 = vst.msk [vmem:[#allocation3 + $0x340] sm:$0xff] %vm4229, %v4142
        %4283 = vst.msk [vmem:[#allocation3 + $0x350] sm:$0xff] %vm4229, %v4144
        %4284 = vst.msk [vmem:[#allocation3 + $0x360] sm:$0xff] %vm4229, %v4146
        %4285 = vst.msk [vmem:[#allocation3 + $0x370] sm:$0xff] %vm4229, %v4148
        %4286 = vst.msk [vmem:[#allocation3 + $0x380] sm:$0xff] %vm4229, %v4150
        %4287 = vst.msk [vmem:[#allocation3 + $0x390] sm:$0xff] %vm4229, %v4152
        %4288 = vst.msk [vmem:[#allocation3 + $0x3a0] sm:$0xff] %vm4229, %v4154
        %4289 = vst.msk [vmem:[#allocation3 + $0x3b0] sm:$0xff] %vm4229, %v4156
        %4290 = vst.msk [vmem:[#allocation3 + $0x3c0] sm:$0xff] %vm4229, %v4158
        %4291 = vst.msk [vmem:[#allocation3 + $0x3d0] sm:$0xff] %vm4229, %v4160
        %4292 = vst.msk [vmem:[#allocation3 + $0x3e0] sm:$0xff] %vm4229, %v4162
        %4293 = vst.msk [vmem:[#allocation3 + $0x3f0] sm:$0xff] %vm4229, %v4164
        %v4294 = vld [vmem:[#allocation2 + $0x22] sm:$0xff]
        %v4295 = vld [vmem:[#allocation2 + $0x2a] sm:$0xff]
        %v4296 = vld [vmem:[#allocation2 + $0x32] sm:$0xff]
        %v4297 = vld [vmem:[#allocation2 + $0x3a] sm:$0xff]
        %v4298 = vld [vmem:[#allocation2 + $0x42] sm:$0xff]
        %v4299 = vld [vmem:[#allocation2 + $0x4a] sm:$0xff]
        %v4300 = vld [vmem:[#allocation2 + $0x52] sm:$0xff]
        %v4301 = vld [vmem:[#allocation2 + $0x5a] sm:$0xff]
        %v4302 = vld [vmem:[#allocation2 + $0x62] sm:$0xff]
        %v4303 = vld [vmem:[#allocation2 + $0x6a] sm:$0xff]
        %v4304 = vld [vmem:[#allocation2 + $0x72] sm:$0xff]
        %v4305 = vld [vmem:[#allocation2 + $0x7a] sm:$0xff]
        %v4306 = vld [vmem:[#allocation2 + $0x82] sm:$0xff]
        %v4307 = vld [vmem:[#allocation2 + $0x8a] sm:$0xff]
        %v4308 = vld [vmem:[#allocation2 + $0x92] sm:$0xff]
        %v4309 = vld [vmem:[#allocation2 + $0x9a] sm:$0xff]
        %v4310 = vld [vmem:[#allocation2 + $0xa2] sm:$0xff]
        %v4311 = vld [vmem:[#allocation2 + $0xaa] sm:$0xff]
        %v4312 = vld [vmem:[#allocation2 + $0xb2] sm:$0xff]
        %v4313 = vld [vmem:[#allocation2 + $0xba] sm:$0xff]
        %v4314 = vld [vmem:[#allocation2 + $0xc2] sm:$0xff]
        %v4315 = vld [vmem:[#allocation2 + $0xca] sm:$0xff]
        %v4316 = vld [vmem:[#allocation2 + $0xd2] sm:$0xff]
        %v4317 = vld [vmem:[#allocation2 + $0xda] sm:$0xff]
        %v4318 = vld [vmem:[#allocation2 + $0xe2] sm:$0xff]
        %v4319 = vld [vmem:[#allocation2 + $0xea] sm:$0xff]
        %v4320 = vld [vmem:[#allocation2 + $0xf2] sm:$0xff]
        %v4321 = vld [vmem:[#allocation2 + $0xfa] sm:$0xff]
        %v4322 = vld [vmem:[#allocation2 + $0x102] sm:$0xff]
        %v4323 = vld [vmem:[#allocation2 + $0x10a] sm:$0xff]
        %v4324 = vld [vmem:[#allocation2 + $0x112] sm:$0xff]
        %v4325 = vld [vmem:[#allocation2 + $0x11a] sm:$0xff]
        %v4326 = vld [vmem:[#allocation2 + $0x122] sm:$0xff]
        %v4327 = vld [vmem:[#allocation2 + $0x12a] sm:$0xff]
        %v4328 = vld [vmem:[#allocation2 + $0x132] sm:$0xff]
        %v4329 = vld [vmem:[#allocation2 + $0x13a] sm:$0xff]
        %v4330 = vld [vmem:[#allocation2 + $0x142] sm:$0xff]
        %v4331 = vld [vmem:[#allocation2 + $0x14a] sm:$0xff]
        %v4332 = vld [vmem:[#allocation2 + $0x152] sm:$0xff]
        %v4333 = vld [vmem:[#allocation2 + $0x15a] sm:$0xff]
        %v4334 = vld [vmem:[#allocation2 + $0x162] sm:$0xff]
        %v4335 = vld [vmem:[#allocation2 + $0x16a] sm:$0xff]
        %v4336 = vld [vmem:[#allocation2 + $0x172] sm:$0xff]
        %v4337 = vld [vmem:[#allocation2 + $0x17a] sm:$0xff]
        %v4338 = vld [vmem:[#allocation2 + $0x182] sm:$0xff]
        %v4339 = vld [vmem:[#allocation2 + $0x18a] sm:$0xff]
        %v4340 = vld [vmem:[#allocation2 + $0x192] sm:$0xff]
        %v4341 = vld [vmem:[#allocation2 + $0x19a] sm:$0xff]
        %v4342 = vld [vmem:[#allocation2 + $0x1a2] sm:$0xff]
        %v4343 = vld [vmem:[#allocation2 + $0x1aa] sm:$0xff]
        %v4344 = vld [vmem:[#allocation2 + $0x1b2] sm:$0xff]
        %v4345 = vld [vmem:[#allocation2 + $0x1ba] sm:$0xff]
        %v4346 = vld [vmem:[#allocation2 + $0x1c2] sm:$0xff]
        %v4347 = vld [vmem:[#allocation2 + $0x1ca] sm:$0xff]
        %v4348 = vld [vmem:[#allocation2 + $0x1d2] sm:$0xff]
        %v4349 = vld [vmem:[#allocation2 + $0x1da] sm:$0xff]
        %v4350 = vld [vmem:[#allocation2 + $0x1e2] sm:$0xff]
        %v4351 = vld [vmem:[#allocation2 + $0x1ea] sm:$0xff]
        %v4352 = vld [vmem:[#allocation2 + $0x1f2] sm:$0xff]
        %v4353 = vld [vmem:[#allocation2 + $0x1fa] sm:$0xff]
        %v4354 = vld [vmem:[#allocation2 + $0x202] sm:$0xff]
        %v4355 = vld [vmem:[#allocation2 + $0x20a] sm:$0xff]
        %v4356 = vld [vmem:[#allocation2 + $0x212] sm:$0xff]
        %v4357 = vld [vmem:[#allocation2 + $0x21a] sm:$0xff]
        %4358 = vst.msk [vmem:[#allocation3 + $0x8] sm:$0xff] %vm343, %v4294
        %4359 = vst.msk [vmem:[#allocation3 + $0x18] sm:$0xff] %vm343, %v4295
        %4360 = vst.msk [vmem:[#allocation3 + $0x28] sm:$0xff] %vm343, %v4296
        %4361 = vst.msk [vmem:[#allocation3 + $0x38] sm:$0xff] %vm343, %v4297
        %4362 = vst.msk [vmem:[#allocation3 + $0x48] sm:$0xff] %vm343, %v4298
        %4363 = vst.msk [vmem:[#allocation3 + $0x58] sm:$0xff] %vm343, %v4299
        %4364 = vst.msk [vmem:[#allocation3 + $0x68] sm:$0xff] %vm343, %v4300
        %4365 = vst.msk [vmem:[#allocation3 + $0x78] sm:$0xff] %vm343, %v4301
        %4366 = vst.msk [vmem:[#allocation3 + $0x88] sm:$0xff] %vm343, %v4302
        %4367 = vst.msk [vmem:[#allocation3 + $0x98] sm:$0xff] %vm343, %v4303
        %4368 = vst.msk [vmem:[#allocation3 + $0xa8] sm:$0xff] %vm343, %v4304
        %4369 = vst.msk [vmem:[#allocation3 + $0xb8] sm:$0xff] %vm343, %v4305
        %4370 = vst.msk [vmem:[#allocation3 + $0xc8] sm:$0xff] %vm343, %v4306
        %4371 = vst.msk [vmem:[#allocation3 + $0xd8] sm:$0xff] %vm343, %v4307
        %4372 = vst.msk [vmem:[#allocation3 + $0xe8] sm:$0xff] %vm343, %v4308
        %4373 = vst.msk [vmem:[#allocation3 + $0xf8] sm:$0xff] %vm343, %v4309
        %4374 = vst.msk [vmem:[#allocation3 + $0x108] sm:$0xff] %vm343, %v4310
        %4375 = vst.msk [vmem:[#allocation3 + $0x118] sm:$0xff] %vm343, %v4311
        %4376 = vst.msk [vmem:[#allocation3 + $0x128] sm:$0xff] %vm343, %v4312
        %4377 = vst.msk [vmem:[#allocation3 + $0x138] sm:$0xff] %vm343, %v4313
        %4378 = vst.msk [vmem:[#allocation3 + $0x148] sm:$0xff] %vm343, %v4314
        %4379 = vst.msk [vmem:[#allocation3 + $0x158] sm:$0xff] %vm343, %v4315
        %4380 = vst.msk [vmem:[#allocation3 + $0x168] sm:$0xff] %vm343, %v4316
        %4381 = vst.msk [vmem:[#allocation3 + $0x178] sm:$0xff] %vm343, %v4317
        %4382 = vst.msk [vmem:[#allocation3 + $0x188] sm:$0xff] %vm343, %v4318
        %4383 = vst.msk [vmem:[#allocation3 + $0x198] sm:$0xff] %vm343, %v4319
        %4384 = vst.msk [vmem:[#allocation3 + $0x1a8] sm:$0xff] %vm343, %v4320
        %4385 = vst.msk [vmem:[#allocation3 + $0x1b8] sm:$0xff] %vm343, %v4321
        %4386 = vst.msk [vmem:[#allocation3 + $0x1c8] sm:$0xff] %vm343, %v4322
        %4387 = vst.msk [vmem:[#allocation3 + $0x1d8] sm:$0xff] %vm343, %v4323
        %4388 = vst.msk [vmem:[#allocation3 + $0x1e8] sm:$0xff] %vm343, %v4324
        %4389 = vst.msk [vmem:[#allocation3 + $0x1f8] sm:$0xff] %vm343, %v4325
        %4390 = vst.msk [vmem:[#allocation3 + $0x208] sm:$0xff] %vm343, %v4326
        %4391 = vst.msk [vmem:[#allocation3 + $0x218] sm:$0xff] %vm343, %v4327
        %4392 = vst.msk [vmem:[#allocation3 + $0x228] sm:$0xff] %vm343, %v4328
        %4393 = vst.msk [vmem:[#allocation3 + $0x238] sm:$0xff] %vm343, %v4329
        %4394 = vst.msk [vmem:[#allocation3 + $0x248] sm:$0xff] %vm343, %v4330
        %4395 = vst.msk [vmem:[#allocation3 + $0x258] sm:$0xff] %vm343, %v4331
        %4396 = vst.msk [vmem:[#allocation3 + $0x268] sm:$0xff] %vm343, %v4332
        %4397 = vst.msk [vmem:[#allocation3 + $0x278] sm:$0xff] %vm343, %v4333
        %4398 = vst.msk [vmem:[#allocation3 + $0x288] sm:$0xff] %vm343, %v4334
        %4399 = vst.msk [vmem:[#allocation3 + $0x298] sm:$0xff] %vm343, %v4335
        %4400 = vst.msk [vmem:[#allocation3 + $0x2a8] sm:$0xff] %vm343, %v4336
        %4401 = vst.msk [vmem:[#allocation3 + $0x2b8] sm:$0xff] %vm343, %v4337
        %4402 = vst.msk [vmem:[#allocation3 + $0x2c8] sm:$0xff] %vm343, %v4338
        %4403 = vst.msk [vmem:[#allocation3 + $0x2d8] sm:$0xff] %vm343, %v4339
        %4404 = vst.msk [vmem:[#allocation3 + $0x2e8] sm:$0xff] %vm343, %v4340
        %4405 = vst.msk [vmem:[#allocation3 + $0x2f8] sm:$0xff] %vm343, %v4341
        %4406 = vst.msk [vmem:[#allocation3 + $0x308] sm:$0xff] %vm343, %v4342
        %4407 = vst.msk [vmem:[#allocation3 + $0x318] sm:$0xff] %vm343, %v4343
        %4408 = vst.msk [vmem:[#allocation3 + $0x328] sm:$0xff] %vm343, %v4344
        %4409 = vst.msk [vmem:[#allocation3 + $0x338] sm:$0xff] %vm343, %v4345
        %4410 = vst.msk [vmem:[#allocation3 + $0x348] sm:$0xff] %vm343, %v4346
        %4411 = vst.msk [vmem:[#allocation3 + $0x358] sm:$0xff] %vm343, %v4347
        %4412 = vst.msk [vmem:[#allocation3 + $0x368] sm:$0xff] %vm343, %v4348
        %4413 = vst.msk [vmem:[#allocation3 + $0x378] sm:$0xff] %vm343, %v4349
        %4414 = vst.msk [vmem:[#allocation3 + $0x388] sm:$0xff] %vm343, %v4350
        %4415 = vst.msk [vmem:[#allocation3 + $0x398] sm:$0xff] %vm343, %v4351
        %4416 = vst.msk [vmem:[#allocation3 + $0x3a8] sm:$0xff] %vm343, %v4352
        %4417 = vst.msk [vmem:[#allocation3 + $0x3b8] sm:$0xff] %vm343, %v4353
        %4418 = vst.msk [vmem:[#allocation3 + $0x3c8] sm:$0xff] %vm343, %v4354
        %4419 = vst.msk [vmem:[#allocation3 + $0x3d8] sm:$0xff] %vm343, %v4355
        %4420 = vst.msk [vmem:[#allocation3 + $0x3e8] sm:$0xff] %vm343, %v4356
        %4421 = vst.msk [vmem:[#allocation3 + $0x3f8] sm:$0xff] %vm343, %v4357
        %v4422 = vld [vmem:[#allocation3] sm:$0xff]
        %v4423 = vld [vmem:[#allocation3 + $0x8] sm:$0xff]
        %v4424 = vld [vmem:[#allocation3 + $0x10] sm:$0xff]
        %v4425 = vld [vmem:[#allocation3 + $0x18] sm:$0xff]
        %v4426 = vld [vmem:[#allocation3 + $0x20] sm:$0xff]
        %v4427 = vld [vmem:[#allocation3 + $0x28] sm:$0xff]
        %v4428 = vld [vmem:[#allocation3 + $0x30] sm:$0xff]
        %v4429 = vld [vmem:[#allocation3 + $0x38] sm:$0xff]
        %v4430 = vld [vmem:[#allocation3 + $0x40] sm:$0xff]
        %v4431 = vld [vmem:[#allocation3 + $0x48] sm:$0xff]
        %v4432 = vld [vmem:[#allocation3 + $0x50] sm:$0xff]
        %v4433 = vld [vmem:[#allocation3 + $0x58] sm:$0xff]
        %v4434 = vld [vmem:[#allocation3 + $0x60] sm:$0xff]
        %v4435 = vld [vmem:[#allocation3 + $0x68] sm:$0xff]
        %v4436 = vld [vmem:[#allocation3 + $0x70] sm:$0xff]
        %v4437 = vld [vmem:[#allocation3 + $0x78] sm:$0xff]
        %v4438 = vld [vmem:[#allocation3 + $0x80] sm:$0xff]
        %v4439 = vld [vmem:[#allocation3 + $0x88] sm:$0xff]
        %v4440 = vld [vmem:[#allocation3 + $0x90] sm:$0xff]
        %v4441 = vld [vmem:[#allocation3 + $0x98] sm:$0xff]
        %v4442 = vld [vmem:[#allocation3 + $0xa0] sm:$0xff]
        %v4443 = vld [vmem:[#allocation3 + $0xa8] sm:$0xff]
        %v4444 = vld [vmem:[#allocation3 + $0xb0] sm:$0xff]
        %v4445 = vld [vmem:[#allocation3 + $0xb8] sm:$0xff]
        %v4446 = vld [vmem:[#allocation3 + $0xc0] sm:$0xff]
        %v4447 = vld [vmem:[#allocation3 + $0xc8] sm:$0xff]
        %v4448 = vld [vmem:[#allocation3 + $0xd0] sm:$0xff]
        %v4449 = vld [vmem:[#allocation3 + $0xd8] sm:$0xff]
        %v4450 = vld [vmem:[#allocation3 + $0xe0] sm:$0xff]
        %v4451 = vld [vmem:[#allocation3 + $0xe8] sm:$0xff]
        %v4452 = vld [vmem:[#allocation3 + $0xf0] sm:$0xff]
        %v4453 = vld [vmem:[#allocation3 + $0xf8] sm:$0xff]
        %v4454 = vld [vmem:[#allocation3 + $0x100] sm:$0xff]
        %v4455 = vld [vmem:[#allocation3 + $0x108] sm:$0xff]
        %v4456 = vld [vmem:[#allocation3 + $0x110] sm:$0xff]
        %v4457 = vld [vmem:[#allocation3 + $0x118] sm:$0xff]
        %v4458 = vld [vmem:[#allocation3 + $0x120] sm:$0xff]
        %v4459 = vld [vmem:[#allocation3 + $0x128] sm:$0xff]
        %v4460 = vld [vmem:[#allocation3 + $0x130] sm:$0xff]
        %v4461 = vld [vmem:[#allocation3 + $0x138] sm:$0xff]
        %v4462 = vld [vmem:[#allocation3 + $0x140] sm:$0xff]
        %v4463 = vld [vmem:[#allocation3 + $0x148] sm:$0xff]
        %v4464 = vld [vmem:[#allocation3 + $0x150] sm:$0xff]
        %v4465 = vld [vmem:[#allocation3 + $0x158] sm:$0xff]
        %v4466 = vld [vmem:[#allocation3 + $0x160] sm:$0xff]
        %v4467 = vld [vmem:[#allocation3 + $0x168] sm:$0xff]
        %v4468 = vld [vmem:[#allocation3 + $0x170] sm:$0xff]
        %v4469 = vld [vmem:[#allocation3 + $0x178] sm:$0xff]
        %v4470 = vld [vmem:[#allocation3 + $0x180] sm:$0xff]
        %v4471 = vld [vmem:[#allocation3 + $0x188] sm:$0xff]
        %v4472 = vld [vmem:[#allocation3 + $0x190] sm:$0xff]
        %v4473 = vld [vmem:[#allocation3 + $0x198] sm:$0xff]
        %v4474 = vld [vmem:[#allocation3 + $0x1a0] sm:$0xff]
        %v4475 = vld [vmem:[#allocation3 + $0x1a8] sm:$0xff]
        %v4476 = vld [vmem:[#allocation3 + $0x1b0] sm:$0xff]
        %v4477 = vld [vmem:[#allocation3 + $0x1b8] sm:$0xff]
        %v4478 = vld [vmem:[#allocation3 + $0x1c0] sm:$0xff]
        %v4479 = vld [vmem:[#allocation3 + $0x1c8] sm:$0xff]
        %v4480 = vld [vmem:[#allocation3 + $0x1d0] sm:$0xff]
        %v4481 = vld [vmem:[#allocation3 + $0x1d8] sm:$0xff]
        %v4482 = vld [vmem:[#allocation3 + $0x1e0] sm:$0xff]
        %v4483 = vld [vmem:[#allocation3 + $0x1e8] sm:$0xff]
        %v4484 = vld [vmem:[#allocation3 + $0x1f0] sm:$0xff]
        %v4485 = vld [vmem:[#allocation3 + $0x1f8] sm:$0xff]
        %v4486 = vld [vmem:[#allocation3 + $0x200] sm:$0xff]
        %v4487 = vld [vmem:[#allocation3 + $0x208] sm:$0xff]
        %v4488 = vld [vmem:[#allocation3 + $0x210] sm:$0xff]
        %v4489 = vld [vmem:[#allocation3 + $0x218] sm:$0xff]
        %v4490 = vld [vmem:[#allocation3 + $0x220] sm:$0xff]
        %v4491 = vld [vmem:[#allocation3 + $0x228] sm:$0xff]
        %v4492 = vld [vmem:[#allocation3 + $0x230] sm:$0xff]
        %v4493 = vld [vmem:[#allocation3 + $0x238] sm:$0xff]
        %v4494 = vld [vmem:[#allocation3 + $0x240] sm:$0xff]
        %v4495 = vld [vmem:[#allocation3 + $0x248] sm:$0xff]
        %v4496 = vld [vmem:[#allocation3 + $0x250] sm:$0xff]
        %v4497 = vld [vmem:[#allocation3 + $0x258] sm:$0xff]
        %v4498 = vld [vmem:[#allocation3 + $0x260] sm:$0xff]
        %v4499 = vld [vmem:[#allocation3 + $0x268] sm:$0xff]
        %v4500 = vld [vmem:[#allocation3 + $0x270] sm:$0xff]
        %v4501 = vld [vmem:[#allocation3 + $0x278] sm:$0xff]
        %v4502 = vld [vmem:[#allocation3 + $0x280] sm:$0xff]
        %v4503 = vld [vmem:[#allocation3 + $0x288] sm:$0xff]
        %v4504 = vld [vmem:[#allocation3 + $0x290] sm:$0xff]
        %v4505 = vld [vmem:[#allocation3 + $0x298] sm:$0xff]
        %v4506 = vld [vmem:[#allocation3 + $0x2a0] sm:$0xff]
        %v4507 = vld [vmem:[#allocation3 + $0x2a8] sm:$0xff]
        %v4508 = vld [vmem:[#allocation3 + $0x2b0] sm:$0xff]
        %v4509 = vld [vmem:[#allocation3 + $0x2b8] sm:$0xff]
        %v4510 = vld [vmem:[#allocation3 + $0x2c0] sm:$0xff]
        %v4511 = vld [vmem:[#allocation3 + $0x2c8] sm:$0xff]
        %v4512 = vld [vmem:[#allocation3 + $0x2d0] sm:$0xff]
        %v4513 = vld [vmem:[#allocation3 + $0x2d8] sm:$0xff]
        %v4514 = vld [vmem:[#allocation3 + $0x2e0] sm:$0xff]
        %v4515 = vld [vmem:[#allocation3 + $0x2e8] sm:$0xff]
        %v4516 = vld [vmem:[#allocation3 + $0x2f0] sm:$0xff]
        %v4517 = vld [vmem:[#allocation3 + $0x2f8] sm:$0xff]
        %v4518 = vld [vmem:[#allocation3 + $0x300] sm:$0xff]
        %v4519 = vld [vmem:[#allocation3 + $0x308] sm:$0xff]
        %v4520 = vld [vmem:[#allocation3 + $0x310] sm:$0xff]
        %v4521 = vld [vmem:[#allocation3 + $0x318] sm:$0xff]
        %v4522 = vld [vmem:[#allocation3 + $0x320] sm:$0xff]
        %v4523 = vld [vmem:[#allocation3 + $0x328] sm:$0xff]
        %v4524 = vld [vmem:[#allocation3 + $0x330] sm:$0xff]
        %v4525 = vld [vmem:[#allocation3 + $0x338] sm:$0xff]
        %v4526 = vld [vmem:[#allocation3 + $0x340] sm:$0xff]
        %v4527 = vld [vmem:[#allocation3 + $0x348] sm:$0xff]
        %v4528 = vld [vmem:[#allocation3 + $0x350] sm:$0xff]
        %v4529 = vld [vmem:[#allocation3 + $0x358] sm:$0xff]
        %v4530 = vld [vmem:[#allocation3 + $0x360] sm:$0xff]
        %v4531 = vld [vmem:[#allocation3 + $0x368] sm:$0xff]
        %v4532 = vld [vmem:[#allocation3 + $0x370] sm:$0xff]
        %v4533 = vld [vmem:[#allocation3 + $0x378] sm:$0xff]
        %v4534 = vld [vmem:[#allocation3 + $0x380] sm:$0xff]
        %v4535 = vld [vmem:[#allocation3 + $0x388] sm:$0xff]
        %v4536 = vld [vmem:[#allocation3 + $0x390] sm:$0xff]
        %v4537 = vld [vmem:[#allocation3 + $0x398] sm:$0xff]
        %v4538 = vld [vmem:[#allocation3 + $0x3a0] sm:$0xff]
        %v4539 = vld [vmem:[#allocation3 + $0x3a8] sm:$0xff]
        %v4540 = vld [vmem:[#allocation3 + $0x3b0] sm:$0xff]
        %v4541 = vld [vmem:[#allocation3 + $0x3b8] sm:$0xff]
        %v4542 = vld [vmem:[#allocation3 + $0x3c0] sm:$0xff]
        %v4543 = vld [vmem:[#allocation3 + $0x3c8] sm:$0xff]
        %v4544 = vld [vmem:[#allocation3 + $0x3d0] sm:$0xff]
        %v4545 = vld [vmem:[#allocation3 + $0x3d8] sm:$0xff]
        %v4546 = vld [vmem:[#allocation3 + $0x3e0] sm:$0xff]
        %v4547 = vld [vmem:[#allocation3 + $0x3e8] sm:$0xff]
        %v4548 = vld [vmem:[#allocation3 + $0x3f0] sm:$0xff]
        %v4549 = vld [vmem:[#allocation3 + $0x3f8] sm:$0xff]
        %v4550 = vld [vmem:[%s6] sm:$0xff]
        %v4551 = vld [vmem:[%s6 + $0x8] sm:$0xff]
        %v4552 = vld [vmem:[%s6 + $0x10] sm:$0xff]
        %v4553 = vld [vmem:[%s6 + $0x18] sm:$0xff]
        %v4554 = vld [vmem:[%s6 + $0x20] sm:$0xff]
        %v4555 = vld [vmem:[%s6 + $0x28] sm:$0xff]
        %v4556 = vld [vmem:[%s6 + $0x30] sm:$0xff]
        %v4557 = vld [vmem:[%s6 + $0x38] sm:$0xff]
        %v4558 = vld [vmem:[%s6 + $0x40] sm:$0xff]
        %v4559 = vld [vmem:[%s6 + $0x48] sm:$0xff]
        %v4560 = vld [vmem:[%s6 + $0x50] sm:$0xff]
        %v4561 = vld [vmem:[%s6 + $0x58] sm:$0xff]
        %v4562 = vld [vmem:[%s6 + $0x60] sm:$0xff]
        %v4563 = vld [vmem:[%s6 + $0x68] sm:$0xff]
        %v4564 = vld [vmem:[%s6 + $0x70] sm:$0xff]
        %v4565 = vld [vmem:[%s6 + $0x78] sm:$0xff]
        %v4566 = vld [vmem:[%s6 + $0x80] sm:$0xff]
        %v4567 = vld [vmem:[%s6 + $0x88] sm:$0xff]
        %v4569 = vsel %vm343, %v4423, 0
        %v4572 = vsel %vm343, %v4425, 0
        %v4575 = vsel %vm343, %v4427, 0
        %v4578 = vsel %vm343, %v4429, 0
        %v4581 = vsel %vm343, %v4431, 0
        %v4584 = vsel %vm343, %v4433, 0
        %v4587 = vsel %vm343, %v4435, 0
        %v4590 = vsel %vm343, %v4437, 0
        %v4593 = vsel %vm343, %v4439, 0
        %v4596 = vsel %vm343, %v4441, 0
        %v4599 = vsel %vm343, %v4443, 0
        %v4602 = vsel %vm343, %v4445, 0
        %v4605 = vsel %vm343, %v4447, 0
        %v4608 = vsel %vm343, %v4449, 0
        %v4611 = vsel %vm343, %v4451, 0
        %v4614 = vsel %vm343, %v4453, 0
        %v4617 = vsel %vm343, %v4455, 0
        %v4620 = vsel %vm343, %v4457, 0
        %v4623 = vsel %vm343, %v4459, 0
        %v4626 = vsel %vm343, %v4461, 0
        %v4629 = vsel %vm343, %v4463, 0
        %v4632 = vsel %vm343, %v4465, 0
        %v4635 = vsel %vm343, %v4467, 0
        %v4638 = vsel %vm343, %v4469, 0
        %v4641 = vsel %vm343, %v4471, 0
        %v4644 = vsel %vm343, %v4473, 0
        %v4647 = vsel %vm343, %v4475, 0
        %v4650 = vsel %vm343, %v4477, 0
        %v4653 = vsel %vm343, %v4479, 0
        %v4656 = vsel %vm343, %v4481, 0
        %v4659 = vsel %vm343, %v4483, 0
        %v4662 = vsel %vm343, %v4485, 0
        %v4665 = vsel %vm343, %v4487, 0
        %v4668 = vsel %vm343, %v4489, 0
        %v4671 = vsel %vm343, %v4491, 0
        %v4674 = vsel %vm343, %v4493, 0
        %v4677 = vsel %vm343, %v4495, 0
        %v4680 = vsel %vm343, %v4497, 0
        %v4683 = vsel %vm343, %v4499, 0
        %v4686 = vsel %vm343, %v4501, 0
        %v4689 = vsel %vm343, %v4503, 0
        %v4692 = vsel %vm343, %v4505, 0
        %v4695 = vsel %vm343, %v4507, 0
        %v4698 = vsel %vm343, %v4509, 0
        %v4701 = vsel %vm343, %v4511, 0
        %v4704 = vsel %vm343, %v4513, 0
        %v4707 = vsel %vm343, %v4515, 0
        %v4710 = vsel %vm343, %v4517, 0
        %v4713 = vsel %vm343, %v4519, 0
        %v4716 = vsel %vm343, %v4521, 0
        %v4719 = vsel %vm343, %v4523, 0
        %v4722 = vsel %vm343, %v4525, 0
        %v4725 = vsel %vm343, %v4527, 0
        %v4728 = vsel %vm343, %v4529, 0
        %v4731 = vsel %vm343, %v4531, 0
        %v4734 = vsel %vm343, %v4533, 0
        %v4737 = vsel %vm343, %v4535, 0
        %v4740 = vsel %vm343, %v4537, 0
        %v4743 = vsel %vm343, %v4539, 0
        %v4746 = vsel %vm343, %v4541, 0
        %v4749 = vsel %vm343, %v4543, 0
        %v4752 = vsel %vm343, %v4545, 0
        %v4755 = vsel %vm343, %v4547, 0
        %v4758 = vsel %vm343, %v4549, 0
        %4760 = vmatprep.subr.mxu0 0.0
        %4761 = vmatpush1.msra.mxu0 %v4550
        %4762 = vmatprep.subr.mxu0 0.0
        %4763 = vmatpush1.msra.mxu0 %v4551
        %4764 = vmatprep.subr.mxu0 0.0
        %4765 = vmatpush1.msra.mxu0 %v4552
        %4766 = vmatprep.subr.mxu0 0.0
        %4767 = vmatpush1.msra.mxu0 %v4553
        %4768 = vmatprep.subr.mxu0 0.0
        %4769 = vmatpush1.msra.mxu0 %v4554
        %4770 = vmatprep.subr.mxu0 0.0
        %4771 = vmatpush1.msra.mxu0 %v4555
        %4772 = vmatprep.subr.mxu0 0.0
        %4773 = vmatpush1.msra.mxu0 %v4556
        %4774 = vmatprep.subr.mxu0 0.0
        %4775 = vmatpush1.msra.mxu0 %v4557
        %4776 = vmatprep.subr.mxu0 0.0
        %4777 = vmatpush1.msra.mxu0 %v4558
        %4778 = vmatprep.subr.mxu0 0.0
        %4779 = vmatpush1.msra.mxu0 %v4559
        %4780 = vmatprep.subr.mxu0 0.0
        %4781 = vmatpush1.msra.mxu0 %v4560
        %4782 = vmatprep.subr.mxu0 0.0
        %4783 = vmatpush1.msra.mxu0 %v4561
        %4784 = vmatprep.subr.mxu0 0.0
        %4785 = vmatpush1.msra.mxu0 %v4562
        %4786 = vmatprep.subr.mxu0 0.0
        %4787 = vmatpush1.msra.mxu0 %v4563
        %4788 = vmatprep.subr.mxu0 0.0
        %4789 = vmatpush1.msra.mxu0 %v4564
        %4790 = vmatprep.subr.mxu0 0.0
        %4791 = vmatpush1.msra.mxu0 %v4565
        %4792 = vmatprep.subr.mxu0 0.0
        %4793 = vmatpush1.msra.mxu0 %v4566
        %4794 = vmatprep.subr.mxu0 0.0
        %4795 = vmatpush1.msra.mxu0 %v4567
        %4796 = vmatprep.subr.mxu0 0.0
        %4797 = vmatpush1.msra.mxu0 0.0
        %4798 = vmatprep.subr.mxu0 0.0
        %4799 = vmatpush1.msra.mxu0 0.0
        %4800 = vmatprep.subr.mxu0 0.0
        %4801 = vmatpush1.msra.mxu0 0.0
        %4802 = vmatprep.subr.mxu0 0.0
        %4803 = vmatpush1.msra.mxu0 0.0
        %4804 = vmatprep.subr.mxu0 0.0
        %4805 = vmatpush1.msra.mxu0 0.0
        %4806 = vmatprep.subr.mxu0 0.0
        %4807 = vmatpush1.msra.mxu0 0.0
        %4808 = vmatprep.subr.mxu0 0.0
        %4809 = vmatpush1.msra.mxu0 0.0
        %4810 = vmatprep.subr.mxu0 0.0
        %4811 = vmatpush1.msra.mxu0 0.0
        %4812 = vmatprep.subr.mxu0 0.0
        %4813 = vmatpush1.msra.mxu0 0.0
        %4814 = vmatprep.subr.mxu0 0.0
        %4815 = vmatpush1.msra.mxu0 0.0
        %4816 = vmatprep.subr.mxu0 0.0
        %4817 = vmatpush1.msra.mxu0 0.0
        %4818 = vmatprep.subr.mxu0 0.0
        %4819 = vmatpush1.msra.mxu0 0.0
        %4820 = vmatprep.subr.mxu0 0.0
        %4821 = vmatpush1.msra.mxu0 0.0
        %4822 = vmatprep.subr.mxu0 0.0
        %4823 = vmatpush1.msra.mxu0 0.0
        %4824 = vmatprep.mubr.f32.mxu0 %v4569
        %4825 = vmatmul.mubr.f32.gmra.mrb[0].mxu0 %v4422
        %v4826 = vpop.f32.mrb[0].mxu0
        %v4827 = vadd.f32 0.0, %v4826
        %v4828 = vpop.f32.mrb[0].mxu0
        %4829 = vmatprep.mubr.f32.mxu0 %v4572
        %4830 = vmatmul.mubr.f32.gmra.mrb[0].mxu0 %v4424
        %v4831 = vpop.f32.mrb[0].mxu0
        %v4832 = vadd.f32 0.0, %v4831
        %v4833 = vpop.f32.mrb[0].mxu0
        %4834 = vmatprep.mubr.f32.mxu0 %v4575
        %4835 = vmatmul.mubr.f32.gmra.mrb[0].mxu0 %v4426
        %v4836 = vpop.f32.mrb[0].mxu0
        %v4837 = vadd.f32 0.0, %v4836
        %v4838 = vpop.f32.mrb[0].mxu0
        %4839 = vmatprep.mubr.f32.mxu0 %v4578
        %4840 = vmatmul.mubr.f32.gmra.mrb[0].mxu0 %v4428
        %v4841 = vpop.f32.mrb[0].mxu0
        %v4842 = vadd.f32 0.0, %v4841
        %v4843 = vpop.f32.mrb[0].mxu0
        %4844 = vmatprep.mubr.f32.mxu0 %v4581
        %4845 = vmatmul.mubr.f32.gmra.mrb[0].mxu0 %v4430
        %v4846 = vpop.f32.mrb[0].mxu0
        %v4847 = vadd.f32 0.0, %v4846
        %v4848 = vpop.f32.mrb[0].mxu0
        %4849 = vmatprep.mubr.f32.mxu0 %v4584
        %4850 = vmatmul.mubr.f32.gmra.mrb[0].mxu0 %v4432
        %v4851 = vpop.f32.mrb[0].mxu0
        %v4852 = vadd.f32 0.0, %v4851
        %v4853 = vpop.f32.mrb[0].mxu0
        %4854 = vmatprep.mubr.f32.mxu0 %v4587
        %4855 = vmatmul.mubr.f32.gmra.mrb[0].mxu0 %v4434
        %v4856 = vpop.f32.mrb[0].mxu0
        %v4857 = vadd.f32 0.0, %v4856
        %v4858 = vpop.f32.mrb[0].mxu0
        %4859 = vmatprep.mubr.f32.mxu0 %v4590
        %4860 = vmatmul.mubr.f32.gmra.mrb[0].mxu0 %v4436
        %v4861 = vpop.f32.mrb[0].mxu0
        %v4862 = vadd.f32 0.0, %v4861
        %v4863 = vpop.f32.mrb[0].mxu0
        %4864 = vmatprep.mubr.f32.mxu0 %v4593
        %4865 = vmatmul.mubr.f32.gmra.mrb[0].mxu0 %v4438
        %v4866 = vpop.f32.mrb[0].mxu0
        %v4867 = vadd.f32 0.0, %v4866
        %v4868 = vpop.f32.mrb[0].mxu0
        %4869 = vmatprep.mubr.f32.mxu0 %v4596
        %4870 = vmatmul.mubr.f32.gmra.mrb[0].mxu0 %v4440
        %v4871 = vpop.f32.mrb[0].mxu0
        %v4872 = vadd.f32 0.0, %v4871
        %v4873 = vpop.f32.mrb[0].mxu0
        %4874 = vmatprep.mubr.f32.mxu0 %v4599
        %4875 = vmatmul.mubr.f32.gmra.mrb[0].mxu0 %v4442
        %v4876 = vpop.f32.mrb[0].mxu0
        %v4877 = vadd.f32 0.0, %v4876
        %v4878 = vpop.f32.mrb[0].mxu0
        %4879 = vmatprep.mubr.f32.mxu0 %v4602
        %4880 = vmatmul.mubr.f32.gmra.mrb[0].mxu0 %v4444
        %v4881 = vpop.f32.mrb[0].mxu0
        %v4882 = vadd.f32 0.0, %v4881
        %v4883 = vpop.f32.mrb[0].mxu0
        %4884 = vmatprep.mubr.f32.mxu0 %v4605
        %4885 = vmatmul.mubr.f32.gmra.mrb[0].mxu0 %v4446
        %v4886 = vpop.f32.mrb[0].mxu0
        %v4887 = vadd.f32 0.0, %v4886
        %v4888 = vpop.f32.mrb[0].mxu0
        %4889 = vmatprep.mubr.f32.mxu0 %v4608
        %4890 = vmatmul.mubr.f32.gmra.mrb[0].mxu0 %v4448
        %v4891 = vpop.f32.mrb[0].mxu0
        %v4892 = vadd.f32 0.0, %v4891
        %v4893 = vpop.f32.mrb[0].mxu0
        %4894 = vmatprep.mubr.f32.mxu0 %v4611
        %4895 = vmatmul.mubr.f32.gmra.mrb[0].mxu0 %v4450
        %v4896 = vpop.f32.mrb[0].mxu0
        %v4897 = vadd.f32 0.0, %v4896
        %v4898 = vpop.f32.mrb[0].mxu0
        %4899 = vmatprep.mubr.f32.mxu0 %v4614
        %4900 = vmatmul.mubr.f32.gmra.mrb[0].mxu0 %v4452
        %v4901 = vpop.f32.mrb[0].mxu0
        %v4902 = vadd.f32 0.0, %v4901
        %v4903 = vpop.f32.mrb[0].mxu0
        %4904 = vmatprep.mubr.f32.mxu0 %v4617
        %4905 = vmatmul.mubr.f32.gmra.mrb[0].mxu0 %v4454
        %v4906 = vpop.f32.mrb[0].mxu0
        %v4907 = vadd.f32 0.0, %v4906
        %v4908 = vpop.f32.mrb[0].mxu0
        %4909 = vmatprep.mubr.f32.mxu0 %v4620
        %4910 = vmatmul.mubr.f32.gmra.mrb[0].mxu0 %v4456
        %v4911 = vpop.f32.mrb[0].mxu0
        %v4912 = vadd.f32 0.0, %v4911
        %v4913 = vpop.f32.mrb[0].mxu0
        %4914 = vmatprep.mubr.f32.mxu0 %v4623
        %4915 = vmatmul.mubr.f32.gmra.mrb[0].mxu0 %v4458
        %v4916 = vpop.f32.mrb[0].mxu0
        %v4917 = vadd.f32 0.0, %v4916
        %v4918 = vpop.f32.mrb[0].mxu0
        %4919 = vmatprep.mubr.f32.mxu0 %v4626
        %4920 = vmatmul.mubr.f32.gmra.mrb[0].mxu0 %v4460
        %v4921 = vpop.f32.mrb[0].mxu0
        %v4922 = vadd.f32 0.0, %v4921
        %v4923 = vpop.f32.mrb[0].mxu0
        %4924 = vmatprep.mubr.f32.mxu0 %v4629
        %4925 = vmatmul.mubr.f32.gmra.mrb[0].mxu0 %v4462
        %v4926 = vpop.f32.mrb[0].mxu0
        %v4927 = vadd.f32 0.0, %v4926
        %v4928 = vpop.f32.mrb[0].mxu0
        %4929 = vmatprep.mubr.f32.mxu0 %v4632
        %4930 = vmatmul.mubr.f32.gmra.mrb[0].mxu0 %v4464
        %v4931 = vpop.f32.mrb[0].mxu0
        %v4932 = vadd.f32 0.0, %v4931
        %v4933 = vpop.f32.mrb[0].mxu0
        %4934 = vmatprep.mubr.f32.mxu0 %v4635
        %4935 = vmatmul.mubr.f32.gmra.mrb[0].mxu0 %v4466
        %v4936 = vpop.f32.mrb[0].mxu0
        %v4937 = vadd.f32 0.0, %v4936
        %v4938 = vpop.f32.mrb[0].mxu0
        %4939 = vmatprep.mubr.f32.mxu0 %v4638
        %4940 = vmatmul.mubr.f32.gmra.mrb[0].mxu0 %v4468
        %v4941 = vpop.f32.mrb[0].mxu0
        %v4942 = vadd.f32 0.0, %v4941
        %v4943 = vpop.f32.mrb[0].mxu0
        %4944 = vmatprep.mubr.f32.mxu0 %v4641
        %4945 = vmatmul.mubr.f32.gmra.mrb[0].mxu0 %v4470
        %v4946 = vpop.f32.mrb[0].mxu0
        %v4947 = vadd.f32 0.0, %v4946
        %v4948 = vpop.f32.mrb[0].mxu0
        %4949 = vmatprep.mubr.f32.mxu0 %v4644
        %4950 = vmatmul.mubr.f32.gmra.mrb[0].mxu0 %v4472
        %v4951 = vpop.f32.mrb[0].mxu0
        %v4952 = vadd.f32 0.0, %v4951
        %v4953 = vpop.f32.mrb[0].mxu0
        %4954 = vmatprep.mubr.f32.mxu0 %v4647
        %4955 = vmatmul.mubr.f32.gmra.mrb[0].mxu0 %v4474
        %v4956 = vpop.f32.mrb[0].mxu0
        %v4957 = vadd.f32 0.0, %v4956
        %v4958 = vpop.f32.mrb[0].mxu0
        %4959 = vmatprep.mubr.f32.mxu0 %v4650
        %4960 = vmatmul.mubr.f32.gmra.mrb[0].mxu0 %v4476
        %v4961 = vpop.f32.mrb[0].mxu0
        %v4962 = vadd.f32 0.0, %v4961
        %v4963 = vpop.f32.mrb[0].mxu0
        %4964 = vmatprep.mubr.f32.mxu0 %v4653
        %4965 = vmatmul.mubr.f32.gmra.mrb[0].mxu0 %v4478
        %v4966 = vpop.f32.mrb[0].mxu0
        %v4967 = vadd.f32 0.0, %v4966
        %v4968 = vpop.f32.mrb[0].mxu0
        %4969 = vmatprep.mubr.f32.mxu0 %v4656
        %4970 = vmatmul.mubr.f32.gmra.mrb[0].mxu0 %v4480
        %v4971 = vpop.f32.mrb[0].mxu0
        %v4972 = vadd.f32 0.0, %v4971
        %v4973 = vpop.f32.mrb[0].mxu0
        %4974 = vmatprep.mubr.f32.mxu0 %v4659
        %4975 = vmatmul.mubr.f32.gmra.mrb[0].mxu0 %v4482
        %v4976 = vpop.f32.mrb[0].mxu0
        %v4977 = vadd.f32 0.0, %v4976
        %v4978 = vpop.f32.mrb[0].mxu0
        %4979 = vmatprep.mubr.f32.mxu0 %v4662
        %4980 = vmatmul.mubr.f32.gmra.mrb[0].mxu0 %v4484
        %v4981 = vpop.f32.mrb[0].mxu0
        %v4982 = vadd.f32 0.0, %v4981
        %v4983 = vpop.f32.mrb[0].mxu0
        %4984 = vmatprep.mubr.f32.mxu0 %v4665
        %4985 = vmatmul.mubr.f32.gmra.mrb[0].mxu0 %v4486
        %v4986 = vpop.f32.mrb[0].mxu0
        %v4987 = vadd.f32 0.0, %v4986
        %v4988 = vpop.f32.mrb[0].mxu0
        %4989 = vmatprep.mubr.f32.mxu0 %v4668
        %4990 = vmatmul.mubr.f32.gmra.mrb[0].mxu0 %v4488
        %v4991 = vpop.f32.mrb[0].mxu0
        %v4992 = vadd.f32 0.0, %v4991
        %v4993 = vpop.f32.mrb[0].mxu0
        %4994 = vmatprep.mubr.f32.mxu0 %v4671
        %4995 = vmatmul.mubr.f32.gmra.mrb[0].mxu0 %v4490
        %v4996 = vpop.f32.mrb[0].mxu0
        %v4997 = vadd.f32 0.0, %v4996
        %v4998 = vpop.f32.mrb[0].mxu0
        %4999 = vmatprep.mubr.f32.mxu0 %v4674
        %5000 = vmatmul.mubr.f32.gmra.mrb[0].mxu0 %v4492
        %v5001 = vpop.f32.mrb[0].mxu0
        %v5002 = vadd.f32 0.0, %v5001
        %v5003 = vpop.f32.mrb[0].mxu0
        %5004 = vmatprep.mubr.f32.mxu0 %v4677
        %5005 = vmatmul.mubr.f32.gmra.mrb[0].mxu0 %v4494
        %v5006 = vpop.f32.mrb[0].mxu0
        %v5007 = vadd.f32 0.0, %v5006
        %v5008 = vpop.f32.mrb[0].mxu0
        %5009 = vmatprep.mubr.f32.mxu0 %v4680
        %5010 = vmatmul.mubr.f32.gmra.mrb[0].mxu0 %v4496
        %v5011 = vpop.f32.mrb[0].mxu0
        %v5012 = vadd.f32 0.0, %v5011
        %v5013 = vpop.f32.mrb[0].mxu0
        %5014 = vmatprep.mubr.f32.mxu0 %v4683
        %5015 = vmatmul.mubr.f32.gmra.mrb[0].mxu0 %v4498
        %v5016 = vpop.f32.mrb[0].mxu0
        %v5017 = vadd.f32 0.0, %v5016
        %v5018 = vpop.f32.mrb[0].mxu0
        %5019 = vmatprep.mubr.f32.mxu0 %v4686
        %5020 = vmatmul.mubr.f32.gmra.mrb[0].mxu0 %v4500
        %v5021 = vpop.f32.mrb[0].mxu0
        %v5022 = vadd.f32 0.0, %v5021
        %v5023 = vpop.f32.mrb[0].mxu0
        %5024 = vmatprep.mubr.f32.mxu0 %v4689
        %5025 = vmatmul.mubr.f32.gmra.mrb[0].mxu0 %v4502
        %v5026 = vpop.f32.mrb[0].mxu0
        %v5027 = vadd.f32 0.0, %v5026
        %v5028 = vpop.f32.mrb[0].mxu0
        %5029 = vmatprep.mubr.f32.mxu0 %v4692
        %5030 = vmatmul.mubr.f32.gmra.mrb[0].mxu0 %v4504
        %v5031 = vpop.f32.mrb[0].mxu0
        %v5032 = vadd.f32 0.0, %v5031
        %v5033 = vpop.f32.mrb[0].mxu0
        %5034 = vmatprep.mubr.f32.mxu0 %v4695
        %5035 = vmatmul.mubr.f32.gmra.mrb[0].mxu0 %v4506
        %v5036 = vpop.f32.mrb[0].mxu0
        %v5037 = vadd.f32 0.0, %v5036
        %v5038 = vpop.f32.mrb[0].mxu0
        %5039 = vmatprep.mubr.f32.mxu0 %v4698
        %5040 = vmatmul.mubr.f32.gmra.mrb[0].mxu0 %v4508
        %v5041 = vpop.f32.mrb[0].mxu0
        %v5042 = vadd.f32 0.0, %v5041
        %v5043 = vpop.f32.mrb[0].mxu0
        %5044 = vmatprep.mubr.f32.mxu0 %v4701
        %5045 = vmatmul.mubr.f32.gmra.mrb[0].mxu0 %v4510
        %v5046 = vpop.f32.mrb[0].mxu0
        %v5047 = vadd.f32 0.0, %v5046
        %v5048 = vpop.f32.mrb[0].mxu0
        %5049 = vmatprep.mubr.f32.mxu0 %v4704
        %5050 = vmatmul.mubr.f32.gmra.mrb[0].mxu0 %v4512
        %v5051 = vpop.f32.mrb[0].mxu0
        %v5052 = vadd.f32 0.0, %v5051
        %v5053 = vpop.f32.mrb[0].mxu0
        %5054 = vmatprep.mubr.f32.mxu0 %v4707
        %5055 = vmatmul.mubr.f32.gmra.mrb[0].mxu0 %v4514
        %v5056 = vpop.f32.mrb[0].mxu0
        %v5057 = vadd.f32 0.0, %v5056
        %v5058 = vpop.f32.mrb[0].mxu0
        %5059 = vmatprep.mubr.f32.mxu0 %v4710
        %5060 = vmatmul.mubr.f32.gmra.mrb[0].mxu0 %v4516
        %v5061 = vpop.f32.mrb[0].mxu0
        %v5062 = vadd.f32 0.0, %v5061
        %v5063 = vpop.f32.mrb[0].mxu0
        %5064 = vmatprep.mubr.f32.mxu0 %v4713
        %5065 = vmatmul.mubr.f32.gmra.mrb[0].mxu0 %v4518
        %v5066 = vpop.f32.mrb[0].mxu0
        %v5067 = vadd.f32 0.0, %v5066
        %v5068 = vpop.f32.mrb[0].mxu0
        %5069 = vmatprep.mubr.f32.mxu0 %v4716
        %5070 = vmatmul.mubr.f32.gmra.mrb[0].mxu0 %v4520
        %v5071 = vpop.f32.mrb[0].mxu0
        %v5072 = vadd.f32 0.0, %v5071
        %v5073 = vpop.f32.mrb[0].mxu0
        %5074 = vmatprep.mubr.f32.mxu0 %v4719
        %5075 = vmatmul.mubr.f32.gmra.mrb[0].mxu0 %v4522
        %v5076 = vpop.f32.mrb[0].mxu0
        %v5077 = vadd.f32 0.0, %v5076
        %v5078 = vpop.f32.mrb[0].mxu0
        %5079 = vmatprep.mubr.f32.mxu0 %v4722
        %5080 = vmatmul.mubr.f32.gmra.mrb[0].mxu0 %v4524
        %v5081 = vpop.f32.mrb[0].mxu0
        %v5082 = vadd.f32 0.0, %v5081
        %v5083 = vpop.f32.mrb[0].mxu0
        %5084 = vmatprep.mubr.f32.mxu0 %v4725
        %5085 = vmatmul.mubr.f32.gmra.mrb[0].mxu0 %v4526
        %v5086 = vpop.f32.mrb[0].mxu0
        %v5087 = vadd.f32 0.0, %v5086
        %v5088 = vpop.f32.mrb[0].mxu0
        %5089 = vmatprep.mubr.f32.mxu0 %v4728
        %5090 = vmatmul.mubr.f32.gmra.mrb[0].mxu0 %v4528
        %v5091 = vpop.f32.mrb[0].mxu0
        %v5092 = vadd.f32 0.0, %v5091
        %v5093 = vpop.f32.mrb[0].mxu0
        %5094 = vmatprep.mubr.f32.mxu0 %v4731
        %5095 = vmatmul.mubr.f32.gmra.mrb[0].mxu0 %v4530
        %v5096 = vpop.f32.mrb[0].mxu0
        %v5097 = vadd.f32 0.0, %v5096
        %v5098 = vpop.f32.mrb[0].mxu0
        %5099 = vmatprep.mubr.f32.mxu0 %v4734
        %5100 = vmatmul.mubr.f32.gmra.mrb[0].mxu0 %v4532
        %v5101 = vpop.f32.mrb[0].mxu0
        %v5102 = vadd.f32 0.0, %v5101
        %v5103 = vpop.f32.mrb[0].mxu0
        %5104 = vmatprep.mubr.f32.mxu0 %v4737
        %5105 = vmatmul.mubr.f32.gmra.mrb[0].mxu0 %v4534
        %v5106 = vpop.f32.mrb[0].mxu0
        %v5107 = vadd.f32 0.0, %v5106
        %v5108 = vpop.f32.mrb[0].mxu0
        %5109 = vmatprep.mubr.f32.mxu0 %v4740
        %5110 = vmatmul.mubr.f32.gmra.mrb[0].mxu0 %v4536
        %v5111 = vpop.f32.mrb[0].mxu0
        %v5112 = vadd.f32 0.0, %v5111
        %v5113 = vpop.f32.mrb[0].mxu0
        %5114 = vmatprep.mubr.f32.mxu0 %v4743
        %5115 = vmatmul.mubr.f32.gmra.mrb[0].mxu0 %v4538
        %v5116 = vpop.f32.mrb[0].mxu0
        %v5117 = vadd.f32 0.0, %v5116
        %v5118 = vpop.f32.mrb[0].mxu0
        %5119 = vmatprep.mubr.f32.mxu0 %v4746
        %5120 = vmatmul.mubr.f32.gmra.mrb[0].mxu0 %v4540
        %v5121 = vpop.f32.mrb[0].mxu0
        %v5122 = vadd.f32 0.0, %v5121
        %v5123 = vpop.f32.mrb[0].mxu0
        %5124 = vmatprep.mubr.f32.mxu0 %v4749
        %5125 = vmatmul.mubr.f32.gmra.mrb[0].mxu0 %v4542
        %v5126 = vpop.f32.mrb[0].mxu0
        %v5127 = vadd.f32 0.0, %v5126
        %v5128 = vpop.f32.mrb[0].mxu0
        %5129 = vmatprep.mubr.f32.mxu0 %v4752
        %5130 = vmatmul.mubr.f32.gmra.mrb[0].mxu0 %v4544
        %v5131 = vpop.f32.mrb[0].mxu0
        %v5132 = vadd.f32 0.0, %v5131
        %v5133 = vpop.f32.mrb[0].mxu0
        %5134 = vmatprep.mubr.f32.mxu0 %v4755
        %5135 = vmatmul.mubr.f32.gmra.mrb[0].mxu0 %v4546
        %v5136 = vpop.f32.mrb[0].mxu0
        %v5137 = vadd.f32 0.0, %v5136
        %v5138 = vpop.f32.mrb[0].mxu0
        %5139 = vmatprep.mubr.f32.mxu0 %v4758
        %5140 = vmatmul.mubr.f32.gmra.mrb[0].mxu0 %v4548
        %v5141 = vpop.f32.mrb[0].mxu0
        %v5142 = vadd.f32 0.0, %v5141
        %v5143 = vpop.f32.mrb[0].mxu0
        %5144 = vdwg.mxu0
        %vm5145 = vcmask 64512
        %5146 = vst.msk [vmem:[%s341] sm:$0xff] %vm5145, %v4827
        %5147 = vst.msk [vmem:[%s341 + $0x8] sm:$0xff] %vm5145, %v4832
        %5148 = vst.msk [vmem:[%s341 + $0x10] sm:$0xff] %vm5145, %v4837
        %5149 = vst.msk [vmem:[%s341 + $0x18] sm:$0xff] %vm5145, %v4842
        %5150 = vst.msk [vmem:[%s341 + $0x20] sm:$0xff] %vm5145, %v4847
        %5151 = vst.msk [vmem:[%s341 + $0x28] sm:$0xff] %vm5145, %v4852
        %5152 = vst.msk [vmem:[%s341 + $0x30] sm:$0xff] %vm5145, %v4857
        %5153 = vst.msk [vmem:[%s341 + $0x38] sm:$0xff] %vm5145, %v4862
        %5154 = vst.msk [vmem:[%s341 + $0x40] sm:$0xff] %vm5145, %v4867
        %5155 = vst.msk [vmem:[%s341 + $0x48] sm:$0xff] %vm5145, %v4872
        %5156 = vst.msk [vmem:[%s341 + $0x50] sm:$0xff] %vm5145, %v4877
        %5157 = vst.msk [vmem:[%s341 + $0x58] sm:$0xff] %vm5145, %v4882
        %5158 = vst.msk [vmem:[%s341 + $0x60] sm:$0xff] %vm5145, %v4887
        %5159 = vst.msk [vmem:[%s341 + $0x68] sm:$0xff] %vm5145, %v4892
        %5160 = vst.msk [vmem:[%s341 + $0x70] sm:$0xff] %vm5145, %v4897
        %5161 = vst.msk [vmem:[%s341 + $0x78] sm:$0xff] %vm5145, %v4902
        %5162 = vst.msk [vmem:[%s341 + $0x80] sm:$0xff] %vm5145, %v4907
        %5163 = vst.msk [vmem:[%s341 + $0x88] sm:$0xff] %vm5145, %v4912
        %5164 = vst.msk [vmem:[%s341 + $0x90] sm:$0xff] %vm5145, %v4917
        %5165 = vst.msk [vmem:[%s341 + $0x98] sm:$0xff] %vm5145, %v4922
        %5166 = vst.msk [vmem:[%s341 + $0xa0] sm:$0xff] %vm5145, %v4927
        %5167 = vst.msk [vmem:[%s341 + $0xa8] sm:$0xff] %vm5145, %v4932
        %5168 = vst.msk [vmem:[%s341 + $0xb0] sm:$0xff] %vm5145, %v4937
        %5169 = vst.msk [vmem:[%s341 + $0xb8] sm:$0xff] %vm5145, %v4942
        %5170 = vst.msk [vmem:[%s341 + $0xc0] sm:$0xff] %vm5145, %v4947
        %5171 = vst.msk [vmem:[%s341 + $0xc8] sm:$0xff] %vm5145, %v4952
        %5172 = vst.msk [vmem:[%s341 + $0xd0] sm:$0xff] %vm5145, %v4957
        %5173 = vst.msk [vmem:[%s341 + $0xd8] sm:$0xff] %vm5145, %v4962
        %5174 = vst.msk [vmem:[%s341 + $0xe0] sm:$0xff] %vm5145, %v4967
        %5175 = vst.msk [vmem:[%s341 + $0xe8] sm:$0xff] %vm5145, %v4972
        %5176 = vst.msk [vmem:[%s341 + $0xf0] sm:$0xff] %vm5145, %v4977
        %5177 = vst.msk [vmem:[%s341 + $0xf8] sm:$0xff] %vm5145, %v4982
        %5178 = vst.msk [vmem:[%s341 + $0x100] sm:$0xff] %vm5145, %v4987
        %5179 = vst.msk [vmem:[%s341 + $0x108] sm:$0xff] %vm5145, %v4992
        %5180 = vst.msk [vmem:[%s341 + $0x110] sm:$0xff] %vm5145, %v4997
        %5181 = vst.msk [vmem:[%s341 + $0x118] sm:$0xff] %vm5145, %v5002
        %5182 = vst.msk [vmem:[%s341 + $0x120] sm:$0xff] %vm5145, %v5007
        %5183 = vst.msk [vmem:[%s341 + $0x128] sm:$0xff] %vm5145, %v5012
        %5184 = vst.msk [vmem:[%s341 + $0x130] sm:$0xff] %vm5145, %v5017
        %5185 = vst.msk [vmem:[%s341 + $0x138] sm:$0xff] %vm5145, %v5022
        %5186 = vst.msk [vmem:[%s341 + $0x140] sm:$0xff] %vm5145, %v5027
        %5187 = vst.msk [vmem:[%s341 + $0x148] sm:$0xff] %vm5145, %v5032
        %5188 = vst.msk [vmem:[%s341 + $0x150] sm:$0xff] %vm5145, %v5037
        %5189 = vst.msk [vmem:[%s341 + $0x158] sm:$0xff] %vm5145, %v5042
        %5190 = vst.msk [vmem:[%s341 + $0x160] sm:$0xff] %vm5145, %v5047
        %5191 = vst.msk [vmem:[%s341 + $0x168] sm:$0xff] %vm5145, %v5052
        %5192 = vst.msk [vmem:[%s341 + $0x170] sm:$0xff] %vm5145, %v5057
        %5193 = vst.msk [vmem:[%s341 + $0x178] sm:$0xff] %vm5145, %v5062
        %5194 = vst.msk [vmem:[%s341 + $0x180] sm:$0xff] %vm5145, %v5067
        %5195 = vst.msk [vmem:[%s341 + $0x188] sm:$0xff] %vm5145, %v5072
        %5196 = vst.msk [vmem:[%s341 + $0x190] sm:$0xff] %vm5145, %v5077
        %5197 = vst.msk [vmem:[%s341 + $0x198] sm:$0xff] %vm5145, %v5082
        %5198 = vst.msk [vmem:[%s341 + $0x1a0] sm:$0xff] %vm5145, %v5087
        %5199 = vst.msk [vmem:[%s341 + $0x1a8] sm:$0xff] %vm5145, %v5092
        %5200 = vst.msk [vmem:[%s341 + $0x1b0] sm:$0xff] %vm5145, %v5097
        %5201 = vst.msk [vmem:[%s341 + $0x1b8] sm:$0xff] %vm5145, %v5102
        %5202 = vst.msk [vmem:[%s341 + $0x1c0] sm:$0xff] %vm5145, %v5107
        %5203 = vst.msk [vmem:[%s341 + $0x1c8] sm:$0xff] %vm5145, %v5112
        %5204 = vst.msk [vmem:[%s341 + $0x1d0] sm:$0xff] %vm5145, %v5117
        %5205 = vst.msk [vmem:[%s341 + $0x1d8] sm:$0xff] %vm5145, %v5122
        %5206 = vst.msk [vmem:[%s341 + $0x1e0] sm:$0xff] %vm5145, %v5127
        %5207 = vst.msk [vmem:[%s341 + $0x1e8] sm:$0xff] %vm5145, %v5132
        %5208 = vst.msk [vmem:[%s341 + $0x1f0] sm:$0xff] %vm5145, %v5137
        %5209 = vst.msk [vmem:[%s341 + $0x1f8] sm:$0xff] %vm5145, %v5142
        %5210 = vst.msk [vmem:[%s325] sm:$0xff] %vm623, %v351
        %5211 = vst.msk [vmem:[%s325 + $0x8] sm:$0xff] %vm623, %v352
        %5212 = vst.msk [vmem:[%s325 + $0x10] sm:$0xff] %vm623, %v353
        %5213 = vst.msk [vmem:[%s325 + $0x18] sm:$0xff] %vm623, %v354
        %5214 = vst.msk [vmem:[%s325 + $0x20] sm:$0xff] %vm623, %v355
        %5215 = vst.msk [vmem:[%s325 + $0x28] sm:$0xff] %vm623, %v356
        %5216 = vst.msk [vmem:[%s325 + $0x30] sm:$0xff] %vm623, %v357
        %5217 = vst.msk [vmem:[%s325 + $0x38] sm:$0xff] %vm623, %v358
        %5218 = vst.msk [vmem:[%s325 + $0x40] sm:$0xff] %vm623, %v359
        %5219 = vst.msk [vmem:[%s325 + $0x48] sm:$0xff] %vm623, %v360
        %5220 = vst.msk [vmem:[%s325 + $0x50] sm:$0xff] %vm623, %v361
        %5221 = vst.msk [vmem:[%s325 + $0x58] sm:$0xff] %vm623, %v362
        %5222 = vst.msk [vmem:[%s325 + $0x60] sm:$0xff] %vm623, %v363
        %5223 = vst.msk [vmem:[%s325 + $0x68] sm:$0xff] %vm623, %v364
        %5224 = vst.msk [vmem:[%s325 + $0x70] sm:$0xff] %vm623, %v365
        %5225 = vst.msk [vmem:[%s325 + $0x78] sm:$0xff] %vm623, %v366
        %5226 = vst.msk [vmem:[%s325 + $0x80] sm:$0xff] %vm623, %v367
        %5227 = vst.msk [vmem:[%s325 + $0x88] sm:$0xff] %vm623, %v368
        %5228 = vst.msk [vmem:[%s325 + $0x90] sm:$0xff] %vm623, %v369
        %5229 = vst.msk [vmem:[%s325 + $0x98] sm:$0xff] %vm623, %v370
        %5230 = vst.msk [vmem:[%s325 + $0xa0] sm:$0xff] %vm623, %v371
        %5231 = vst.msk [vmem:[%s325 + $0xa8] sm:$0xff] %vm623, %v372
        %5232 = vst.msk [vmem:[%s325 + $0xb0] sm:$0xff] %vm623, %v373
        %5233 = vst.msk [vmem:[%s325 + $0xb8] sm:$0xff] %vm623, %v374
        %5234 = vst.msk [vmem:[%s325 + $0xc0] sm:$0xff] %vm623, %v375
        %5235 = vst.msk [vmem:[%s325 + $0xc8] sm:$0xff] %vm623, %v376
        %5236 = vst.msk [vmem:[%s325 + $0xd0] sm:$0xff] %vm623, %v377
        %5237 = vst.msk [vmem:[%s325 + $0xd8] sm:$0xff] %vm623, %v378
        %5238 = vst.msk [vmem:[%s325 + $0xe0] sm:$0xff] %vm623, %v383
        %5239 = vst.msk [vmem:[%s325 + $0xe8] sm:$0xff] %vm623, %v384
        %5240 = vst.msk [vmem:[%s325 + $0xf0] sm:$0xff] %vm623, %v385
        %5241 = vst.msk [vmem:[%s325 + $0xf8] sm:$0xff] %vm623, %v386
        %5242 = vst.msk [vmem:[%s325 + $0x100] sm:$0xff] %vm623, %v387
        %5243 = vst.msk [vmem:[%s325 + $0x108] sm:$0xff] %vm623, %v388
        %5244 = vst.msk [vmem:[%s325 + $0x110] sm:$0xff] %vm623, %v389
        %5245 = vst.msk [vmem:[%s325 + $0x118] sm:$0xff] %vm623, %v390
        %5246 = vst.msk [vmem:[%s325 + $0x120] sm:$0xff] %vm623, %v391
        %5247 = vst.msk [vmem:[%s325 + $0x128] sm:$0xff] %vm623, %v392
        %5248 = vst.msk [vmem:[%s325 + $0x130] sm:$0xff] %vm623, %v393
        %5249 = vst.msk [vmem:[%s325 + $0x138] sm:$0xff] %vm623, %v394
        %5250 = vst.msk [vmem:[%s325 + $0x140] sm:$0xff] %vm623, %v395
        %5251 = vst.msk [vmem:[%s325 + $0x148] sm:$0xff] %vm623, %v396
        %5252 = vst.msk [vmem:[%s325 + $0x150] sm:$0xff] %vm623, %v397
        %5253 = vst.msk [vmem:[%s325 + $0x158] sm:$0xff] %vm623, %v398
        %5254 = vst.msk [vmem:[%s325 + $0x160] sm:$0xff] %vm623, %v399
        %5255 = vst.msk [vmem:[%s325 + $0x168] sm:$0xff] %vm623, %v400
        %5256 = vst.msk [vmem:[%s325 + $0x170] sm:$0xff] %vm623, %v401
        %5257 = vst.msk [vmem:[%s325 + $0x178] sm:$0xff] %vm623, %v402
        %5258 = vst.msk [vmem:[%s325 + $0x180] sm:$0xff] %vm623, %v403
        %5259 = vst.msk [vmem:[%s325 + $0x188] sm:$0xff] %vm623, %v404
        %5260 = vst.msk [vmem:[%s325 + $0x190] sm:$0xff] %vm623, %v405
        %5261 = vst.msk [vmem:[%s325 + $0x198] sm:$0xff] %vm623, %v406
        %5262 = vst.msk [vmem:[%s325 + $0x1a0] sm:$0xff] %vm623, %v407
        %5263 = vst.msk [vmem:[%s325 + $0x1a8] sm:$0xff] %vm623, %v408
        %5264 = vst.msk [vmem:[%s325 + $0x1b0] sm:$0xff] %vm623, %v409
        %5265 = vst.msk [vmem:[%s325 + $0x1b8] sm:$0xff] %vm623, %v410
        %s5266 = sand.u32 %s186, 1
        %s5267 = scalar_lea.sflag [#allocation6], %s5266
        %s5268 = sand.u32 %s186, 1
        %s5269 = smul.addr %s5268, 448
        %s5270 = scalar_lea.vmem [#allocation7], %s5269
        %s5271 = smul.u32 2, %s26
        %p5272 = scmp.lt.s32.totalorder %s5271, 3
        %s5273 = scalar_select %p5272, %s5271, 3
        %s5274 = smul.addr %s5273, 32
        %s5275 = smul.addr %s5274, 8
        %s5276 = scalar_lea.vmem %s8, %s5275
        // Predicated region
        $region53: #{tpu_custom_call.1} parent=47 // pred_check
          %p5277 = pneg %p196
        $region54: #{tpu_custom_call.1} parent=47 // pred_check_branch
          %5279 = sbr.rel (%p5277) target = $region56
        $region55: #{tpu_custom_call.1} parent=47 // pred_region
          %s5280 = smul.u32 2, %s26
          %s5282 = ssub.s32 7168, 7168
          %5283 = vsyncadd %s5267, %s5282
          %s5284 = smul.addr %s5280, 28
          %s5285 = smul.addr %s5284, 128
          %s5286 = scalar_lea.hbm %s7, %s5285
          %s5287 = sshll.u32 %s5270, 4
          %s5288 = int_to_ptr.vmem [resolvable:$true] %s5287
          %5293 = dma.vmem_to_hbm [thread:$0]  %s5288, 7168, %s5286, %s5267, 128, 128, 8
        $region56: #{tpu_custom_call.1} parent=47 // pred_fallthru
          _
        // Predicated region
        $region57: #{tpu_custom_call.1} parent=47 // pred_check
          %p5294 = pneg %p222
        $region58: #{tpu_custom_call.1} parent=47 // pred_check_branch
          %5296 = sbr.rel (%p5294) target = $region60
        $region59: #{tpu_custom_call.1} parent=47 // pred_region
          %s5297 = smul.u32 2, %s26
        $region60: #{tpu_custom_call.1} parent=47 // pred_fallthru
          _
      $region48: #{tpu_custom_call.1} parent=5 // pred_fallthru
        _
      %p5298 = scmp.le.s32.totalorder 2, %s21
      // Predicated region
      $region61: #{tpu_custom_call.1} parent=5 // pred_check
        %p5299 = pneg %p5298
      $region62: #{tpu_custom_call.1} parent=5 // pred_check_branch
        %5301 = sbr.rel (%p5299) target = $region64
      $region63: #{tpu_custom_call.1} parent=5 // pred_region
        %s5302 = ssub.s32 %s21, 2
        // Predicated region
        $region65: #{tpu_custom_call.1} parent=63 // pred_check
          %p5303 = pneg %p202
        $region66: #{tpu_custom_call.1} parent=63 // pred_check_branch
          %5305 = sbr.rel (%p5303) target = $region68
        $region67: #{tpu_custom_call.1} parent=63 // pred_region
          %s5306 = sand.u32 %s187, 1
          %s5307 = scalar_lea.sflag [#allocation6], %s5306
          %s5308 = sand.u32 %s187, 1
          %s5309 = smul.addr %s5308, 448
          %s5310 = scalar_lea.vmem [#allocation7], %s5309
          %5311 = dma.done %s5307, 7168
        $region68: #{tpu_custom_call.1} parent=63 // pred_fallthru
          _
        // Predicated region
        $region69: #{tpu_custom_call.1} parent=63 // pred_check
          %p5312 = pneg %p228
        $region70: #{tpu_custom_call.1} parent=63 // pred_check_branch
          %5314 = sbr.rel (%p5312) target = $region72
        $region71: #{tpu_custom_call.1} parent=63 // pred_region
          %s5315 = smul.u32 2, %s27
          %p5316 = scmp.lt.s32.totalorder %s5315, 3
          %s5317 = scalar_select %p5316, %s5315, 3
          %s5318 = smul.addr %s5317, 32
          %s5319 = smul.addr %s5318, 8
          %s5320 = scalar_lea.vmem %s8, %s5319
        $region72: #{tpu_custom_call.1} parent=63 // pred_fallthru
          _
      $region64: #{tpu_custom_call.1} parent=5 // pred_fallthru
        _
    $region6: #{tpu_custom_call.1} parent=1 // loop_footer
      %s25 = sadd.s32 1, %s21
    $region7: #{tpu_custom_call.1} parent=1 // loop_footer_branch
      %20 = sbr.rel target = $region3
    $region8: #{tpu_custom_call.1} parent=1 // loop_exit
      _
    %5321 = vsyncpa [#allocation5], 1
    %s5322 = scalar_lea.sflag [#allocation5], 1
    %5323 = vsyncpa %s5322, 1
    %5324 = vsyncpa [#allocation6], 1
    %s5325 = scalar_lea.sflag [#allocation6], 1
    %5326 = vsyncpa %s5325, 1

</llo_original>
